<compile_context>
chip_gen: v7x
topology: tpu7x:2x2x1
jax: 0.10.0
libtpu: 0.0.40
codegen_flags: <defaults>
</compile_context>

<pallas_src>
import jax
import jax.numpy as jnp
import numpy as np
from jax import lax
from jax.experimental import pallas as pl
from jax.experimental.pallas import tpu as pltpu


# ----------------------------------------------------------------------------
# Kernel
# ----------------------------------------------------------------------------
def ocr_attention_kernel(x_ref, k_ref, v_ref,
                         wp1_ref, bp1_ref, wp2_ref, bp2_ref, wu_ref, bu_ref,
                         out_ref):
    # x block is an NCHW slab: (1, Cin, TQ), channels on sublanes, queries on lanes.
    x_ct = x_ref[0]                                     # (Cin, TQ) f32
    xt = jnp.transpose(x_ct)                            # (TQ, Cin) — XLU, overlaps MXU

    def cbr(t, w_ref, b_ref):
        # 1x1 conv (BN scale folded into w): bf16 MXU, f32 accumulate, +bias, ReLU.
        y = jnp.dot(t.astype(jnp.bfloat16), w_ref[...],
                    preferred_element_type=jnp.float32)
        return jnp.maximum(y + b_ref[...], 0.0)

    # f_pixel (query path); K^-0.5 and the BN scale are pre-folded into wp2/bp2.
    q = cbr(cbr(xt, wp1_ref, bp1_ref), wp2_ref, bp2_ref)          # (TQ, K) f32

    k = k_ref[0]                                        # (M, K) bf16 (precomputed per batch)
    v = v_ref[0]                                        # (M, K) bf16 (precomputed per batch)

    # sim = q @ k^T without materializing a transposed k.
    sim = lax.dot_general(q.astype(jnp.bfloat16), k,
                          dimension_numbers=(((1,), (1,)), ((), ())),
                          preferred_element_type=jnp.float32)     # (TQ, M) f32

    # softmax over the object axis (f32; reciprocal on the EUP slot).
    sim = sim - jnp.max(sim, axis=-1, keepdims=True)
    e = jnp.exp(sim)
    inv = pl.reciprocal(jnp.sum(e, axis=-1, keepdims=True), approx=True)
    attn = e * inv                                      # (TQ, M) f32

    ctx = jnp.dot(attn.astype(jnp.bfloat16), v,
                  preferred_element_type=jnp.float32)   # (TQ, K) f32

    out = cbr(ctx, wu_ref, bu_ref)                      # (TQ, Cin) f32
    # Store back in NCHW layout; queries stay on lanes -> lane-dense vst.
    out_ref[0] = jnp.transpose(out).astype(out_ref.dtype)


# ----------------------------------------------------------------------------
# Wrapper
# ----------------------------------------------------------------------------
def _pick_tile(hw, target):
    """Query tile (lane dim of the NCHW block): a multiple of 128; prefer a divisor of HW."""
    tq = max(128, (min(int(target), max(int(hw), 128)) // 128) * 128)
    for cand in range(tq, 127, -128):
        if hw % cand == 0:
            return cand
    return tq  # no multiple-of-128 divisor -> wrapper pads HW up to a multiple of tq


def object_attention_block(x_nchw, proxy_nchw, params, key_channels, *,
                           tq=1024, compute_dtype=jnp.bfloat16, out_dtype=None):
    """x: (N, Cin, H, W), proxy: (N, Cin, Hp, Wp) -> (N, Cin, H, W). scale=1 only."""
    N, Cin, H, W = x_nchw.shape
    _, _, Hp, Wp = proxy_nchw.shape
    HW = H * W
    M = Hp * Wp
    if out_dtype is None:
        out_dtype = x_nchw.dtype
    cd = compute_dtype

    (wp1, sp1, bp1, wp2, sp2, bp2,
     wo1, so1, bo1, wo2, so2, bo2,
     wd, sd, bd, wu, su, bu) = params

    # Fold BN scales into the conv weights (relu(x@w*s+b) == relu(x@(w*s)+b));
    # the attention scale K^-0.5 (>0, commutes with ReLU) folds into f_pixel[1].
    c = float(key_channels) ** -0.5
    wp1f = (wp1 * sp1).astype(cd)
    wp2f = (wp2 * sp2 * c).astype(cd)
    bp2f = bp2 * c
    wuf = (wu * su).astype(cd)

    # Proxy (object-region) path hoisted out of the kernel: M is tiny, so the
    # per-tile recompute wasted full MXU passes; compute k, v once per batch.
    p_flat = proxy_nchw.reshape(N, Cin, M)

    def cbr_p(t_ncm, w, s, b):                 # (N,Cin,M) x (Cin,Co) -> (N,M,Co)
        return jnp.maximum(jnp.einsum('ncm,co->nmo', t_ncm, w) * s + b, 0.0)

    k_nmk = jnp.maximum(
        jnp.einsum('nmc,co->nmo', cbr_p(p_flat, wo1, so1, bo1), wo2) * so2 + bo2,
        0.0)
    v_nmk = cbr_p(p_flat, wd, sd, bd)
    k_bf = k_nmk.astype(cd)
    v_bf = v_nmk.astype(cd)

    weight_args = (wp1f, bp1, wp2f, bp2f, wuf, bu)

    # x stays NCHW (no wrapper transpose / cast HBM passes); kernel reads f32
    # (1, Cin, tq) slabs and transposes + casts on-chip.
    x_flat = x_nchw.reshape(N, Cin, HW)

    # ---- per-generation VMEM budgeting + tile selection ---------------------
    try:
        vmem_cap = int(pltpu.get_tpu_info().vmem_capacity_bytes)
    except Exception:
        vmem_cap = 64 * 2**20                  # conservative (v7x per-TensorCore)
    budget = vmem_cap - 16 * 2**20             # headroom for compiler scratch

    out_itemsize = np.dtype(out_dtype).itemsize
    weight_bytes = sum(int(np.prod(a.shape)) * a.dtype.itemsize for a in weight_args)
    kv_bytes = 2 * M * key_channels * np.dtype(cd).itemsize

    def working_set(tq_):
        x_blk = Cin * tq_ * x_flat.dtype.itemsize
        o_blk = Cin * tq_ * out_itemsize
        temps = tq_ * (4 * key_channels + 3 * M + 3 * Cin) * 4   # f32 intermediates
        return 2 * (x_blk + o_blk + kv_bytes) + 2 * weight_bytes + temps

    tq = _pick_tile(HW, tq)
    while tq > 128 and working_set(tq) > budget:
        tq -= 128

    # Megacore balance: ensure >= 2 grid steps so both TensorCores get work.
    if N * (-(-HW // tq)) < 2 and HW > 128:
        tq = max(128, ((HW // 2 + 127) // 128) * 128)

    hw_pad = -(-HW // tq) * tq
    if hw_pad != HW:
        # Padded query tokens are computed and sliced away; they cannot affect
        # real tokens (attention mixes only over the M object regions).
        x_flat = jnp.pad(x_flat, ((0, 0), (0, 0), (0, hw_pad - HW)))
    n_q = hw_pad // tq

    vmem_limit = int(min(budget, max(32 * 2**20, 2 * working_set(tq))))

    def const_spec(a, single_buffer):
        nd = a.ndim
        idx = lambda b, q, _nd=nd: (0,) * _nd
        if single_buffer:
            # Grid-constant block: never re-DMA'd; single-buffer to halve footprint.
            return pl.BlockSpec(a.shape, idx, pipeline_mode=pl.Buffered(1))
        return pl.BlockSpec(a.shape, idx)

    def build(single_buffer_weights):
        in_specs = [
            pl.BlockSpec((1, Cin, tq), lambda b, q: (b, 0, q)),
            pl.BlockSpec((1, M, key_channels), lambda b, q: (b, 0, 0)),
            pl.BlockSpec((1, M, key_channels), lambda b, q: (b, 0, 0)),
        ] + [const_spec(a, single_buffer_weights) for a in weight_args]
        return pl.pallas_call(
            ocr_attention_kernel,
            out_shape=jax.ShapeDtypeStruct((N, Cin, hw_pad), out_dtype),
            grid_spec=pltpu.PrefetchScalarGridSpec(
                num_scalar_prefetch=0,
                grid=(N, n_q),
                in_specs=in_specs,
                out_specs=pl.BlockSpec((1, Cin, tq), lambda b, q: (b, 0, q)),
            ),
            compiler_params=pltpu.CompilerParams(
                dimension_semantics=("parallel", "parallel"),
                vmem_limit_bytes=vmem_limit,
            ),
        )

    args = (x_flat, k_bf, v_bf) + weight_args
    try:
        out_flat = build(True)(*args)
    except Exception:
        # pl.Buffered(1) single-buffering unsupported on this jax/Mosaic version:
        # fall back to default double-buffered weight blocks (correctness identical).
        out_flat = build(False)(*args)

    if hw_pad != HW:
        out_flat = out_flat[:, :, :HW]
    return out_flat.reshape(N, Cin, H, W)


# ----------------------------------------------------------------------------
# Parameters (synthetic, eval-mode BN folded into per-channel scale/bias)
# ----------------------------------------------------------------------------
def init_params(key, in_channels, key_channels):
    eps = 1e-5
    ks = jax.random.split(key, 12)

    def conv_w(k, cin, cout):
        return (jax.random.normal(k, (cin, cout), jnp.float32)
                * (1.0 / np.sqrt(cin))).astype(jnp.float32)

    def bn_fold(k, c):
        k1, k2, k3, k4 = jax.random.split(k, 4)
        gamma = 1.0 + 0.1 * jax.random.normal(k1, (c,), jnp.float32)
        beta = 0.1 * jax.random.normal(k2, (c,), jnp.float32)
        mean = 0.05 * jax.random.normal(k3, (c,), jnp.float32)
        var = 1.0 + 0.1 * jax.random.uniform(k4, (c,), jnp.float32)
        scale = gamma / jnp.sqrt(var + eps)
        bias = beta - mean * scale
        return scale.reshape(1, c), bias.reshape(1, c)

    def block(kw, kb, cin, cout):
        w = conv_w(kw, cin, cout)
        s, b = bn_fold(kb, cout)
        return w, s, b

    wp1, sp1, bp1 = block(ks[0], ks[1], in_channels, key_channels)    # f_pixel[0]
    wp2, sp2, bp2 = block(ks[2], ks[3], key_channels, key_channels)   # f_pixel[1]
    wo1, so1, bo1 = block(ks[4], ks[5], in_channels, key_channels)    # f_object[0]
    wo2, so2, bo2 = block(ks[6], ks[7], key_channels, key_channels)   # f_object[1]
    wd, sd, bd = block(ks[8], ks[9], in_channels, key_channels)       # f_down
    wu, su, bu = block(ks[10], ks[11], key_channels, in_channels)     # f_up

    return (wp1, sp1, bp1, wp2, sp2, bp2,
            wo1, so1, bo1, wo2, so2, bo2,
            wd, sd, bd,
            wu, su, bu)


# ----------------------------------------------------------------------------
# References
# ----------------------------------------------------------------------------
def reference_forward(x_nchw, proxy_nchw, params, key_channels):
    """Pure-JAX f32 reference mirroring the PyTorch forward (scale=1)."""
    (wp1, sp1, bp1, wp2, sp2, bp2,
     wo1, so1, bo1, wo2, so2, bo2,
     wd, sd, bd, wu, su, bu) = params

    N, Cin, H, W = x_nchw.shape
    M = proxy_nchw.shape[2] * proxy_nchw.shape[3]
    x = jnp.transpose(x_nchw, (0, 2, 3, 1)).reshape(N, H * W, Cin)
    p = jnp.transpose(proxy_nchw, (0, 2, 3, 1)).reshape(N, M, Cin)

    def cbr(t, w, s, b):
        return jnp.maximum(t @ w * s + b, 0.0)

    q = cbr(cbr(x, wp1, sp1, bp1), wp2, sp2, bp2)
    k = cbr(cbr(p, wo1, so1, bo1), wo2, so2, bo2)
    v = cbr(p, wd, sd, bd)
    sim = jnp.einsum("nqc,nkc->nqk", q, k) * (key_channels ** -0.5)
    sim = jax.nn.softmax(sim, axis=-1)
    ctx = jnp.einsum("nqk,nkc->nqc", sim, v)
    out = cbr(ctx, wu, su, bu)
    return jnp.transpose(out.reshape(N, H, W, Cin), (0, 3, 1, 2))


def reference_mirrored(x_nchw, proxy_nchw, params, key_channels,
                       compute_dtype=jnp.bfloat16):
    """Same semantics, mirroring the kernel's mixed precision: scale-folded bf16
    weights, bf16 matmul operands with f32 accumulation, f32 proxy path."""
    (wp1, sp1, bp1, wp2, sp2, bp2,
     wo1, so1, bo1, wo2, so2, bo2,
     wd, sd, bd, wu, su, bu) = params
    cd = compute_dtype
    c = float(key_channels) ** -0.5
    wp1f = (wp1 * sp1).astype(cd)
    wp2f = (wp2 * sp2 * c).astype(cd)
    bp2f = bp2 * c
    wuf = (wu * su).astype(cd)

    N, Cin, H, W = x_nchw.shape
    M = proxy_nchw.shape[2] * proxy_nchw.shape[3]
    x = jnp.transpose(x_nchw, (0, 2, 3, 1)).reshape(N, H * W, Cin)
    p = proxy_nchw.reshape(N, Cin, M)

    def cbr_bf(t, w, b):
        y = jnp.einsum("ntc,ck->ntk", t.astype(cd), w,
                       preferred_element_type=jnp.float32)
        return jnp.maximum(y + b, 0.0)

    q = cbr_bf(cbr_bf(x, wp1f, bp1), wp2f, bp2f)

    def cbr_p(t_ncm, w, s, b):
        return jnp.maximum(jnp.einsum('ncm,co->nmo', t_ncm, w) * s + b, 0.0)

    k = jnp.maximum(
        jnp.einsum('nmc,co->nmo', cbr_p(p, wo1, so1, bo1), wo2) * so2 + bo2, 0.0)
    v = cbr_p(p, wd, sd, bd)

    sim = jnp.einsum("nqc,nkc->nqk", q.astype(cd), k.astype(cd),
                     preferred_element_type=jnp.float32)
    attn = jax.nn.softmax(sim, axis=-1)
    ctx = jnp.einsum("nqk,nkc->nqc", attn.astype(cd), v.astype(cd),
                     preferred_element_type=jnp.float32)
    out = cbr_bf(ctx, wuf, bu)
    return jnp.transpose(out.reshape(N, H, W, Cin), (0, 3, 1, 2))


# ----------------------------------------------------------------------------
if __name__ == "__main__":
    in_channels = 128
    key_channels = 64
    N, H, W = 2, 16, 16
    Hp, Wp = 8, 1   # proxy = per-object region features (num_objects x 1)

    root = jax.random.PRNGKey(0)
    kx, kp, kparams = jax.random.split(root, 3)
    x = jax.random.normal(kx, (N, in_channels, H, W), jnp.float32)
    proxy = jax.random.normal(kp, (N, in_channels, Hp, Wp), jnp.float32)
    params = init_params(kparams, in_channels, key_channels)

    # tq=128 at HW=256 -> grid=(2, 2): exercises the tiled query axis.
    out = object_attention_block(x, proxy, params, key_channels, tq=128)
    out = jax.block_until_ready(out)
    assert out.shape == (N, in_channels, H, W)
    assert out.dtype == x.dtype

    # Tight check vs a reference mirroring the kernel's mixed precision.
    ref_m = jax.block_until_ready(
        reference_mirrored(x, proxy, params, key_channels))
    assert np.allclose(np.asarray(out), np.asarray(ref_m),
                       atol=1e-2, rtol=1e-2), "mismatch vs mixed-precision reference"

    # Loose semantic check vs the full-f32 module reference (bf16 matmul error).
    ref_f32 = jax.block_until_ready(
        reference_forward(x, proxy, params, key_channels))
    assert np.allclose(np.asarray(out), np.asarray(ref_f32),
                       atol=1e-1, rtol=1e-1), "mismatch vs f32 module reference"

    # bf16 writeback path (halves HBM store traffic when downstream accepts bf16).
    out_bf = object_attention_block(x, proxy, params, key_channels, tq=128,
                                    out_dtype=jnp.bfloat16)
    out_bf = jax.block_until_ready(out_bf)
    assert out_bf.dtype == jnp.bfloat16
    assert np.allclose(np.asarray(out_bf.astype(jnp.float32)), np.asarray(ref_m),
                       atol=5e-2, rtol=5e-2), "mismatch on bf16 output path"

    print("KERNEL_OK")
</pallas_src>

<mosaic_0001>
module attributes {stable_mosaic.version = 11 : i64} {
  func.func @ocr_attention_kernel(%arg0: i32, %arg1: i32, %arg2: memref<1x128x128xf32, #tpu.memory_space<vmem>>, %arg3: memref<1x8x64xbf16, #tpu.memory_space<vmem>>, %arg4: memref<1x8x64xbf16, #tpu.memory_space<vmem>>, %arg5: memref<128x64xbf16, #tpu.memory_space<vmem>>, %arg6: memref<1x64xf32, #tpu.memory_space<vmem>>, %arg7: memref<64x64xbf16, #tpu.memory_space<vmem>>, %arg8: memref<1x64xf32, #tpu.memory_space<vmem>>, %arg9: memref<64x128xbf16, #tpu.memory_space<vmem>>, %arg10: memref<1x128xf32, #tpu.memory_space<vmem>>, %arg11: memref<1x128x128xf32, #tpu.memory_space<vmem>>) attributes {dimension_semantics = [#tpu.dimension_semantics<parallel>, #tpu.dimension_semantics<parallel>], iteration_bounds = array<i64: 2, 2>, scalar_prefetch = 0 : i64, scratch_operands = 0 : i64, tpu.core_type = #tpu.core_type<tc>, window_params = [{transform_indices = @transform_0, window_bounds = array<i64: 1, 128, 128>}, {transform_indices = @transform_1, window_bounds = array<i64: 1, 8, 64>}, {transform_indices = @transform_2, window_bounds = array<i64: 1, 8, 64>}, {pipeline_mode = #tpu.pipeline_mode<synchronous>, transform_indices = @transform_3, window_bounds = array<i64: 128, 64>}, {pipeline_mode = #tpu.pipeline_mode<synchronous>, transform_indices = @transform_4, window_bounds = array<i64: 1, 64>}, {pipeline_mode = #tpu.pipeline_mode<synchronous>, transform_indices = @transform_5, window_bounds = array<i64: 64, 64>}, {pipeline_mode = #tpu.pipeline_mode<synchronous>, transform_indices = @transform_6, window_bounds = array<i64: 1, 64>}, {pipeline_mode = #tpu.pipeline_mode<synchronous>, transform_indices = @transform_7, window_bounds = array<i64: 64, 128>}, {pipeline_mode = #tpu.pipeline_mode<synchronous>, transform_indices = @transform_8, window_bounds = array<i64: 1, 128>}, {transform_indices = @transform_9, window_bounds = array<i64: 1, 128, 128>}]} {
    %c0 = arith.constant 0 : index
    %c0_0 = arith.constant 0 : index
    %c0_1 = arith.constant 0 : index
    %0 = vector.load %arg2[%c0, %c0_0, %c0_1] : memref<1x128x128xf32, #tpu.memory_space<vmem>>, vector<1x128x128xf32>
    %1 = vector.shape_cast %0 : vector<1x128x128xf32> to vector<128x128xf32>
    %2 = tpu.transpose %1, [1, 0] : vector<128x128xf32> -> vector<128x128xf32>
    %3 = arith.truncf %2 : vector<128x128xf32> to vector<128x128xbf16>
    %c0_2 = arith.constant 0 : index
    %c0_3 = arith.constant 0 : index
    %4 = vector.load %arg5[%c0_2, %c0_3] : memref<128x64xbf16, #tpu.memory_space<vmem>>, vector<128x64xbf16>
    %cst = arith.constant dense<0.000000e+00> : vector<128x64xf32>
    %5 = tpu.matmul %3, %4, %cst {dimension_numbers = #tpu.dot_dimension_numbers<[1], [0], [0], [1], [0, 0, 1, 1], [], []>} : vector<128x128xbf16>, vector<128x64xbf16>, vector<128x64xf32> -> vector<128x64xf32>
    %c0_4 = arith.constant 0 : index
    %c0_5 = arith.constant 0 : index
    %6 = vector.load %arg6[%c0_4, %c0_5] : memref<1x64xf32, #tpu.memory_space<vmem>>, vector<1x64xf32>
    %7 = vector.broadcast %6 : vector<1x64xf32> to vector<128x64xf32>
    %8 = arith.addf %5, %7 : vector<128x64xf32>
    %cst_6 = arith.constant 0.000000e+00 : f32
    %9 = vector.broadcast %cst_6 : f32 to vector<128x64xf32>
    %10 = arith.maximumf %8, %9 : vector<128x64xf32>
    %11 = arith.truncf %10 : vector<128x64xf32> to vector<128x64xbf16>
    %c0_7 = arith.constant 0 : index
    %c0_8 = arith.constant 0 : index
    %12 = vector.load %arg7[%c0_7, %c0_8] : memref<64x64xbf16, #tpu.memory_space<vmem>>, vector<64x64xbf16>
    %cst_9 = arith.constant dense<0.000000e+00> : vector<128x64xf32>
    %13 = tpu.matmul %11, %12, %cst_9 {dimension_numbers = #tpu.dot_dimension_numbers<[1], [0], [0], [1], [0, 0, 1, 1], [], []>} : vector<128x64xbf16>, vector<64x64xbf16>, vector<128x64xf32> -> vector<128x64xf32>
    %c0_10 = arith.constant 0 : index
    %c0_11 = arith.constant 0 : index
    %14 = vector.load %arg8[%c0_10, %c0_11] : memref<1x64xf32, #tpu.memory_space<vmem>>, vector<1x64xf32>
    %15 = vector.broadcast %14 : vector<1x64xf32> to vector<128x64xf32>
    %16 = arith.addf %13, %15 : vector<128x64xf32>
    %cst_12 = arith.constant 0.000000e+00 : f32
    %17 = vector.broadcast %cst_12 : f32 to vector<128x64xf32>
    %18 = arith.maximumf %16, %17 : vector<128x64xf32>
    %c0_13 = arith.constant 0 : index
    %c0_14 = arith.constant 0 : index
    %c0_15 = arith.constant 0 : index
    %19 = vector.load %arg3[%c0_13, %c0_14, %c0_15] : memref<1x8x64xbf16, #tpu.memory_space<vmem>>, vector<1x8x64xbf16>
    %20 = vector.shape_cast %19 : vector<1x8x64xbf16> to vector<8x64xbf16>
    %c0_16 = arith.constant 0 : index
    %c0_17 = arith.constant 0 : index
    %c0_18 = arith.constant 0 : index
    %21 = vector.load %arg4[%c0_16, %c0_17, %c0_18] : memref<1x8x64xbf16, #tpu.memory_space<vmem>>, vector<1x8x64xbf16>
    %22 = vector.shape_cast %21 : vector<1x8x64xbf16> to vector<8x64xbf16>
    %23 = arith.truncf %18 : vector<128x64xf32> to vector<128x64xbf16>
    %cst_19 = arith.constant dense<0.000000e+00> : vector<128x8xf32>
    %24 = tpu.matmul %23, %20, %cst_19 {dimension_numbers = #tpu.dot_dimension_numbers<[1], [1], [0], [0], [0, 0, 1, 0], [], []>} : vector<128x64xbf16>, vector<8x64xbf16>, vector<128x8xf32> -> vector<128x8xf32>
    %cst_20 = arith.constant dense<0xFF800000> : vector<128xf32>
    %25 = vector.multi_reduction <maximumf>, %24, %cst_20 [1] : vector<128x8xf32> to vector<128xf32>
    %26 = vector.shape_cast %25 : vector<128xf32> to vector<128x1xf32>
    %27 = vector.broadcast %26 : vector<128x1xf32> to vector<128x8xf32>
    %28 = arith.subf %24, %27 : vector<128x8xf32>
    %29 = math.exp %28 : vector<128x8xf32>
    %cst_21 = arith.constant dense<0.000000e+00> : vector<128xf32>
    %30 = vector.multi_reduction <add>, %29, %cst_21 [1] : vector<128x8xf32> to vector<128xf32>
    %31 = vector.shape_cast %30 : vector<128xf32> to vector<128x1xf32>
    %32 = tpu.reciprocal %31 {approx = true} : vector<128x1xf32> -> vector<128x1xf32>
    %33 = vector.broadcast %32 : vector<128x1xf32> to vector<128x8xf32>
    %34 = arith.mulf %29, %33 : vector<128x8xf32>
    %35 = arith.truncf %34 : vector<128x8xf32> to vector<128x8xbf16>
    %cst_22 = arith.constant dense<0.000000e+00> : vector<128x64xf32>
    %36 = tpu.matmul %35, %22, %cst_22 {dimension_numbers = #tpu.dot_dimension_numbers<[1], [0], [0], [1], [0, 0, 1, 1], [], []>} : vector<128x8xbf16>, vector<8x64xbf16>, vector<128x64xf32> -> vector<128x64xf32>
    %37 = arith.truncf %36 : vector<128x64xf32> to vector<128x64xbf16>
    %c0_23 = arith.constant 0 : index
    %c0_24 = arith.constant 0 : index
    %38 = vector.load %arg9[%c0_23, %c0_24] : memref<64x128xbf16, #tpu.memory_space<vmem>>, vector<64x128xbf16>
    %cst_25 = arith.constant dense<0.000000e+00> : vector<128x128xf32>
    %39 = tpu.matmul %37, %38, %cst_25 {dimension_numbers = #tpu.dot_dimension_numbers<[1], [0], [0], [1], [0, 0, 1, 1], [], []>} : vector<128x64xbf16>, vector<64x128xbf16>, vector<128x128xf32> -> vector<128x128xf32>
    %c0_26 = arith.constant 0 : index
    %c0_27 = arith.constant 0 : index
    %40 = vector.load %arg10[%c0_26, %c0_27] : memref<1x128xf32, #tpu.memory_space<vmem>>, vector<1x128xf32>
    %41 = vector.broadcast %40 : vector<1x128xf32> to vector<128x128xf32>
    %42 = arith.addf %39, %41 : vector<128x128xf32>
    %cst_28 = arith.constant 0.000000e+00 : f32
    %43 = vector.broadcast %cst_28 : f32 to vector<128x128xf32>
    %44 = arith.maximumf %42, %43 : vector<128x128xf32>
    %45 = tpu.transpose %44, [1, 0] : vector<128x128xf32> -> vector<128x128xf32>
    %c0_29 = arith.constant 0 : index
    %c0_30 = arith.constant 0 : index
    %c0_31 = arith.constant 0 : index
    %46 = vector.load %arg11[%c0_29, %c0_30, %c0_31] : memref<1x128x128xf32, #tpu.memory_space<vmem>>, vector<1x128x128xf32>
    %47 = vector.shape_cast %46 : vector<1x128x128xf32> to vector<128x128xf32>
    %48 = vector.shape_cast %45 : vector<128x128xf32> to vector<1x128x128xf32>
    tpu.vector_store %arg11[%c0_29, %c0_30, %c0_31], %48 {strides = array<i32>} : memref<1x128x128xf32, #tpu.memory_space<vmem>>, vector<1x128x128xf32>,
    return
  }
  func.func @transform_0(%arg0: i32, %arg1: i32) -> (i32, i32, i32) {
    %c0_i32 = arith.constant 0 : i32
    %c0_i32_0 = arith.constant 0 : i32
    return %arg0, %c0_i32, %arg1 : i32, i32, i32
  }
  func.func @transform_1(%arg0: i32, %arg1: i32) -> (i32, i32, i32) {
    %c0_i32 = arith.constant 0 : i32
    %c0_i32_0 = arith.constant 0 : i32
    %c0_i32_1 = arith.constant 0 : i32
    return %arg0, %c0_i32, %c0_i32_0 : i32, i32, i32
  }
  func.func @transform_2(%arg0: i32, %arg1: i32) -> (i32, i32, i32) {
    %c0_i32 = arith.constant 0 : i32
    %c0_i32_0 = arith.constant 0 : i32
    %c0_i32_1 = arith.constant 0 : i32
    return %arg0, %c0_i32, %c0_i32_0 : i32, i32, i32
  }
  func.func @transform_3(%arg0: i32, %arg1: i32) -> (i32, i32) {
    %c0_i32 = arith.constant 0 : i32
    %c0_i32_0 = arith.constant 0 : i32
    %c0_i32_1 = arith.constant 0 : i32
    return %c0_i32, %c0_i32_0 : i32, i32
  }
  func.func @transform_4(%arg0: i32, %arg1: i32) -> (i32, i32) {
    %c0_i32 = arith.constant 0 : i32
    %c0_i32_0 = arith.constant 0 : i32
    %c0_i32_1 = arith.constant 0 : i32
    return %c0_i32, %c0_i32_0 : i32, i32
  }
  func.func @transform_5(%arg0: i32, %arg1: i32) -> (i32, i32) {
    %c0_i32 = arith.constant 0 : i32
    %c0_i32_0 = arith.constant 0 : i32
    %c0_i32_1 = arith.constant 0 : i32
    return %c0_i32, %c0_i32_0 : i32, i32
  }
  func.func @transform_6(%arg0: i32, %arg1: i32) -> (i32, i32) {
    %c0_i32 = arith.constant 0 : i32
    %c0_i32_0 = arith.constant 0 : i32
    %c0_i32_1 = arith.constant 0 : i32
    return %c0_i32, %c0_i32_0 : i32, i32
  }
  func.func @transform_7(%arg0: i32, %arg1: i32) -> (i32, i32) {
    %c0_i32 = arith.constant 0 : i32
    %c0_i32_0 = arith.constant 0 : i32
    %c0_i32_1 = arith.constant 0 : i32
    return %c0_i32, %c0_i32_0 : i32, i32
  }
  func.func @transform_8(%arg0: i32, %arg1: i32) -> (i32, i32) {
    %c0_i32 = arith.constant 0 : i32
    %c0_i32_0 = arith.constant 0 : i32
    %c0_i32_1 = arith.constant 0 : i32
    return %c0_i32, %c0_i32_0 : i32, i32
  }
  func.func @transform_9(%arg0: i32, %arg1: i32) -> (i32, i32, i32) {
    %c0_i32 = arith.constant 0 : i32
    %c0_i32_0 = arith.constant 0 : i32
    return %arg0, %c0_i32, %arg1 : i32, i32, i32
  }
}

module attributes {stable_mosaic.version = 11 : i64} {
  func.func @ocr_attention_kernel(%arg0: i32, %arg1: i32, %arg2: memref<1x128x128xf32, #tpu.memory_space<vmem>>, %arg3: memref<1x8x64xbf16, #tpu.memory_space<vmem>>, %arg4: memref<1x8x64xbf16, #tpu.memory_space<vmem>>, %arg5: memref<128x64xbf16, #tpu.memory_space<vmem>>, %arg6: memref<1x64xf32, #tpu.memory_space<vmem>>, %arg7: memref<64x64xbf16, #tpu.memory_space<vmem>>, %arg8: memref<1x64xf32, #tpu.memory_space<vmem>>, %arg9: memref<64x128xbf16, #tpu.memory_space<vmem>>, %arg10: memref<1x128xf32, #tpu.memory_space<vmem>>, %arg11: memref<1x128x128xf32, #tpu.memory_space<vmem>>) attributes {dimension_semantics = [#tpu.dimension_semantics<parallel>, #tpu.dimension_semantics<parallel>], iteration_bounds = array<i64: 2, 2>, scalar_prefetch = 0 : i64, scratch_operands = 0 : i64, tpu.core_type = #tpu.core_type<tc>, window_params = [{transform_indices = @transform_0, window_bounds = array<i64: 1, 128, 128>}, {transform_indices = @transform_1, window_bounds = array<i64: 1, 8, 64>}, {transform_indices = @transform_2, window_bounds = array<i64: 1, 8, 64>}, {pipeline_mode = #tpu.pipeline_mode<synchronous>, transform_indices = @transform_3, window_bounds = array<i64: 128, 64>}, {pipeline_mode = #tpu.pipeline_mode<synchronous>, transform_indices = @transform_4, window_bounds = array<i64: 1, 64>}, {pipeline_mode = #tpu.pipeline_mode<synchronous>, transform_indices = @transform_5, window_bounds = array<i64: 64, 64>}, {pipeline_mode = #tpu.pipeline_mode<synchronous>, transform_indices = @transform_6, window_bounds = array<i64: 1, 64>}, {pipeline_mode = #tpu.pipeline_mode<synchronous>, transform_indices = @transform_7, window_bounds = array<i64: 64, 128>}, {pipeline_mode = #tpu.pipeline_mode<synchronous>, transform_indices = @transform_8, window_bounds = array<i64: 1, 128>}, {transform_indices = @transform_9, window_bounds = array<i64: 1, 128, 128>}]} {
    %c0 = arith.constant 0 : index
    %c0_0 = arith.constant 0 : index
    %c0_1 = arith.constant 0 : index
    %0 = vector.load %arg2[%c0, %c0_0, %c0_1] : memref<1x128x128xf32, #tpu.memory_space<vmem>>, vector<1x128x128xf32>
    %1 = vector.shape_cast %0 : vector<1x128x128xf32> to vector<128x128xf32>
    %2 = tpu.transpose %1, [1, 0] : vector<128x128xf32> -> vector<128x128xf32>
    %3 = arith.truncf %2 : vector<128x128xf32> to vector<128x128xbf16>
    %c0_2 = arith.constant 0 : index
    %c0_3 = arith.constant 0 : index
    %4 = vector.load %arg5[%c0_2, %c0_3] : memref<128x64xbf16, #tpu.memory_space<vmem>>, vector<128x64xbf16>
    %cst = arith.constant dense<0.000000e+00> : vector<128x64xf32>
    %5 = tpu.matmul %3, %4, %cst {dimension_numbers = #tpu.dot_dimension_numbers<[1], [0], [0], [1], [0, 0, 1, 1], [], []>} : vector<128x128xbf16>, vector<128x64xbf16>, vector<128x64xf32> -> vector<128x64xf32>
    %c0_4 = arith.constant 0 : index
    %c0_5 = arith.constant 0 : index
    %6 = vector.load %arg6[%c0_4, %c0_5] : memref<1x64xf32, #tpu.memory_space<vmem>>, vector<1x64xf32>
    %7 = vector.broadcast %6 : vector<1x64xf32> to vector<128x64xf32>
    %8 = arith.addf %5, %7 : vector<128x64xf32>
    %cst_6 = arith.constant 0.000000e+00 : f32
    %9 = vector.broadcast %cst_6 : f32 to vector<128x64xf32>
    %10 = arith.maximumf %8, %9 : vector<128x64xf32>
    %11 = arith.truncf %10 : vector<128x64xf32> to vector<128x64xbf16>
    %c0_7 = arith.constant 0 : index
    %c0_8 = arith.constant 0 : index
    %12 = vector.load %arg7[%c0_7, %c0_8] : memref<64x64xbf16, #tpu.memory_space<vmem>>, vector<64x64xbf16>
    %cst_9 = arith.constant dense<0.000000e+00> : vector<128x64xf32>
    %13 = tpu.matmul %11, %12, %cst_9 {dimension_numbers = #tpu.dot_dimension_numbers<[1], [0], [0], [1], [0, 0, 1, 1], [], []>} : vector<128x64xbf16>, vector<64x64xbf16>, vector<128x64xf32> -> vector<128x64xf32>
    %c0_10 = arith.constant 0 : index
    %c0_11 = arith.constant 0 : index
    %14 = vector.load %arg8[%c0_10, %c0_11] : memref<1x64xf32, #tpu.memory_space<vmem>>, vector<1x64xf32>
    %15 = vector.broadcast %14 : vector<1x64xf32> to vector<128x64xf32>
    %16 = arith.addf %13, %15 : vector<128x64xf32>
    %cst_12 = arith.constant 0.000000e+00 : f32
    %17 = vector.broadcast %cst_12 : f32 to vector<128x64xf32>
    %18 = arith.maximumf %16, %17 : vector<128x64xf32>
    %c0_13 = arith.constant 0 : index
    %c0_14 = arith.constant 0 : index
    %c0_15 = arith.constant 0 : index
    %19 = vector.load %arg3[%c0_13, %c0_14, %c0_15] : memref<1x8x64xbf16, #tpu.memory_space<vmem>>, vector<1x8x64xbf16>
    %20 = vector.shape_cast %19 : vector<1x8x64xbf16> to vector<8x64xbf16>
    %c0_16 = arith.constant 0 : index
    %c0_17 = arith.constant 0 : index
    %c0_18 = arith.constant 0 : index
    %21 = vector.load %arg4[%c0_16, %c0_17, %c0_18] : memref<1x8x64xbf16, #tpu.memory_space<vmem>>, vector<1x8x64xbf16>
    %22 = vector.shape_cast %21 : vector<1x8x64xbf16> to vector<8x64xbf16>
    %23 = arith.truncf %18 : vector<128x64xf32> to vector<128x64xbf16>
    %cst_19 = arith.constant dense<0.000000e+00> : vector<128x8xf32>
    %24 = tpu.matmul %23, %20, %cst_19 {dimension_numbers = #tpu.dot_dimension_numbers<[1], [1], [0], [0], [0, 0, 1, 0], [], []>} : vector<128x64xbf16>, vector<8x64xbf16>, vector<128x8xf32> -> vector<128x8xf32>
    %cst_20 = arith.constant dense<0xFF800000> : vector<128xf32>
    %25 = vector.multi_reduction <maximumf>, %24, %cst_20 [1] : vector<128x8xf32> to vector<128xf32>
    %26 = vector.shape_cast %25 : vector<128xf32> to vector<128x1xf32>
    %27 = vector.broadcast %26 : vector<128x1xf32> to vector<128x8xf32>
    %28 = arith.subf %24, %27 : vector<128x8xf32>
    %29 = math.exp %28 : vector<128x8xf32>
    %cst_21 = arith.constant dense<0.000000e+00> : vector<128xf32>
    %30 = vector.multi_reduction <add>, %29, %cst_21 [1] : vector<128x8xf32> to vector<128xf32>
    %31 = vector.shape_cast %30 : vector<128xf32> to vector<128x1xf32>
    %32 = tpu.reciprocal %31 {approx = true} : vector<128x1xf32> -> vector<128x1xf32>
    %33 = vector.broadcast %32 : vector<128x1xf32> to vector<128x8xf32>
    %34 = arith.mulf %29, %33 : vector<128x8xf32>
    %35 = arith.truncf %34 : vector<128x8xf32> to vector<128x8xbf16>
    %cst_22 = arith.constant dense<0.000000e+00> : vector<128x64xf32>
    %36 = tpu.matmul %35, %22, %cst_22 {dimension_numbers = #tpu.dot_dimension_numbers<[1], [0], [0], [1], [0, 0, 1, 1], [], []>} : vector<128x8xbf16>, vector<8x64xbf16>, vector<128x64xf32> -> vector<128x64xf32>
    %37 = arith.truncf %36 : vector<128x64xf32> to vector<128x64xbf16>
    %c0_23 = arith.constant 0 : index
    %c0_24 = arith.constant 0 : index
    %38 = vector.load %arg9[%c0_23, %c0_24] : memref<64x128xbf16, #tpu.memory_space<vmem>>, vector<64x128xbf16>
    %cst_25 = arith.constant dense<0.000000e+00> : vector<128x128xf32>
    %39 = tpu.matmul %37, %38, %cst_25 {dimension_numbers = #tpu.dot_dimension_numbers<[1], [0], [0], [1], [0, 0, 1, 1], [], []>} : vector<128x64xbf16>, vector<64x128xbf16>, vector<128x128xf32> -> vector<128x128xf32>
    %c0_26 = arith.constant 0 : index
    %c0_27 = arith.constant 0 : index
    %40 = vector.load %arg10[%c0_26, %c0_27] : memref<1x128xf32, #tpu.memory_space<vmem>>, vector<1x128xf32>
    %41 = vector.broadcast %40 : vector<1x128xf32> to vector<128x128xf32>
    %42 = arith.addf %39, %41 : vector<128x128xf32>
    %cst_28 = arith.constant 0.000000e+00 : f32
    %43 = vector.broadcast %cst_28 : f32 to vector<128x128xf32>
    %44 = arith.maximumf %42, %43 : vector<128x128xf32>
    %45 = tpu.transpose %44, [1, 0] : vector<128x128xf32> -> vector<128x128xf32>
    %c0_29 = arith.constant 0 : index
    %c0_30 = arith.constant 0 : index
    %c0_31 = arith.constant 0 : index
    %46 = vector.load %arg11[%c0_29, %c0_30, %c0_31] : memref<1x128x128xf32, #tpu.memory_space<vmem>>, vector<1x128x128xf32>
    %47 = vector.shape_cast %46 : vector<1x128x128xf32> to vector<128x128xf32>
    %48 = vector.shape_cast %45 : vector<128x128xf32> to vector<1x128x128xf32>
    tpu.vector_store %arg11[%c0_29, %c0_30, %c0_31], %48 {strides = array<i32>} : memref<1x128x128xf32, #tpu.memory_space<vmem>>, vector<1x128x128xf32>,
    return
  }
  func.func @transform_0(%arg0: i32, %arg1: i32) -> (i32, i32, i32) {
    %c0_i32 = arith.constant 0 : i32
    %c0_i32_0 = arith.constant 0 : i32
    return %arg0, %c0_i32, %arg1 : i32, i32, i32
  }
  func.func @transform_1(%arg0: i32, %arg1: i32) -> (i32, i32, i32) {
    %c0_i32 = arith.constant 0 : i32
    %c0_i32_0 = arith.constant 0 : i32
    %c0_i32_1 = arith.constant 0 : i32
    return %arg0, %c0_i32, %c0_i32_0 : i32, i32, i32
  }
  func.func @transform_2(%arg0: i32, %arg1: i32) -> (i32, i32, i32) {
    %c0_i32 = arith.constant 0 : i32
    %c0_i32_0 = arith.constant 0 : i32
    %c0_i32_1 = arith.constant 0 : i32
    return %arg0, %c0_i32, %c0_i32_0 : i32, i32, i32
  }
  func.func @transform_3(%arg0: i32, %arg1: i32) -> (i32, i32) {
    %c0_i32 = arith.constant 0 : i32
    %c0_i32_0 = arith.constant 0 : i32
    %c0_i32_1 = arith.constant 0 : i32
    return %c0_i32, %c0_i32_0 : i32, i32
  }
  func.func @transform_4(%arg0: i32, %arg1: i32) -> (i32, i32) {
    %c0_i32 = arith.constant 0 : i32
    %c0_i32_0 = arith.constant 0 : i32
    %c0_i32_1 = arith.constant 0 : i32
    return %c0_i32, %c0_i32_0 : i32, i32
  }
  func.func @transform_5(%arg0: i32, %arg1: i32) -> (i32, i32) {
    %c0_i32 = arith.constant 0 : i32
    %c0_i32_0 = arith.constant 0 : i32
    %c0_i32_1 = arith.constant 0 : i32
    return %c0_i32, %c0_i32_0 : i32, i32
  }
  func.func @transform_6(%arg0: i32, %arg1: i32) -> (i32, i32) {
    %c0_i32 = arith.constant 0 : i32
    %c0_i32_0 = arith.constant 0 : i32
    %c0_i32_1 = arith.constant 0 : i32
    return %c0_i32, %c0_i32_0 : i32, i32
  }
  func.func @transform_7(%arg0: i32, %arg1: i32) -> (i32, i32) {
    %c0_i32 = arith.constant 0 : i32
    %c0_i32_0 = arith.constant 0 : i32
    %c0_i32_1 = arith.constant 0 : i32
    return %c0_i32, %c0_i32_0 : i32, i32
  }
  func.func @transform_8(%arg0: i32, %arg1: i32) -> (i32, i32) {
    %c0_i32 = arith.constant 0 : i32
    %c0_i32_0 = arith.constant 0 : i32
    %c0_i32_1 = arith.constant 0 : i32
    return %c0_i32, %c0_i32_0 : i32, i32
  }
  func.func @transform_9(%arg0: i32, %arg1: i32) -> (i32, i32, i32) {
    %c0_i32 = arith.constant 0 : i32
    %c0_i32_0 = arith.constant 0 : i32
    return %arg0, %c0_i32, %arg1 : i32, i32, i32
  }
}

</mosaic_0001>

<llo_original>
// kernel: tpu_custom_call.1
$region0: #{tpu_custom_call.1}
  #allocation0 [shape = 'u32[]', space=smem, size = 0x4, offset = 0x4, fixed_abs, tag = 'smem constant byte address 0x4 - core index']
  #allocation1 [shape = 'u32[144,128]{1,0:T(1,128)}', space=vmem, size = 0x12000, scoped, tag = 'internal scratch']
  %s0 = inlined_call_operand.hbm [shape: f32[2,128,256], index: 0, kind: input, shape index: {}]
  %s1 = inlined_call_operand.vmem [shape: bf16[2,8,64], index: 1, kind: input, shape index: {}]
  %s2 = inlined_call_operand.vmem [shape: bf16[2,8,64], index: 2, kind: input, shape index: {}]
  %s3 = inlined_call_operand.vmem [shape: bf16[128,64], index: 3, kind: input, shape index: {}]
  %s4 = inlined_call_operand.vmem [shape: f32[1,64], index: 4, kind: input, shape index: {}]
  %s5 = inlined_call_operand.vmem [shape: bf16[64,64], index: 5, kind: input, shape index: {}]
  %s6 = inlined_call_operand.vmem [shape: f32[1,64], index: 6, kind: input, shape index: {}]
  %s7 = inlined_call_operand.vmem [shape: bf16[64,128], index: 7, kind: input, shape index: {}]
  %s8 = inlined_call_operand.vmem [shape: f32[1,128], index: 8, kind: input, shape index: {}]
  %s9 = inlined_call_operand.hbm [shape: f32[2,128,256], index: 9, kind: output, shape index: {}]
  %s10 = sld [smem:[#allocation0]]
  $region73: #{tpu_custom_call.1} parent=0
    _
  %s12 = ssub.s32 1, %s10
  %s13 = scalar_select 0, %s12, %s10
  $region1: #{tpu_custom_call.1} parent=0
    #allocation2 [shape = 'u8[131072]{0}', space=vmem, size = 0x20000, scoped, tag = 'input window, operand 0']
    #allocation3 [shape = 's32[2]{0}', space=sflag, size = 0x8, scoped, tag = 'scoped memory for tpu_custom_call.1']
    #allocation4 [shape = 's32[2]{0}', space=sflag, size = 0x8, scoped, tag = 'scoped memory for tpu_custom_call.1']
    #allocation5 [shape = 'u8[131072]{0}', space=vmem, size = 0x20000, scoped, tag = 'output window, operand 0']
    %14 = vsyncpa [#allocation3], 0
    %s15 = scalar_lea.sflag [#allocation3], 1
    %16 = vsyncpa %s15, 0
    %17 = vsyncpa [#allocation4], 0
    %s18 = scalar_lea.sflag [#allocation4], 1
    %19 = vsyncpa %s18, 0
    loop: start=0, step=1, limit=6
    $region2: #{tpu_custom_call.1} parent=1 // loop_pre_header
      _
    $region3: #{tpu_custom_call.1} parent=1 // loop_header
      %s21 = sphi 0, %s25
      %p22 = scmp.ge.s32.totalorder %s21, 6
      %s28 = sphi 0, %s40
      %s29 = sphi 0, %s36
      %s30 = sphi 0, %s28
      %s31 = sphi 0, %s29
      %s32 = sphi 0, %s30
      %s33 = sphi 0, %s31
      %s45 = sphi 0, %s47
      %s48 = sphi 0, %s45
      %s49 = sphi 0, %s48
      %s65 = sphi 0, %s49
      %s71 = sphi 0, %s73
      %s74 = sphi 0, %s71
      %s75 = sphi 0, %s74
      %s91 = sphi 0, %s75
      %s97 = sphi 0, %s99
      %s100 = sphi 0, %s97
      %s101 = sphi 0, %s100
      %s117 = sphi 0, %s101
      %s121 = sphi 0, %s121
      %s123 = sphi 0, %s121
      %s124 = sphi 0, %s123
      %s138 = sphi 0, %s124
      %s142 = sphi 0, %s142
      %s144 = sphi 0, %s142
      %s145 = sphi 0, %s144
      %s159 = sphi 0, %s145
      %s163 = sphi 0, %s163
      %s165 = sphi 0, %s163
      %s166 = sphi 0, %s165
      %s180 = sphi 0, %s166
      %s184 = sphi 0, %s184
      %s186 = sphi 0, %s184
      %s187 = sphi 0, %s186
      %s201 = sphi 0, %s187
      %s205 = sphi 0, %s205
      %s207 = sphi 0, %s205
      %s208 = sphi 0, %s207
      %s222 = sphi 0, %s208
      %s226 = sphi 0, %s226
      %s228 = sphi 0, %s226
      %s229 = sphi 0, %s228
      %s243 = sphi 0, %s229
      %s251 = sphi 0, %s253
      %s254 = sphi 0, %s251
      %s255 = sphi 0, %s254
      %s271 = sphi 0, %s255
    $region4: #{tpu_custom_call.1} parent=1 // loop_header_branch
      %24 = sbr.rel (%p22) target = $region8
    $region5: #{tpu_custom_call.1} parent=1 // loop_body
      %s26 = ssub.s32 %s21, 1
      %s27 = ssub.s32 %s21, 2
      %s34 = sadd.s32 1, %s29
      %p35 = scmp.ge.s32.totalorder %s34, 2
      %s36 = scalar_select %p35, 0, %s34
      %s37 = sadd.s32 1, %s28
      %s38 = scalar_select %p35, %s37, %s28
      %p39 = scmp.ge.s32.totalorder %s38, 2
      %s40 = scalar_select %p39, 0, %s38
      %s41 = ssub.s32 %s28, %s40
      %s42 = ssub.s32 %s29, %s36
      %s43 = sor.u32 %s41, %s42
      %p44 = scmp.eq.s32.totalorder %s43, 0
      %s46 = sadd.s32 %s45, 1
      %s47 = scalar_select %p44, %s45, %s46
      %p50 = pneg %p44
      %p51 = scmp.eq.s32.totalorder %s21, 3
      %p52 = por %p50, %p51
      %p53 = scmp.ne.s32.totalorder %s45, %s48
      %p54 = scmp.eq.s32.totalorder %s21, 0
      %p55 = por %p53, %p54
      %p56 = scmp.ne.s32.totalorder %s45, %s48
      %p57 = scmp.eq.s32.totalorder %s26, 3
      %p58 = por %p56, %p57
      %p59 = scmp.ne.s32.totalorder %s48, %s49
      %p60 = scmp.eq.s32.totalorder %s26, 0
      %p61 = por %p59, %p60
      %p62 = scmp.ne.s32.totalorder %s48, %s49
      %p63 = scmp.eq.s32.totalorder %s27, 3
      %p64 = por %p62, %p63
      %p66 = scmp.ne.s32.totalorder %s49, %s65
      %p67 = scmp.eq.s32.totalorder %s27, 0
      %p68 = por %p66, %p67
      %s69 = ssub.s32 %s28, %s40
      %p70 = scmp.eq.s32.totalorder %s69, 0
      %s72 = sadd.s32 %s71, 1
      %s73 = scalar_select %p70, %s71, %s72
      %p76 = pneg %p70
      %p77 = scmp.eq.s32.totalorder %s21, 3
      %p78 = por %p76, %p77
      %p79 = scmp.ne.s32.totalorder %s71, %s74
      %p80 = scmp.eq.s32.totalorder %s21, 0
      %p81 = por %p79, %p80
      %p82 = scmp.ne.s32.totalorder %s71, %s74
      %p83 = scmp.eq.s32.totalorder %s26, 3
      %p84 = por %p82, %p83
      %p85 = scmp.ne.s32.totalorder %s74, %s75
      %p86 = scmp.eq.s32.totalorder %s26, 0
      %p87 = por %p85, %p86
      %p88 = scmp.ne.s32.totalorder %s74, %s75
      %p89 = scmp.eq.s32.totalorder %s27, 3
      %p90 = por %p88, %p89
      %p92 = scmp.ne.s32.totalorder %s75, %s91
      %p93 = scmp.eq.s32.totalorder %s27, 0
      %p94 = por %p92, %p93
      %s95 = ssub.s32 %s28, %s40
      %p96 = scmp.eq.s32.totalorder %s95, 0
      %s98 = sadd.s32 %s97, 1
      %s99 = scalar_select %p96, %s97, %s98
      %p102 = pneg %p96
      %p103 = scmp.eq.s32.totalorder %s21, 3
      %p104 = por %p102, %p103
      %p105 = scmp.ne.s32.totalorder %s97, %s100
      %p106 = scmp.eq.s32.totalorder %s21, 0
      %p107 = por %p105, %p106
      %p108 = scmp.ne.s32.totalorder %s97, %s100
      %p109 = scmp.eq.s32.totalorder %s26, 3
      %p110 = por %p108, %p109
      %p111 = scmp.ne.s32.totalorder %s100, %s101
      %p112 = scmp.eq.s32.totalorder %s26, 0
      %p113 = por %p111, %p112
      %p114 = scmp.ne.s32.totalorder %s100, %s101
      %p115 = scmp.eq.s32.totalorder %s27, 3
      %p116 = por %p114, %p115
      %p118 = scmp.ne.s32.totalorder %s101, %s117
      %p119 = scmp.eq.s32.totalorder %s27, 0
      %p120 = por %p118, %p119
      %s122 = sadd.s32 %s121, 1
      %p125 = scmp.eq.s32.totalorder %s21, 3
      %p126 = scmp.ne.s32.totalorder %s121, %s123
      %p127 = scmp.eq.s32.totalorder %s21, 0
      %p128 = por %p126, %p127
      %p129 = scmp.ne.s32.totalorder %s121, %s123
      %p130 = scmp.eq.s32.totalorder %s26, 3
      %p131 = por %p129, %p130
      %p132 = scmp.ne.s32.totalorder %s123, %s124
      %p133 = scmp.eq.s32.totalorder %s26, 0
      %p134 = por %p132, %p133
      %p135 = scmp.ne.s32.totalorder %s123, %s124
      %p136 = scmp.eq.s32.totalorder %s27, 3
      %p137 = por %p135, %p136
      %p139 = scmp.ne.s32.totalorder %s124, %s138
      %p140 = scmp.eq.s32.totalorder %s27, 0
      %p141 = por %p139, %p140
      %s143 = sadd.s32 %s142, 1
      %p146 = scmp.eq.s32.totalorder %s21, 3
      %p147 = scmp.ne.s32.totalorder %s142, %s144
      %p148 = scmp.eq.s32.totalorder %s21, 0
      %p149 = por %p147, %p148
      %p150 = scmp.ne.s32.totalorder %s142, %s144
      %p151 = scmp.eq.s32.totalorder %s26, 3
      %p152 = por %p150, %p151
      %p153 = scmp.ne.s32.totalorder %s144, %s145
      %p154 = scmp.eq.s32.totalorder %s26, 0
      %p155 = por %p153, %p154
      %p156 = scmp.ne.s32.totalorder %s144, %s145
      %p157 = scmp.eq.s32.totalorder %s27, 3
      %p158 = por %p156, %p157
      %p160 = scmp.ne.s32.totalorder %s145, %s159
      %p161 = scmp.eq.s32.totalorder %s27, 0
      %p162 = por %p160, %p161
      %s164 = sadd.s32 %s163, 1
      %p167 = scmp.eq.s32.totalorder %s21, 3
      %p168 = scmp.ne.s32.totalorder %s163, %s165
      %p169 = scmp.eq.s32.totalorder %s21, 0
      %p170 = por %p168, %p169
      %p171 = scmp.ne.s32.totalorder %s163, %s165
      %p172 = scmp.eq.s32.totalorder %s26, 3
      %p173 = por %p171, %p172
      %p174 = scmp.ne.s32.totalorder %s165, %s166
      %p175 = scmp.eq.s32.totalorder %s26, 0
      %p176 = por %p174, %p175
      %p177 = scmp.ne.s32.totalorder %s165, %s166
      %p178 = scmp.eq.s32.totalorder %s27, 3
      %p179 = por %p177, %p178
      %p181 = scmp.ne.s32.totalorder %s166, %s180
      %p182 = scmp.eq.s32.totalorder %s27, 0
      %p183 = por %p181, %p182
      %s185 = sadd.s32 %s184, 1
      %p188 = scmp.eq.s32.totalorder %s21, 3
      %p189 = scmp.ne.s32.totalorder %s184, %s186
      %p190 = scmp.eq.s32.totalorder %s21, 0
      %p191 = por %p189, %p190
      %p192 = scmp.ne.s32.totalorder %s184, %s186
      %p193 = scmp.eq.s32.totalorder %s26, 3
      %p194 = por %p192, %p193
      %p195 = scmp.ne.s32.totalorder %s186, %s187
      %p196 = scmp.eq.s32.totalorder %s26, 0
      %p197 = por %p195, %p196
      %p198 = scmp.ne.s32.totalorder %s186, %s187
      %p199 = scmp.eq.s32.totalorder %s27, 3
      %p200 = por %p198, %p199
      %p202 = scmp.ne.s32.totalorder %s187, %s201
      %p203 = scmp.eq.s32.totalorder %s27, 0
      %p204 = por %p202, %p203
      %s206 = sadd.s32 %s205, 1
      %p209 = scmp.eq.s32.totalorder %s21, 3
      %p210 = scmp.ne.s32.totalorder %s205, %s207
      %p211 = scmp.eq.s32.totalorder %s21, 0
      %p212 = por %p210, %p211
      %p213 = scmp.ne.s32.totalorder %s205, %s207
      %p214 = scmp.eq.s32.totalorder %s26, 3
      %p215 = por %p213, %p214
      %p216 = scmp.ne.s32.totalorder %s207, %s208
      %p217 = scmp.eq.s32.totalorder %s26, 0
      %p218 = por %p216, %p217
      %p219 = scmp.ne.s32.totalorder %s207, %s208
      %p220 = scmp.eq.s32.totalorder %s27, 3
      %p221 = por %p219, %p220
      %p223 = scmp.ne.s32.totalorder %s208, %s222
      %p224 = scmp.eq.s32.totalorder %s27, 0
      %p225 = por %p223, %p224
      %s227 = sadd.s32 %s226, 1
      %p230 = scmp.eq.s32.totalorder %s21, 3
      %p231 = scmp.ne.s32.totalorder %s226, %s228
      %p232 = scmp.eq.s32.totalorder %s21, 0
      %p233 = por %p231, %p232
      %p234 = scmp.ne.s32.totalorder %s226, %s228
      %p235 = scmp.eq.s32.totalorder %s26, 3
      %p236 = por %p234, %p235
      %p237 = scmp.ne.s32.totalorder %s228, %s229
      %p238 = scmp.eq.s32.totalorder %s26, 0
      %p239 = por %p237, %p238
      %p240 = scmp.ne.s32.totalorder %s228, %s229
      %p241 = scmp.eq.s32.totalorder %s27, 3
      %p242 = por %p240, %p241
      %p244 = scmp.ne.s32.totalorder %s229, %s243
      %p245 = scmp.eq.s32.totalorder %s27, 0
      %p246 = por %p244, %p245
      %s247 = ssub.s32 %s28, %s40
      %s248 = ssub.s32 %s29, %s36
      %s249 = sor.u32 %s247, %s248
      %p250 = scmp.eq.s32.totalorder %s249, 0
      %s252 = sadd.s32 %s251, 1
      %s253 = scalar_select %p250, %s251, %s252
      %p256 = pneg %p250
      %p257 = scmp.eq.s32.totalorder %s21, 3
      %p258 = por %p256, %p257
      %p259 = scmp.ne.s32.totalorder %s251, %s254
      %p260 = scmp.eq.s32.totalorder %s21, 0
      %p261 = por %p259, %p260
      %p262 = scmp.ne.s32.totalorder %s251, %s254
      %p263 = scmp.eq.s32.totalorder %s26, 3
      %p264 = por %p262, %p263
      %p265 = scmp.ne.s32.totalorder %s254, %s255
      %p266 = scmp.eq.s32.totalorder %s26, 0
      %p267 = por %p265, %p266
      %p268 = scmp.ne.s32.totalorder %s254, %s255
      %p269 = scmp.eq.s32.totalorder %s27, 3
      %p270 = por %p268, %p269
      %p272 = scmp.ne.s32.totalorder %s255, %s271
      %p273 = scmp.eq.s32.totalorder %s27, 0
      %p274 = por %p272, %p273
      %p275 = scmp.le.s32.totalorder 1, %s21
      %p276 = scmp.lt.s32.totalorder %s21, 5
      %p277 = pnand %p275, %p276
      %p278 = pneg %p277
      // Predicated region
      $region9: #{tpu_custom_call.1} parent=5 // pred_check
        _
      $region10: #{tpu_custom_call.1} parent=5 // pred_check_branch
        %280 = sbr.rel (%p277) target = $region12
      $region11: #{tpu_custom_call.1} parent=5 // pred_region
        %s281 = ssub.s32 %s21, 1
        // Predicated region
        $region13: #{tpu_custom_call.1} parent=11 // pred_check
          %p282 = pneg %p134
        $region14: #{tpu_custom_call.1} parent=11 // pred_check_branch
          %284 = sbr.rel (%p282) target = $region16
        $region15: #{tpu_custom_call.1} parent=11 // pred_region
          _
        $region16: #{tpu_custom_call.1} parent=11 // pred_fallthru
          _
        // Predicated region
        $region17: #{tpu_custom_call.1} parent=11 // pred_check
          %p285 = pneg %p155
        $region18: #{tpu_custom_call.1} parent=11 // pred_check_branch
          %287 = sbr.rel (%p285) target = $region20
        $region19: #{tpu_custom_call.1} parent=11 // pred_region
          _
        $region20: #{tpu_custom_call.1} parent=11 // pred_fallthru
          _
        // Predicated region
        $region21: #{tpu_custom_call.1} parent=11 // pred_check
          %p288 = pneg %p176
        $region22: #{tpu_custom_call.1} parent=11 // pred_check_branch
          %290 = sbr.rel (%p288) target = $region24
        $region23: #{tpu_custom_call.1} parent=11 // pred_region
          _
        $region24: #{tpu_custom_call.1} parent=11 // pred_fallthru
          _
        // Predicated region
        $region25: #{tpu_custom_call.1} parent=11 // pred_check
          %p291 = pneg %p197
        $region26: #{tpu_custom_call.1} parent=11 // pred_check_branch
          %293 = sbr.rel (%p291) target = $region28
        $region27: #{tpu_custom_call.1} parent=11 // pred_region
          _
        $region28: #{tpu_custom_call.1} parent=11 // pred_fallthru
          _
        // Predicated region
        $region29: #{tpu_custom_call.1} parent=11 // pred_check
          %p294 = pneg %p218
        $region30: #{tpu_custom_call.1} parent=11 // pred_check_branch
          %296 = sbr.rel (%p294) target = $region32
        $region31: #{tpu_custom_call.1} parent=11 // pred_region
          _
        $region32: #{tpu_custom_call.1} parent=11 // pred_fallthru
          _
        // Predicated region
        $region33: #{tpu_custom_call.1} parent=11 // pred_check
          %p297 = pneg %p239
        $region34: #{tpu_custom_call.1} parent=11 // pred_check_branch
          %299 = sbr.rel (%p297) target = $region36
        $region35: #{tpu_custom_call.1} parent=11 // pred_region
          _
        $region36: #{tpu_custom_call.1} parent=11 // pred_fallthru
          _
      $region12: #{tpu_custom_call.1} parent=5 // pred_fallthru
        _
      %p300 = scmp.lt.s32.totalorder %s21, 4
      // Predicated region
      $region37: #{tpu_custom_call.1} parent=5 // pred_check
        %p301 = pneg %p300
      $region38: #{tpu_custom_call.1} parent=5 // pred_check_branch
        %303 = sbr.rel (%p301) target = $region40
      $region39: #{tpu_custom_call.1} parent=5 // pred_region
        // Predicated region
        $region41: #{tpu_custom_call.1} parent=39 // pred_check
          %p304 = pneg %p55
        $region42: #{tpu_custom_call.1} parent=39 // pred_check_branch
          %306 = sbr.rel (%p304) target = $region44
        $region43: #{tpu_custom_call.1} parent=39 // pred_region
          %s307 = sand.u32 %s45, 1
          %s308 = scalar_lea.sflag [#allocation3], %s307
          %s309 = sand.u32 %s45, 1
          %s310 = smul.addr %s309, 128
          %s311 = scalar_lea.vmem [#allocation2], %s310
          %s313 = ssub.s32 2048, 2048
          %314 = vsyncadd %s308, %s313
          %s315 = smul.addr %s28, 32
          %s316 = sadd.s32 %s29, %s315
          %s317 = smul.addr %s316, 128
          %s318 = scalar_lea.hbm %s0, %s317
          %s319 = sshll.u32 %s311, 4
          %s320 = int_to_ptr.vmem [resolvable:$true] %s319
          %325 = dma.hbm_to_vmem [thread:$0]  %s318, 2048, %s320, %s308, 256, 128, 8
        $region44: #{tpu_custom_call.1} parent=39 // pred_fallthru
          _
        // Predicated region
        $region45: #{tpu_custom_call.1} parent=39 // pred_check
          %p326 = pneg %p81
        $region46: #{tpu_custom_call.1} parent=39 // pred_check_branch
          %328 = sbr.rel (%p326) target = $region48
        $region47: #{tpu_custom_call.1} parent=39 // pred_region
          %p329 = scmp.lt.s32.totalorder %s28, 1
          %s330 = scalar_select %p329, %s28, 1
          %s331 = smul.addr %s330, 4
          %s332 = scalar_lea.vmem %s1, %s331
        $region48: #{tpu_custom_call.1} parent=39 // pred_fallthru
          _
        // Predicated region
        $region49: #{tpu_custom_call.1} parent=39 // pred_check
          %p333 = pneg %p107
        $region50: #{tpu_custom_call.1} parent=39 // pred_check_branch
          %335 = sbr.rel (%p333) target = $region52
        $region51: #{tpu_custom_call.1} parent=39 // pred_region
          %p336 = scmp.lt.s32.totalorder %s28, 1
          %s337 = scalar_select %p336, %s28, 1
          %s338 = smul.addr %s337, 4
          %s339 = scalar_lea.vmem %s2, %s338
        $region52: #{tpu_custom_call.1} parent=39 // pred_fallthru
          _
      $region40: #{tpu_custom_call.1} parent=5 // pred_fallthru
        _
      %p340 = scmp.le.s32.totalorder 1, %s21
      %p341 = scmp.lt.s32.totalorder %s21, 5
      %p342 = pnand %p340, %p341
      %p343 = pneg %p342
      // Predicated region
      $region53: #{tpu_custom_call.1} parent=5 // pred_check
        _
      $region54: #{tpu_custom_call.1} parent=5 // pred_check_branch
        %345 = sbr.rel (%p342) target = $region56
      $region55: #{tpu_custom_call.1} parent=5 // pred_region
        %s346 = ssub.s32 %s21, 1
        %s347 = sand.u32 %s48, 1
        %s348 = scalar_lea.sflag [#allocation3], %s347
        %s349 = sand.u32 %s48, 1
        %s350 = smul.addr %s349, 128
        %s351 = scalar_lea.vmem [#allocation2], %s350
        // Predicated region
        $region57: #{tpu_custom_call.1} parent=55 // pred_check
          %p352 = pneg %p61
        $region58: #{tpu_custom_call.1} parent=55 // pred_check_branch
          %354 = sbr.rel (%p352) target = $region60
        $region59: #{tpu_custom_call.1} parent=55 // pred_region
          %355 = dma.done %s348, 2048
        $region60: #{tpu_custom_call.1} parent=55 // pred_fallthru
          _
        %s356 = sand.u32 %s48, 1
        %s357 = scalar_lea.sflag [#allocation3], %s356
        %s358 = sand.u32 %s48, 1
        %s359 = smul.addr %s358, 128
        %s360 = scalar_lea.vmem [#allocation2], %s359
        %p361 = pneg %p61
        %p362 = pneg %p58
        %p363 = scmp.lt.s32.totalorder %s30, 1
        %s364 = scalar_select %p363, %s30, 1
        %s365 = smul.addr %s364, 4
        %s366 = scalar_lea.vmem %s1, %s365
        %p367 = pneg %p87
        %p368 = pneg %p84
        %p369 = scmp.lt.s32.totalorder %s30, 1
        %s370 = scalar_select %p369, %s30, 1
        %s371 = smul.addr %s370, 4
        %s372 = scalar_lea.vmem %s2, %s371
        %p373 = pneg %p113
        %p374 = pneg %p110
        %p375 = pneg %p134
        %p376 = pneg %p131
        %p377 = pneg %p155
        %p378 = pneg %p152
        %p379 = pneg %p176
        %p380 = pneg %p173
        %p381 = pneg %p197
        %p382 = pneg %p194
        %p383 = pneg %p218
        %p384 = pneg %p215
        %p385 = pneg %p239
        %p386 = pneg %p236
        %p387 = pneg %p267
        %p388 = pneg %p264
        %s389 = sand.u32 %s254, 1
        %s390 = scalar_lea.sflag [#allocation4], %s389
        %s391 = sand.u32 %s254, 1
        %s392 = smul.addr %s391, 128
        %s393 = scalar_lea.vmem [#allocation5], %s392
        %p394 = scmp.lt.s32.totalorder %s30, 1
        %s395 = scalar_select %p394, %s30, 1
        %s396 = smul.addr %s395, 4
        %s397 = scalar_lea.vmem %s1, %s396
        %p398 = scmp.lt.s32.totalorder %s30, 1
        %s399 = scalar_select %p398, %s30, 1
        %s400 = smul.addr %s399, 4
        %s401 = scalar_lea.vmem %s2, %s400
        %v403 = vld [vmem:[%s351] sm:$0xff]
        %v404 = vld [vmem:[%s351 + $0x8] sm:$0xff]
        %v405 = vld [vmem:[%s351 + $0x10] sm:$0xff]
        %v406 = vld [vmem:[%s351 + $0x18] sm:$0xff]
        %v407 = vld [vmem:[%s351 + $0x20] sm:$0xff]
        %v408 = vld [vmem:[%s351 + $0x28] sm:$0xff]
        %v409 = vld [vmem:[%s351 + $0x30] sm:$0xff]
        %v410 = vld [vmem:[%s351 + $0x38] sm:$0xff]
        %v411 = vld [vmem:[%s351 + $0x40] sm:$0xff]
        %v412 = vld [vmem:[%s351 + $0x48] sm:$0xff]
        %v413 = vld [vmem:[%s351 + $0x50] sm:$0xff]
        %v414 = vld [vmem:[%s351 + $0x58] sm:$0xff]
        %v415 = vld [vmem:[%s351 + $0x60] sm:$0xff]
        %v416 = vld [vmem:[%s351 + $0x68] sm:$0xff]
        %v417 = vld [vmem:[%s351 + $0x70] sm:$0xff]
        %v418 = vld [vmem:[%s351 + $0x78] sm:$0xff]
        %419 = vxpose.xlu0.b32.start [1/16] %v403, 128
        %420 = vxpose.xlu0.b32.cont [2/16] %v404, 128
        %421 = vxpose.xlu0.b32.cont [3/16] %v405, 128
        %422 = vxpose.xlu0.b32.cont [4/16] %v406, 128
        %423 = vxpose.xlu0.b32.cont [5/16] %v407, 128
        %424 = vxpose.xlu0.b32.cont [6/16] %v408, 128
        %425 = vxpose.xlu0.b32.cont [7/16] %v409, 128
        %426 = vxpose.xlu0.b32.cont [8/16] %v410, 128
        %427 = vxpose.xlu0.b32.cont [9/16] %v411, 128
        %428 = vxpose.xlu0.b32.cont [10/16] %v412, 128
        %429 = vxpose.xlu0.b32.cont [11/16] %v413, 128
        %430 = vxpose.xlu0.b32.cont [12/16] %v414, 128
        %431 = vxpose.xlu0.b32.cont [13/16] %v415, 128
        %432 = vxpose.xlu0.b32.cont [14/16] %v416, 128
        %433 = vxpose.xlu0.b32.cont [15/16] %v417, 128
        %434 = vxpose.xlu0.b32.end [16/16] %v418, 128
        %v435 = vpop.trf.xlu0
        %v436 = vpop.trf.xlu0
        %v437 = vpop.trf.xlu0
        %v438 = vpop.trf.xlu0
        %v439 = vpop.trf.xlu0
        %v440 = vpop.trf.xlu0
        %v441 = vpop.trf.xlu0
        %v442 = vpop.trf.xlu0
        %v443 = vpop.trf.xlu0
        %v444 = vpop.trf.xlu0
        %v445 = vpop.trf.xlu0
        %v446 = vpop.trf.xlu0
        %v447 = vpop.trf.xlu0
        %v448 = vpop.trf.xlu0
        %v449 = vpop.trf.xlu0
        %v450 = vpop.trf.xlu0
        %v451 = vpack.c.bf16 %v436, %v435
        %v452 = vpack.c.bf16 %v438, %v437
        %v453 = vpack.c.bf16 %v440, %v439
        %v454 = vpack.c.bf16 %v442, %v441
        %v455 = vpack.c.bf16 %v444, %v443
        %v456 = vpack.c.bf16 %v446, %v445
        %v457 = vpack.c.bf16 %v448, %v447
        %v458 = vpack.c.bf16 %v450, %v449
        %v459 = vld [vmem:[%s3] sm:$0xf]
        %v460 = vld [vmem:[%s3 + $0x4] sm:$0xf]
        %v461 = vld [vmem:[%s3 + $0x8] sm:$0xf]
        %v462 = vld [vmem:[%s3 + $0xc] sm:$0xf]
        %v463 = vld [vmem:[%s3 + $0x10] sm:$0xf]
        %v464 = vld [vmem:[%s3 + $0x14] sm:$0xf]
        %v465 = vld [vmem:[%s3 + $0x18] sm:$0xf]
        %v466 = vld [vmem:[%s3 + $0x1c] sm:$0xf]
        %v467 = vld [vmem:[%s3 + $0x20] sm:$0xf]
        %v468 = vld [vmem:[%s3 + $0x24] sm:$0xf]
        %v469 = vld [vmem:[%s3 + $0x28] sm:$0xf]
        %v470 = vld [vmem:[%s3 + $0x2c] sm:$0xf]
        %v471 = vld [vmem:[%s3 + $0x30] sm:$0xf]
        %v472 = vld [vmem:[%s3 + $0x34] sm:$0xf]
        %v473 = vld [vmem:[%s3 + $0x38] sm:$0xf]
        %v474 = vld [vmem:[%s3 + $0x3c] sm:$0xf]
        %v475 = vld [vmem:[%s4] sm:$0x1]
        %v477 = vlaneseq
        %v478 = vshrl.u32 %v477, 7
        %v479 = vsub.s32 0, %v478
        %v480 = vrot.slane %v475, %v479
        %v498 = vunpack.c.l.b16 %v459
        %v499 = vunpack.c.l.b16 %v460
        %v500 = vunpack.c.l.b16 %v461
        %v501 = vunpack.c.l.b16 %v462
        %v502 = vunpack.c.l.b16 %v463
        %v503 = vunpack.c.l.b16 %v464
        %v504 = vunpack.c.l.b16 %v465
        %v505 = vunpack.c.l.b16 %v466
        %v506 = vunpack.c.l.b16 %v467
        %v507 = vunpack.c.l.b16 %v468
        %v508 = vunpack.c.l.b16 %v469
        %v509 = vunpack.c.l.b16 %v470
        %v510 = vunpack.c.l.b16 %v471
        %v511 = vunpack.c.l.b16 %v472
        %v512 = vunpack.c.l.b16 %v473
        %v513 = vunpack.c.l.b16 %v474
        %v514 = vpack.c.b16 %v499, %v498
        %v515 = vpack.c.b16 %v501, %v500
        %v516 = vpack.c.b16 %v503, %v502
        %v517 = vpack.c.b16 %v505, %v504
        %v518 = vpack.c.b16 %v507, %v506
        %v519 = vpack.c.b16 %v509, %v508
        %v520 = vpack.c.b16 %v511, %v510
        %v521 = vpack.c.b16 %v513, %v512
        %530 = vmatprep.subr.bf16.mxu0 0
        %531 = vmatpush1.bf16.msra.mxu0 %v514
        %532 = vmatprep.subr.bf16.mxu0 0
        %533 = vmatpush1.bf16.msra.mxu0 %v515
        %534 = vmatprep.subr.bf16.mxu0 0
        %535 = vmatpush1.bf16.msra.mxu0 %v516
        %536 = vmatprep.subr.bf16.mxu0 0
        %537 = vmatpush1.bf16.msra.mxu0 %v517
        %538 = vmatprep.subr.bf16.mxu0 0
        %539 = vmatpush1.bf16.msra.mxu0 %v518
        %540 = vmatprep.subr.bf16.mxu0 0
        %541 = vmatpush1.bf16.msra.mxu0 %v519
        %542 = vmatprep.subr.bf16.mxu0 0
        %543 = vmatpush1.bf16.msra.mxu0 %v520
        %544 = vmatprep.subr.bf16.mxu0 0
        %545 = vmatpush1.bf16.msra.mxu0 %v521
        %546 = vmatprep.subr.bf16.mxu0 0
        %547 = vmatpush1.bf16.msra.mxu0 0
        %548 = vmatprep.subr.bf16.mxu0 0
        %549 = vmatpush1.bf16.msra.mxu0 0
        %550 = vmatprep.subr.bf16.mxu0 0
        %551 = vmatpush1.bf16.msra.mxu0 0
        %552 = vmatprep.subr.bf16.mxu0 0
        %553 = vmatpush1.bf16.msra.mxu0 0
        %554 = vmatprep.subr.bf16.mxu0 0
        %555 = vmatpush1.bf16.msra.mxu0 0
        %556 = vmatprep.subr.bf16.mxu0 0
        %557 = vmatpush1.bf16.msra.mxu0 0
        %558 = vmatprep.subr.bf16.mxu0 0
        %559 = vmatpush1.bf16.msra.mxu0 0
        %560 = vmatprep.subr.bf16.mxu0 0
        %561 = vmatpush1.bf16.msra.mxu0 0
        %562 = vmatprep.mubr.bf16.mxu0 0
        %563 = vmatmul.mubr.bf16.gmra.mrb[0].mxu0 %v451
        %v564 = vpop.f32.mrb[0].mxu0
        %v565 = vadd.f32 %v480, %v564
        %v566 = vpop.f32.mrb[0].mxu0
        %v567 = vpop.f32.mrb[0].mxu0
        %v568 = vadd.f32 %v480, %v567
        %v569 = vpop.f32.mrb[0].mxu0
        %570 = vmatprep.mubr.bf16.mxu0 0
        %571 = vmatmul.mubr.bf16.gmra.mrb[0].mxu0 %v452
        %v572 = vpop.f32.mrb[0].mxu0
        %v573 = vadd.f32 %v480, %v572
        %v574 = vpop.f32.mrb[0].mxu0
        %v575 = vpop.f32.mrb[0].mxu0
        %v576 = vadd.f32 %v480, %v575
        %v577 = vpop.f32.mrb[0].mxu0
        %578 = vmatprep.mubr.bf16.mxu0 0
        %579 = vmatmul.mubr.bf16.gmra.mrb[0].mxu0 %v453
        %v580 = vpop.f32.mrb[0].mxu0
        %v581 = vadd.f32 %v480, %v580
        %v582 = vpop.f32.mrb[0].mxu0
        %v583 = vpop.f32.mrb[0].mxu0
        %v584 = vadd.f32 %v480, %v583
        %v585 = vpop.f32.mrb[0].mxu0
        %586 = vmatprep.mubr.bf16.mxu0 0
        %587 = vmatmul.mubr.bf16.gmra.mrb[0].mxu0 %v454
        %v588 = vpop.f32.mrb[0].mxu0
        %v589 = vadd.f32 %v480, %v588
        %v590 = vpop.f32.mrb[0].mxu0
        %v591 = vpop.f32.mrb[0].mxu0
        %v592 = vadd.f32 %v480, %v591
        %v593 = vpop.f32.mrb[0].mxu0
        %594 = vmatprep.mubr.bf16.mxu0 0
        %595 = vmatmul.mubr.bf16.gmra.mrb[0].mxu0 %v455
        %v596 = vpop.f32.mrb[0].mxu0
        %v597 = vadd.f32 %v480, %v596
        %v598 = vpop.f32.mrb[0].mxu0
        %v599 = vpop.f32.mrb[0].mxu0
        %v600 = vadd.f32 %v480, %v599
        %v601 = vpop.f32.mrb[0].mxu0
        %602 = vmatprep.mubr.bf16.mxu0 0
        %603 = vmatmul.mubr.bf16.gmra.mrb[0].mxu0 %v456
        %v604 = vpop.f32.mrb[0].mxu0
        %v605 = vadd.f32 %v480, %v604
        %v606 = vpop.f32.mrb[0].mxu0
        %v607 = vpop.f32.mrb[0].mxu0
        %v608 = vadd.f32 %v480, %v607
        %v609 = vpop.f32.mrb[0].mxu0
        %610 = vmatprep.mubr.bf16.mxu0 0
        %611 = vmatmul.mubr.bf16.gmra.mrb[0].mxu0 %v457
        %v612 = vpop.f32.mrb[0].mxu0
        %v613 = vadd.f32 %v480, %v612
        %v614 = vpop.f32.mrb[0].mxu0
        %v615 = vpop.f32.mrb[0].mxu0
        %v616 = vadd.f32 %v480, %v615
        %v617 = vpop.f32.mrb[0].mxu0
        %618 = vmatprep.mubr.bf16.mxu0 0
        %619 = vmatmul.mubr.bf16.gmra.mrb[0].mxu0 %v458
        %v620 = vpop.f32.mrb[0].mxu0
        %v621 = vadd.f32 %v480, %v620
        %v622 = vpop.f32.mrb[0].mxu0
        %v623 = vpop.f32.mrb[0].mxu0
        %v624 = vadd.f32 %v480, %v623
        %v625 = vpop.f32.mrb[0].mxu0
        %626 = vdwg.mxu0
        %v627 = vmax.f32 %v565, 0.0
        %v628 = vmax.f32 %v568, 0.0
        %v629 = vmax.f32 %v573, 0.0
        %v630 = vmax.f32 %v576, 0.0
        %v631 = vmax.f32 %v581, 0.0
        %v632 = vmax.f32 %v584, 0.0
        %v633 = vmax.f32 %v589, 0.0
        %v634 = vmax.f32 %v592, 0.0
        %v635 = vmax.f32 %v597, 0.0
        %v636 = vmax.f32 %v600, 0.0
        %v637 = vmax.f32 %v605, 0.0
        %v638 = vmax.f32 %v608, 0.0
        %v639 = vmax.f32 %v613, 0.0
        %v640 = vmax.f32 %v616, 0.0
        %v641 = vmax.f32 %v621, 0.0
        %v642 = vmax.f32 %v624, 0.0
        %v643 = vpack.c.bf16 %v628, %v627
        %v644 = vpack.c.bf16 %v630, %v629
        %v645 = vpack.c.bf16 %v632, %v631
        %v646 = vpack.c.bf16 %v634, %v633
        %v647 = vpack.c.bf16 %v636, %v635
        %v648 = vpack.c.bf16 %v638, %v637
        %v649 = vpack.c.bf16 %v640, %v639
        %v650 = vpack.c.bf16 %v642, %v641
        %v651 = vld [vmem:[%s5] sm:$0xf]
        %v652 = vld [vmem:[%s5 + $0x4] sm:$0xf]
        %v653 = vld [vmem:[%s5 + $0x8] sm:$0xf]
        %v654 = vld [vmem:[%s5 + $0xc] sm:$0xf]
        %v655 = vld [vmem:[%s5 + $0x10] sm:$0xf]
        %v656 = vld [vmem:[%s5 + $0x14] sm:$0xf]
        %v657 = vld [vmem:[%s5 + $0x18] sm:$0xf]
        %v658 = vld [vmem:[%s5 + $0x1c] sm:$0xf]
        %v659 = vld [vmem:[%s6] sm:$0x1]
        %v661 = vlaneseq
        %v662 = vshrl.u32 %v661, 7
        %v663 = vsub.s32 0, %v662
        %v664 = vrot.slane %v659, %v663
        %v674 = vunpack.c.l.b16 %v651
        %v675 = vunpack.c.l.b16 %v652
        %v676 = vunpack.c.l.b16 %v653
        %v677 = vunpack.c.l.b16 %v654
        %v678 = vunpack.c.l.b16 %v655
        %v679 = vunpack.c.l.b16 %v656
        %v680 = vunpack.c.l.b16 %v657
        %v681 = vunpack.c.l.b16 %v658
        %v682 = vpack.c.b16 %v675, %v674
        %v683 = vpack.c.b16 %v677, %v676
        %v684 = vpack.c.b16 %v679, %v678
        %v685 = vpack.c.b16 %v681, %v680
        %vm690 = vcmask 523264
        %v692 = vsel %vm690, %v643, 0
        %v695 = vsel %vm690, %v644, 0
        %v698 = vsel %vm690, %v645, 0
        %v701 = vsel %vm690, %v646, 0
        %v704 = vsel %vm690, %v647, 0
        %v707 = vsel %vm690, %v648, 0
        %v710 = vsel %vm690, %v649, 0
        %v713 = vsel %vm690, %v650, 0
        %715 = vmatprep.subr.bf16.mxu0 0
        %716 = vmatpush1.bf16.msra.mxu0 %v682
        %717 = vmatprep.subr.bf16.mxu0 0
        %718 = vmatpush1.bf16.msra.mxu0 %v683
        %719 = vmatprep.subr.bf16.mxu0 0
        %720 = vmatpush1.bf16.msra.mxu0 %v684
        %721 = vmatprep.subr.bf16.mxu0 0
        %722 = vmatpush1.bf16.msra.mxu0 %v685
        %723 = vmatprep.subr.bf16.mxu0 0
        %724 = vmatpush1.bf16.msra.mxu0 0
        %725 = vmatprep.subr.bf16.mxu0 0
        %726 = vmatpush1.bf16.msra.mxu0 0
        %727 = vmatprep.subr.bf16.mxu0 0
        %728 = vmatpush1.bf16.msra.mxu0 0
        %729 = vmatprep.subr.bf16.mxu0 0
        %730 = vmatpush1.bf16.msra.mxu0 0
        %731 = vmatprep.subr.bf16.mxu0 0
        %732 = vmatpush1.bf16.msra.mxu0 0
        %733 = vmatprep.subr.bf16.mxu0 0
        %734 = vmatpush1.bf16.msra.mxu0 0
        %735 = vmatprep.subr.bf16.mxu0 0
        %736 = vmatpush1.bf16.msra.mxu0 0
        %737 = vmatprep.subr.bf16.mxu0 0
        %738 = vmatpush1.bf16.msra.mxu0 0
        %739 = vmatprep.subr.bf16.mxu0 0
        %740 = vmatpush1.bf16.msra.mxu0 0
        %741 = vmatprep.subr.bf16.mxu0 0
        %742 = vmatpush1.bf16.msra.mxu0 0
        %743 = vmatprep.subr.bf16.mxu0 0
        %744 = vmatpush1.bf16.msra.mxu0 0
        %745 = vmatprep.subr.bf16.mxu0 0
        %746 = vmatpush1.bf16.msra.mxu0 0
        %747 = vmatprep.mubr.bf16.mxu0 0
        %748 = vmatmul.mubr.bf16.gmra.mrb[0].mxu0 %v692
        %v749 = vpop.f32.mrb[0].mxu0
        %v750 = vadd.f32 %v664, %v749
        %v751 = vpop.f32.mrb[0].mxu0
        %v752 = vpop.f32.mrb[0].mxu0
        %v753 = vadd.f32 %v664, %v752
        %v754 = vpop.f32.mrb[0].mxu0
        %755 = vmatprep.mubr.bf16.mxu0 0
        %756 = vmatmul.mubr.bf16.gmra.mrb[0].mxu0 %v695
        %v757 = vpop.f32.mrb[0].mxu0
        %v758 = vadd.f32 %v664, %v757
        %v759 = vpop.f32.mrb[0].mxu0
        %v760 = vpop.f32.mrb[0].mxu0
        %v761 = vadd.f32 %v664, %v760
        %v762 = vpop.f32.mrb[0].mxu0
        %763 = vmatprep.mubr.bf16.mxu0 0
        %764 = vmatmul.mubr.bf16.gmra.mrb[0].mxu0 %v698
        %v765 = vpop.f32.mrb[0].mxu0
        %v766 = vadd.f32 %v664, %v765
        %v767 = vpop.f32.mrb[0].mxu0
        %v768 = vpop.f32.mrb[0].mxu0
        %v769 = vadd.f32 %v664, %v768
        %v770 = vpop.f32.mrb[0].mxu0
        %771 = vmatprep.mubr.bf16.mxu0 0
        %772 = vmatmul.mubr.bf16.gmra.mrb[0].mxu0 %v701
        %v773 = vpop.f32.mrb[0].mxu0
        %v774 = vadd.f32 %v664, %v773
        %v775 = vpop.f32.mrb[0].mxu0
        %v776 = vpop.f32.mrb[0].mxu0
        %v777 = vadd.f32 %v664, %v776
        %v778 = vpop.f32.mrb[0].mxu0
        %779 = vmatprep.mubr.bf16.mxu0 0
        %780 = vmatmul.mubr.bf16.gmra.mrb[0].mxu0 %v704
        %v781 = vpop.f32.mrb[0].mxu0
        %v782 = vadd.f32 %v664, %v781
        %v783 = vpop.f32.mrb[0].mxu0
        %v784 = vpop.f32.mrb[0].mxu0
        %v785 = vadd.f32 %v664, %v784
        %v786 = vpop.f32.mrb[0].mxu0
        %787 = vmatprep.mubr.bf16.mxu0 0
        %788 = vmatmul.mubr.bf16.gmra.mrb[0].mxu0 %v707
        %v789 = vpop.f32.mrb[0].mxu0
        %v790 = vadd.f32 %v664, %v789
        %v791 = vpop.f32.mrb[0].mxu0
        %v792 = vpop.f32.mrb[0].mxu0
        %v793 = vadd.f32 %v664, %v792
        %v794 = vpop.f32.mrb[0].mxu0
        %795 = vmatprep.mubr.bf16.mxu0 0
        %796 = vmatmul.mubr.bf16.gmra.mrb[0].mxu0 %v710
        %v797 = vpop.f32.mrb[0].mxu0
        %v798 = vadd.f32 %v664, %v797
        %v799 = vpop.f32.mrb[0].mxu0
        %v800 = vpop.f32.mrb[0].mxu0
        %v801 = vadd.f32 %v664, %v800
        %v802 = vpop.f32.mrb[0].mxu0
        %803 = vmatprep.mubr.bf16.mxu0 0
        %804 = vmatmul.mubr.bf16.gmra.mrb[0].mxu0 %v713
        %v805 = vpop.f32.mrb[0].mxu0
        %v806 = vadd.f32 %v664, %v805
        %v807 = vpop.f32.mrb[0].mxu0
        %v808 = vpop.f32.mrb[0].mxu0
        %v809 = vadd.f32 %v664, %v808
        %v810 = vpop.f32.mrb[0].mxu0
        %811 = vdwg.mxu0
        %v812 = vmax.f32 %v750, 0.0
        %v813 = vmax.f32 %v753, 0.0
        %v814 = vmax.f32 %v758, 0.0
        %v815 = vmax.f32 %v761, 0.0
        %v816 = vmax.f32 %v766, 0.0
        %v817 = vmax.f32 %v769, 0.0
        %v818 = vmax.f32 %v774, 0.0
        %v819 = vmax.f32 %v777, 0.0
        %v820 = vmax.f32 %v782, 0.0
        %v821 = vmax.f32 %v785, 0.0
        %v822 = vmax.f32 %v790, 0.0
        %v823 = vmax.f32 %v793, 0.0
        %v824 = vmax.f32 %v798, 0.0
        %v825 = vmax.f32 %v801, 0.0
        %v826 = vmax.f32 %v806, 0.0
        %v827 = vmax.f32 %v809, 0.0
        %v828 = vld [vmem:[%s397] sm:$0xf]
        %v829 = vld [vmem:[%s401] sm:$0xf]
        %v830 = vpack.c.bf16 %v813, %v812
        %v831 = vpack.c.bf16 %v815, %v814
        %v832 = vpack.c.bf16 %v817, %v816
        %v833 = vpack.c.bf16 %v819, %v818
        %v834 = vpack.c.bf16 %v821, %v820
        %v835 = vpack.c.bf16 %v823, %v822
        %v836 = vpack.c.bf16 %v825, %v824
        %v837 = vpack.c.bf16 %v827, %v826
        %v839 = vsel %vm690, %v830, 0
        %v842 = vsel %vm690, %v831, 0
        %v845 = vsel %vm690, %v832, 0
        %v848 = vsel %vm690, %v833, 0
        %v851 = vsel %vm690, %v834, 0
        %v854 = vsel %vm690, %v835, 0
        %v857 = vsel %vm690, %v836, 0
        %v860 = vsel %vm690, %v837, 0
        %v863 = vsel %vm690, %v828, 0
        %865 = vmatprep.subr.bf16.mxu0 0
        %866 = vmatpush1.bf16.xpose.msra.mxu0 %v863
        %867 = vmatprep.subr.bf16.mxu0 0
        %868 = vmatpush1.bf16.xpose.msra.mxu0 0
        %869 = vmatprep.subr.bf16.mxu0 0
        %870 = vmatpush1.bf16.xpose.msra.mxu0 0
        %871 = vmatprep.subr.bf16.mxu0 0
        %872 = vmatpush1.bf16.xpose.msra.mxu0 0
        %873 = vmatprep.subr.bf16.mxu0 0
        %874 = vmatpush1.bf16.xpose.msra.mxu0 0
        %875 = vmatprep.subr.bf16.mxu0 0
        %876 = vmatpush1.bf16.xpose.msra.mxu0 0
        %877 = vmatprep.subr.bf16.mxu0 0
        %878 = vmatpush1.bf16.xpose.msra.mxu0 0
        %879 = vmatprep.subr.bf16.mxu0 0
        %880 = vmatpush1.bf16.xpose.msra.mxu0 0
        %881 = vmatprep.subr.bf16.mxu0 0
        %882 = vmatpush1.bf16.xpose.msra.mxu0 0
        %883 = vmatprep.subr.bf16.mxu0 0
        %884 = vmatpush1.bf16.xpose.msra.mxu0 0
        %885 = vmatprep.subr.bf16.mxu0 0
        %886 = vmatpush1.bf16.xpose.msra.mxu0 0
        %887 = vmatprep.subr.bf16.mxu0 0
        %888 = vmatpush1.bf16.xpose.msra.mxu0 0
        %889 = vmatprep.subr.bf16.mxu0 0
        %890 = vmatpush1.bf16.xpose.msra.mxu0 0
        %891 = vmatprep.subr.bf16.mxu0 0
        %892 = vmatpush1.bf16.xpose.msra.mxu0 0
        %893 = vmatprep.subr.bf16.mxu0 0
        %894 = vmatpush1.bf16.xpose.msra.mxu0 0
        %895 = vmatprep.subr.bf16.mxu0 0
        %896 = vmatpush1.bf16.xpose.msra.mxu0 0
        %897 = vmatprep.mubr.bf16.mxu0 0
        %898 = vmatmul.mubr.bf16.gmra.mrb[0].mxu0 %v839
        %v899 = vpop.f32.mrb[0].mxu0
        %v900 = vadd.f32 0.0, %v899
        %v901 = vpop.f32.mrb[0].mxu0
        %v902 = vpop.f32.mrb[0].mxu0
        %v903 = vadd.f32 0.0, %v902
        %v904 = vpop.f32.mrb[0].mxu0
        %905 = vmatprep.mubr.bf16.mxu0 0
        %906 = vmatmul.mubr.bf16.gmra.mrb[0].mxu0 %v842
        %v907 = vpop.f32.mrb[0].mxu0
        %v908 = vadd.f32 0.0, %v907
        %v909 = vpop.f32.mrb[0].mxu0
        %v910 = vpop.f32.mrb[0].mxu0
        %v911 = vadd.f32 0.0, %v910
        %v912 = vpop.f32.mrb[0].mxu0
        %913 = vmatprep.mubr.bf16.mxu0 0
        %914 = vmatmul.mubr.bf16.gmra.mrb[0].mxu0 %v845
        %v915 = vpop.f32.mrb[0].mxu0
        %v916 = vadd.f32 0.0, %v915
        %v917 = vpop.f32.mrb[0].mxu0
        %v918 = vpop.f32.mrb[0].mxu0
        %v919 = vadd.f32 0.0, %v918
        %v920 = vpop.f32.mrb[0].mxu0
        %921 = vmatprep.mubr.bf16.mxu0 0
        %922 = vmatmul.mubr.bf16.gmra.mrb[0].mxu0 %v848
        %v923 = vpop.f32.mrb[0].mxu0
        %v924 = vadd.f32 0.0, %v923
        %v925 = vpop.f32.mrb[0].mxu0
        %v926 = vpop.f32.mrb[0].mxu0
        %v927 = vadd.f32 0.0, %v926
        %v928 = vpop.f32.mrb[0].mxu0
        %929 = vmatprep.mubr.bf16.mxu0 0
        %930 = vmatmul.mubr.bf16.gmra.mrb[0].mxu0 %v851
        %v931 = vpop.f32.mrb[0].mxu0
        %v932 = vadd.f32 0.0, %v931
        %v933 = vpop.f32.mrb[0].mxu0
        %v934 = vpop.f32.mrb[0].mxu0
        %v935 = vadd.f32 0.0, %v934
        %v936 = vpop.f32.mrb[0].mxu0
        %937 = vmatprep.mubr.bf16.mxu0 0
        %938 = vmatmul.mubr.bf16.gmra.mrb[0].mxu0 %v854
        %v939 = vpop.f32.mrb[0].mxu0
        %v940 = vadd.f32 0.0, %v939
        %v941 = vpop.f32.mrb[0].mxu0
        %v942 = vpop.f32.mrb[0].mxu0
        %v943 = vadd.f32 0.0, %v942
        %v944 = vpop.f32.mrb[0].mxu0
        %945 = vmatprep.mubr.bf16.mxu0 0
        %946 = vmatmul.mubr.bf16.gmra.mrb[0].mxu0 %v857
        %v947 = vpop.f32.mrb[0].mxu0
        %v948 = vadd.f32 0.0, %v947
        %v949 = vpop.f32.mrb[0].mxu0
        %v950 = vpop.f32.mrb[0].mxu0
        %v951 = vadd.f32 0.0, %v950
        %v952 = vpop.f32.mrb[0].mxu0
        %953 = vmatprep.mubr.bf16.mxu0 0
        %954 = vmatmul.mubr.bf16.gmra.mrb[0].mxu0 %v860
        %v955 = vpop.f32.mrb[0].mxu0
        %v956 = vadd.f32 0.0, %v955
        %v957 = vpop.f32.mrb[0].mxu0
        %v958 = vpop.f32.mrb[0].mxu0
        %v959 = vadd.f32 0.0, %v958
        %v960 = vpop.f32.mrb[0].mxu0
        %961 = vdwg.mxu0
        %vm962 = vcmask 64512
        %v963 = vsel %vm962, %v900, -inf
        %964 = vmax.xlane.f32.xlu0 %v963
        %v965 = vpop.xlane.xlu0 %964
        %v966 = vsel %vm962, %v903, -inf
        %967 = vmax.xlane.f32.xlu0 %v966
        %v968 = vpop.xlane.xlu0 %967
        %v969 = vsel %vm962, %v908, -inf
        %970 = vmax.xlane.f32.xlu0 %v969
        %v971 = vpop.xlane.xlu0 %970
        %v972 = vsel %vm962, %v911, -inf
        %973 = vmax.xlane.f32.xlu0 %v972
        %v974 = vpop.xlane.xlu0 %973
        %v975 = vsel %vm962, %v916, -inf
        %976 = vmax.xlane.f32.xlu0 %v975
        %v977 = vpop.xlane.xlu0 %976
        %v978 = vsel %vm962, %v919, -inf
        %979 = vmax.xlane.f32.xlu0 %v978
        %v980 = vpop.xlane.xlu0 %979
        %v981 = vsel %vm962, %v924, -inf
        %982 = vmax.xlane.f32.xlu0 %v981
        %v983 = vpop.xlane.xlu0 %982
        %v984 = vsel %vm962, %v927, -inf
        %985 = vmax.xlane.f32.xlu0 %v984
        %v986 = vpop.xlane.xlu0 %985
        %v987 = vsel %vm962, %v932, -inf
        %988 = vmax.xlane.f32.xlu0 %v987
        %v989 = vpop.xlane.xlu0 %988
        %v990 = vsel %vm962, %v935, -inf
        %991 = vmax.xlane.f32.xlu0 %v990
        %v992 = vpop.xlane.xlu0 %991
        %v993 = vsel %vm962, %v940, -inf
        %994 = vmax.xlane.f32.xlu0 %v993
        %v995 = vpop.xlane.xlu0 %994
        %v996 = vsel %vm962, %v943, -inf
        %997 = vmax.xlane.f32.xlu0 %v996
        %v998 = vpop.xlane.xlu0 %997
        %v999 = vsel %vm962, %v948, -inf
        %1000 = vmax.xlane.f32.xlu0 %v999
        %v1001 = vpop.xlane.xlu0 %1000
        %v1002 = vsel %vm962, %v951, -inf
        %1003 = vmax.xlane.f32.xlu0 %v1002
        %v1004 = vpop.xlane.xlu0 %1003
        %v1005 = vsel %vm962, %v956, -inf
        %1006 = vmax.xlane.f32.xlu0 %v1005
        %v1007 = vpop.xlane.xlu0 %1006
        %v1008 = vsel %vm962, %v959, -inf
        %1009 = vmax.xlane.f32.xlu0 %v1008
        %v1010 = vpop.xlane.xlu0 %1009
        %v1011 = vsub.f32 %v900, %v965
        %v1012 = vsub.f32 %v903, %v968
        %v1013 = vsub.f32 %v908, %v971
        %v1014 = vsub.f32 %v911, %v974
        %v1015 = vsub.f32 %v916, %v977
        %v1016 = vsub.f32 %v919, %v980
        %v1017 = vsub.f32 %v924, %v983
        %v1018 = vsub.f32 %v927, %v986
        %v1019 = vsub.f32 %v932, %v989
        %v1020 = vsub.f32 %v935, %v992
        %v1021 = vsub.f32 %v940, %v995
        %v1022 = vsub.f32 %v943, %v998
        %v1023 = vsub.f32 %v948, %v1001
        %v1024 = vsub.f32 %v951, %v1004
        %v1025 = vsub.f32 %v956, %v1007
        %v1026 = vsub.f32 %v959, %v1010
        %v1027 = vmul.f32 %v1011, 1.442695
        %v1028 = vpow.pop %v1027
        %v1029 = vmul.f32 %v1012, 1.442695
        %v1030 = vpow.pop %v1029
        %v1031 = vmul.f32 %v1013, 1.442695
        %v1032 = vpow.pop %v1031
        %v1033 = vmul.f32 %v1014, 1.442695
        %v1034 = vpow.pop %v1033
        %v1035 = vmul.f32 %v1015, 1.442695
        %v1036 = vpow.pop %v1035
        %v1037 = vmul.f32 %v1016, 1.442695
        %v1038 = vpow.pop %v1037
        %v1039 = vmul.f32 %v1017, 1.442695
        %v1040 = vpow.pop %v1039
        %v1041 = vmul.f32 %v1018, 1.442695
        %v1042 = vpow.pop %v1041
        %v1043 = vmul.f32 %v1019, 1.442695
        %v1044 = vpow.pop %v1043
        %v1045 = vmul.f32 %v1020, 1.442695
        %v1046 = vpow.pop %v1045
        %v1047 = vmul.f32 %v1021, 1.442695
        %v1048 = vpow.pop %v1047
        %v1049 = vmul.f32 %v1022, 1.442695
        %v1050 = vpow.pop %v1049
        %v1051 = vmul.f32 %v1023, 1.442695
        %v1052 = vpow.pop %v1051
        %v1053 = vmul.f32 %v1024, 1.442695
        %v1054 = vpow.pop %v1053
        %v1055 = vmul.f32 %v1025, 1.442695
        %v1056 = vpow.pop %v1055
        %v1057 = vmul.f32 %v1026, 1.442695
        %v1058 = vpow.pop %v1057
        %v1059 = vsel %vm962, %v1028, 0.0
        %1060 = vadd.xlane.f32.xlu0 %v1059
        %v1061 = vpop.xlane.xlu0 %1060
        %v1062 = vsel %vm962, %v1030, 0.0
        %1063 = vadd.xlane.f32.xlu0 %v1062
        %v1064 = vpop.xlane.xlu0 %1063
        %v1065 = vsel %vm962, %v1032, 0.0
        %1066 = vadd.xlane.f32.xlu0 %v1065
        %v1067 = vpop.xlane.xlu0 %1066
        %v1068 = vsel %vm962, %v1034, 0.0
        %1069 = vadd.xlane.f32.xlu0 %v1068
        %v1070 = vpop.xlane.xlu0 %1069
        %v1071 = vsel %vm962, %v1036, 0.0
        %1072 = vadd.xlane.f32.xlu0 %v1071
        %v1073 = vpop.xlane.xlu0 %1072
        %v1074 = vsel %vm962, %v1038, 0.0
        %1075 = vadd.xlane.f32.xlu0 %v1074
        %v1076 = vpop.xlane.xlu0 %1075
        %v1077 = vsel %vm962, %v1040, 0.0
        %1078 = vadd.xlane.f32.xlu0 %v1077
        %v1079 = vpop.xlane.xlu0 %1078
        %v1080 = vsel %vm962, %v1042, 0.0
        %1081 = vadd.xlane.f32.xlu0 %v1080
        %v1082 = vpop.xlane.xlu0 %1081
        %v1083 = vsel %vm962, %v1044, 0.0
        %1084 = vadd.xlane.f32.xlu0 %v1083
        %v1085 = vpop.xlane.xlu0 %1084
        %v1086 = vsel %vm962, %v1046, 0.0
        %1087 = vadd.xlane.f32.xlu0 %v1086
        %v1088 = vpop.xlane.xlu0 %1087
        %v1089 = vsel %vm962, %v1048, 0.0
        %1090 = vadd.xlane.f32.xlu0 %v1089
        %v1091 = vpop.xlane.xlu0 %1090
        %v1092 = vsel %vm962, %v1050, 0.0
        %1093 = vadd.xlane.f32.xlu0 %v1092
        %v1094 = vpop.xlane.xlu0 %1093
        %v1095 = vsel %vm962, %v1052, 0.0
        %1096 = vadd.xlane.f32.xlu0 %v1095
        %v1097 = vpop.xlane.xlu0 %1096
        %v1098 = vsel %vm962, %v1054, 0.0
        %1099 = vadd.xlane.f32.xlu0 %v1098
        %v1100 = vpop.xlane.xlu0 %1099
        %v1101 = vsel %vm962, %v1056, 0.0
        %1102 = vadd.xlane.f32.xlu0 %v1101
        %v1103 = vpop.xlane.xlu0 %1102
        %v1104 = vsel %vm962, %v1058, 0.0
        %1105 = vadd.xlane.f32.xlu0 %v1104
        %v1106 = vpop.xlane.xlu0 %1105
        %v1107 = vrcp.pop %v1061
        %v1108 = vrcp.pop %v1064
        %v1109 = vrcp.pop %v1067
        %v1110 = vrcp.pop %v1070
        %v1111 = vrcp.pop %v1073
        %v1112 = vrcp.pop %v1076
        %v1113 = vrcp.pop %v1079
        %v1114 = vrcp.pop %v1082
        %v1115 = vrcp.pop %v1085
        %v1116 = vrcp.pop %v1088
        %v1117 = vrcp.pop %v1091
        %v1118 = vrcp.pop %v1094
        %v1119 = vrcp.pop %v1097
        %v1120 = vrcp.pop %v1100
        %v1121 = vrcp.pop %v1103
        %v1122 = vrcp.pop %v1106
        %v1123 = vmul.f32 %v1028, %v1107
        %v1124 = vmul.f32 %v1030, %v1108
        %v1125 = vmul.f32 %v1032, %v1109
        %v1126 = vmul.f32 %v1034, %v1110
        %v1127 = vmul.f32 %v1036, %v1111
        %v1128 = vmul.f32 %v1038, %v1112
        %v1129 = vmul.f32 %v1040, %v1113
        %v1130 = vmul.f32 %v1042, %v1114
        %v1131 = vmul.f32 %v1044, %v1115
        %v1132 = vmul.f32 %v1046, %v1116
        %v1133 = vmul.f32 %v1048, %v1117
        %v1134 = vmul.f32 %v1050, %v1118
        %v1135 = vmul.f32 %v1052, %v1119
        %v1136 = vmul.f32 %v1054, %v1120
        %v1137 = vmul.f32 %v1056, %v1121
        %v1138 = vmul.f32 %v1058, %v1122
        %v1139 = vpack.c.bf16 %v1124, %v1123
        %v1140 = vpack.c.bf16 %v1126, %v1125
        %v1141 = vpack.c.bf16 %v1128, %v1127
        %v1142 = vpack.c.bf16 %v1130, %v1129
        %v1143 = vpack.c.bf16 %v1132, %v1131
        %v1144 = vpack.c.bf16 %v1134, %v1133
        %v1145 = vpack.c.bf16 %v1136, %v1135
        %v1146 = vpack.c.bf16 %v1138, %v1137
        %v1148 = vsel %vm962, %v1139, 0
        %v1151 = vsel %vm962, %v1140, 0
        %v1154 = vsel %vm962, %v1141, 0
        %v1157 = vsel %vm962, %v1142, 0
        %v1160 = vsel %vm962, %v1143, 0
        %v1163 = vsel %vm962, %v1144, 0
        %v1166 = vsel %vm962, %v1145, 0
        %v1169 = vsel %vm962, %v1146, 0
        %vm1171 = vcmask 1043456
        %v1173 = vsel %vm1171, %v829, 0
        %1175 = vmatprep.subr.bf16.mxu0 0
        %1176 = vmatpush1.bf16.msra.mxu0 %v1173
        %1177 = vmatprep.subr.bf16.mxu0 0
        %1178 = vmatpush1.bf16.msra.mxu0 0
        %1179 = vmatprep.subr.bf16.mxu0 0
        %1180 = vmatpush1.bf16.msra.mxu0 0
        %1181 = vmatprep.subr.bf16.mxu0 0
        %1182 = vmatpush1.bf16.msra.mxu0 0
        %1183 = vmatprep.subr.bf16.mxu0 0
        %1184 = vmatpush1.bf16.msra.mxu0 0
        %1185 = vmatprep.subr.bf16.mxu0 0
        %1186 = vmatpush1.bf16.msra.mxu0 0
        %1187 = vmatprep.subr.bf16.mxu0 0
        %1188 = vmatpush1.bf16.msra.mxu0 0
        %1189 = vmatprep.subr.bf16.mxu0 0
        %1190 = vmatpush1.bf16.msra.mxu0 0
        %1191 = vmatprep.subr.bf16.mxu0 0
        %1192 = vmatpush1.bf16.msra.mxu0 0
        %1193 = vmatprep.subr.bf16.mxu0 0
        %1194 = vmatpush1.bf16.msra.mxu0 0
        %1195 = vmatprep.subr.bf16.mxu0 0
        %1196 = vmatpush1.bf16.msra.mxu0 0
        %1197 = vmatprep.subr.bf16.mxu0 0
        %1198 = vmatpush1.bf16.msra.mxu0 0
        %1199 = vmatprep.subr.bf16.mxu0 0
        %1200 = vmatpush1.bf16.msra.mxu0 0
        %1201 = vmatprep.subr.bf16.mxu0 0
        %1202 = vmatpush1.bf16.msra.mxu0 0
        %1203 = vmatprep.subr.bf16.mxu0 0
        %1204 = vmatpush1.bf16.msra.mxu0 0
        %1205 = vmatprep.subr.bf16.mxu0 0
        %1206 = vmatpush1.bf16.msra.mxu0 0
        %1207 = vmatprep.mubr.bf16.mxu0 0
        %1208 = vmatmul.mubr.bf16.gmra.mrb[0].mxu0 %v1148
        %v1209 = vpop.f32.mrb[0].mxu0
        %v1210 = vadd.f32 0.0, %v1209
        %v1211 = vpop.f32.mrb[0].mxu0
        %v1212 = vpop.f32.mrb[0].mxu0
        %v1213 = vadd.f32 0.0, %v1212
        %v1214 = vpop.f32.mrb[0].mxu0
        %1215 = vmatprep.mubr.bf16.mxu0 0
        %1216 = vmatmul.mubr.bf16.gmra.mrb[0].mxu0 %v1151
        %v1217 = vpop.f32.mrb[0].mxu0
        %v1218 = vadd.f32 0.0, %v1217
        %v1219 = vpop.f32.mrb[0].mxu0
        %v1220 = vpop.f32.mrb[0].mxu0
        %v1221 = vadd.f32 0.0, %v1220
        %v1222 = vpop.f32.mrb[0].mxu0
        %1223 = vmatprep.mubr.bf16.mxu0 0
        %1224 = vmatmul.mubr.bf16.gmra.mrb[0].mxu0 %v1154
        %v1225 = vpop.f32.mrb[0].mxu0
        %v1226 = vadd.f32 0.0, %v1225
        %v1227 = vpop.f32.mrb[0].mxu0
        %v1228 = vpop.f32.mrb[0].mxu0
        %v1229 = vadd.f32 0.0, %v1228
        %v1230 = vpop.f32.mrb[0].mxu0
        %1231 = vmatprep.mubr.bf16.mxu0 0
        %1232 = vmatmul.mubr.bf16.gmra.mrb[0].mxu0 %v1157
        %v1233 = vpop.f32.mrb[0].mxu0
        %v1234 = vadd.f32 0.0, %v1233
        %v1235 = vpop.f32.mrb[0].mxu0
        %v1236 = vpop.f32.mrb[0].mxu0
        %v1237 = vadd.f32 0.0, %v1236
        %v1238 = vpop.f32.mrb[0].mxu0
        %1239 = vmatprep.mubr.bf16.mxu0 0
        %1240 = vmatmul.mubr.bf16.gmra.mrb[0].mxu0 %v1160
        %v1241 = vpop.f32.mrb[0].mxu0
        %v1242 = vadd.f32 0.0, %v1241
        %v1243 = vpop.f32.mrb[0].mxu0
        %v1244 = vpop.f32.mrb[0].mxu0
        %v1245 = vadd.f32 0.0, %v1244
        %v1246 = vpop.f32.mrb[0].mxu0
        %1247 = vmatprep.mubr.bf16.mxu0 0
        %1248 = vmatmul.mubr.bf16.gmra.mrb[0].mxu0 %v1163
        %v1249 = vpop.f32.mrb[0].mxu0
        %v1250 = vadd.f32 0.0, %v1249
        %v1251 = vpop.f32.mrb[0].mxu0
        %v1252 = vpop.f32.mrb[0].mxu0
        %v1253 = vadd.f32 0.0, %v1252
        %v1254 = vpop.f32.mrb[0].mxu0
        %1255 = vmatprep.mubr.bf16.mxu0 0
        %1256 = vmatmul.mubr.bf16.gmra.mrb[0].mxu0 %v1166
        %v1257 = vpop.f32.mrb[0].mxu0
        %v1258 = vadd.f32 0.0, %v1257
        %v1259 = vpop.f32.mrb[0].mxu0
        %v1260 = vpop.f32.mrb[0].mxu0
        %v1261 = vadd.f32 0.0, %v1260
        %v1262 = vpop.f32.mrb[0].mxu0
        %1263 = vmatprep.mubr.bf16.mxu0 0
        %1264 = vmatmul.mubr.bf16.gmra.mrb[0].mxu0 %v1169
        %v1265 = vpop.f32.mrb[0].mxu0
        %v1266 = vadd.f32 0.0, %v1265
        %v1267 = vpop.f32.mrb[0].mxu0
        %v1268 = vpop.f32.mrb[0].mxu0
        %v1269 = vadd.f32 0.0, %v1268
        %v1270 = vpop.f32.mrb[0].mxu0
        %1271 = vdwg.mxu0
        %v1272 = vpack.c.bf16 %v1213, %v1210
        %v1273 = vpack.c.bf16 %v1221, %v1218
        %v1274 = vpack.c.bf16 %v1229, %v1226
        %v1275 = vpack.c.bf16 %v1237, %v1234
        %v1276 = vpack.c.bf16 %v1245, %v1242
        %v1277 = vpack.c.bf16 %v1253, %v1250
        %v1278 = vpack.c.bf16 %v1261, %v1258
        %v1279 = vpack.c.bf16 %v1269, %v1266
        %v1280 = vld [vmem:[%s7] sm:$0xf]
        %v1281 = vld [vmem:[%s7 + $0x4] sm:$0xf]
        %v1282 = vld [vmem:[%s7 + $0x8] sm:$0xf]
        %v1283 = vld [vmem:[%s7 + $0xc] sm:$0xf]
        %v1284 = vld [vmem:[%s7 + $0x10] sm:$0xf]
        %v1285 = vld [vmem:[%s7 + $0x14] sm:$0xf]
        %v1286 = vld [vmem:[%s7 + $0x18] sm:$0xf]
        %v1287 = vld [vmem:[%s7 + $0x1c] sm:$0xf]
        %v1288 = vld [vmem:[%s8] sm:$0x1]
        %v1290 = vlaneseq
        %v1291 = vshrl.u32 %v1290, 7
        %v1292 = vsub.s32 0, %v1291
        %v1293 = vrot.slane %v1288, %v1292
        %v1303 = vunpack.c.l.b16 %v1280
        %v1304 = vunpack.c.l.b16 %v1281
        %v1305 = vunpack.c.l.b16 %v1282
        %v1306 = vunpack.c.l.b16 %v1283
        %v1307 = vunpack.c.l.b16 %v1284
        %v1308 = vunpack.c.l.b16 %v1285
        %v1309 = vunpack.c.l.b16 %v1286
        %v1310 = vunpack.c.l.b16 %v1287
        %v1311 = vpack.c.b16 %v1304, %v1303
        %v1312 = vpack.c.b16 %v1306, %v1305
        %v1313 = vpack.c.b16 %v1308, %v1307
        %v1314 = vpack.c.b16 %v1310, %v1309
        %v1320 = vsel %vm690, %v1272, 0
        %v1323 = vsel %vm690, %v1273, 0
        %v1326 = vsel %vm690, %v1274, 0
        %v1329 = vsel %vm690, %v1275, 0
        %v1332 = vsel %vm690, %v1276, 0
        %v1335 = vsel %vm690, %v1277, 0
        %v1338 = vsel %vm690, %v1278, 0
        %v1341 = vsel %vm690, %v1279, 0
        %1343 = vmatprep.subr.bf16.mxu0 0
        %1344 = vmatpush1.bf16.msra.mxu0 %v1311
        %1345 = vmatprep.subr.bf16.mxu0 0
        %1346 = vmatpush1.bf16.msra.mxu0 %v1312
        %1347 = vmatprep.subr.bf16.mxu0 0
        %1348 = vmatpush1.bf16.msra.mxu0 %v1313
        %1349 = vmatprep.subr.bf16.mxu0 0
        %1350 = vmatpush1.bf16.msra.mxu0 %v1314
        %1351 = vmatprep.subr.bf16.mxu0 0
        %1352 = vmatpush1.bf16.msra.mxu0 0
        %1353 = vmatprep.subr.bf16.mxu0 0
        %1354 = vmatpush1.bf16.msra.mxu0 0
        %1355 = vmatprep.subr.bf16.mxu0 0
        %1356 = vmatpush1.bf16.msra.mxu0 0
        %1357 = vmatprep.subr.bf16.mxu0 0
        %1358 = vmatpush1.bf16.msra.mxu0 0
        %1359 = vmatprep.subr.bf16.mxu0 0
        %1360 = vmatpush1.bf16.msra.mxu0 0
        %1361 = vmatprep.subr.bf16.mxu0 0
        %1362 = vmatpush1.bf16.msra.mxu0 0
        %1363 = vmatprep.subr.bf16.mxu0 0
        %1364 = vmatpush1.bf16.msra.mxu0 0
        %1365 = vmatprep.subr.bf16.mxu0 0
        %1366 = vmatpush1.bf16.msra.mxu0 0
        %1367 = vmatprep.subr.bf16.mxu0 0
        %1368 = vmatpush1.bf16.msra.mxu0 0
        %1369 = vmatprep.subr.bf16.mxu0 0
        %1370 = vmatpush1.bf16.msra.mxu0 0
        %1371 = vmatprep.subr.bf16.mxu0 0
        %1372 = vmatpush1.bf16.msra.mxu0 0
        %1373 = vmatprep.subr.bf16.mxu0 0
        %1374 = vmatpush1.bf16.msra.mxu0 0
        %1375 = vmatprep.mubr.bf16.mxu0 0
        %1376 = vmatmul.mubr.bf16.gmra.mrb[0].mxu0 %v1320
        %v1377 = vpop.f32.mrb[0].mxu0
        %v1378 = vadd.f32 %v1293, %v1377
        %v1379 = vpop.f32.mrb[0].mxu0
        %v1380 = vpop.f32.mrb[0].mxu0
        %v1381 = vadd.f32 %v1293, %v1380
        %v1382 = vpop.f32.mrb[0].mxu0
        %1383 = vmatprep.mubr.bf16.mxu0 0
        %1384 = vmatmul.mubr.bf16.gmra.mrb[0].mxu0 %v1323
        %v1385 = vpop.f32.mrb[0].mxu0
        %v1386 = vadd.f32 %v1293, %v1385
        %v1387 = vpop.f32.mrb[0].mxu0
        %v1388 = vpop.f32.mrb[0].mxu0
        %v1389 = vadd.f32 %v1293, %v1388
        %v1390 = vpop.f32.mrb[0].mxu0
        %1391 = vmatprep.mubr.bf16.mxu0 0
        %1392 = vmatmul.mubr.bf16.gmra.mrb[0].mxu0 %v1326
        %v1393 = vpop.f32.mrb[0].mxu0
        %v1394 = vadd.f32 %v1293, %v1393
        %v1395 = vpop.f32.mrb[0].mxu0
        %v1396 = vpop.f32.mrb[0].mxu0
        %v1397 = vadd.f32 %v1293, %v1396
        %v1398 = vpop.f32.mrb[0].mxu0
        %1399 = vmatprep.mubr.bf16.mxu0 0
        %1400 = vmatmul.mubr.bf16.gmra.mrb[0].mxu0 %v1329
        %v1401 = vpop.f32.mrb[0].mxu0
        %v1402 = vadd.f32 %v1293, %v1401
        %v1403 = vpop.f32.mrb[0].mxu0
        %v1404 = vpop.f32.mrb[0].mxu0
        %v1405 = vadd.f32 %v1293, %v1404
        %v1406 = vpop.f32.mrb[0].mxu0
        %1407 = vmatprep.mubr.bf16.mxu0 0
        %1408 = vmatmul.mubr.bf16.gmra.mrb[0].mxu0 %v1332
        %v1409 = vpop.f32.mrb[0].mxu0
        %v1410 = vadd.f32 %v1293, %v1409
        %v1411 = vpop.f32.mrb[0].mxu0
        %v1412 = vpop.f32.mrb[0].mxu0
        %v1413 = vadd.f32 %v1293, %v1412
        %v1414 = vpop.f32.mrb[0].mxu0
        %1415 = vmatprep.mubr.bf16.mxu0 0
        %1416 = vmatmul.mubr.bf16.gmra.mrb[0].mxu0 %v1335
        %v1417 = vpop.f32.mrb[0].mxu0
        %v1418 = vadd.f32 %v1293, %v1417
        %v1419 = vpop.f32.mrb[0].mxu0
        %v1420 = vpop.f32.mrb[0].mxu0
        %v1421 = vadd.f32 %v1293, %v1420
        %v1422 = vpop.f32.mrb[0].mxu0
        %1423 = vmatprep.mubr.bf16.mxu0 0
        %1424 = vmatmul.mubr.bf16.gmra.mrb[0].mxu0 %v1338
        %v1425 = vpop.f32.mrb[0].mxu0
        %v1426 = vadd.f32 %v1293, %v1425
        %v1427 = vpop.f32.mrb[0].mxu0
        %v1428 = vpop.f32.mrb[0].mxu0
        %v1429 = vadd.f32 %v1293, %v1428
        %v1430 = vpop.f32.mrb[0].mxu0
        %1431 = vmatprep.mubr.bf16.mxu0 0
        %1432 = vmatmul.mubr.bf16.gmra.mrb[0].mxu0 %v1341
        %v1433 = vpop.f32.mrb[0].mxu0
        %v1434 = vadd.f32 %v1293, %v1433
        %v1435 = vpop.f32.mrb[0].mxu0
        %v1436 = vpop.f32.mrb[0].mxu0
        %v1437 = vadd.f32 %v1293, %v1436
        %v1438 = vpop.f32.mrb[0].mxu0
        %1439 = vdwg.mxu0
        %v1440 = vmax.f32 %v1378, 0.0
        %v1441 = vmax.f32 %v1381, 0.0
        %v1442 = vmax.f32 %v1386, 0.0
        %v1443 = vmax.f32 %v1389, 0.0
        %v1444 = vmax.f32 %v1394, 0.0
        %v1445 = vmax.f32 %v1397, 0.0
        %v1446 = vmax.f32 %v1402, 0.0
        %v1447 = vmax.f32 %v1405, 0.0
        %v1448 = vmax.f32 %v1410, 0.0
        %v1449 = vmax.f32 %v1413, 0.0
        %v1450 = vmax.f32 %v1418, 0.0
        %v1451 = vmax.f32 %v1421, 0.0
        %v1452 = vmax.f32 %v1426, 0.0
        %v1453 = vmax.f32 %v1429, 0.0
        %v1454 = vmax.f32 %v1434, 0.0
        %v1455 = vmax.f32 %v1437, 0.0
        %1456 = vxpose.xlu0.b32.start [1/16] %v1440, 128
        %1457 = vxpose.xlu0.b32.cont [2/16] %v1441, 128
        %1458 = vxpose.xlu0.b32.cont [3/16] %v1442, 128
        %1459 = vxpose.xlu0.b32.cont [4/16] %v1443, 128
        %1460 = vxpose.xlu0.b32.cont [5/16] %v1444, 128
        %1461 = vxpose.xlu0.b32.cont [6/16] %v1445, 128
        %1462 = vxpose.xlu0.b32.cont [7/16] %v1446, 128
        %1463 = vxpose.xlu0.b32.cont [8/16] %v1447, 128
        %1464 = vxpose.xlu0.b32.cont [9/16] %v1448, 128
        %1465 = vxpose.xlu0.b32.cont [10/16] %v1449, 128
        %1466 = vxpose.xlu0.b32.cont [11/16] %v1450, 128
        %1467 = vxpose.xlu0.b32.cont [12/16] %v1451, 128
        %1468 = vxpose.xlu0.b32.cont [13/16] %v1452, 128
        %1469 = vxpose.xlu0.b32.cont [14/16] %v1453, 128
        %1470 = vxpose.xlu0.b32.cont [15/16] %v1454, 128
        %1471 = vxpose.xlu0.b32.end [16/16] %v1455, 128
        %v1472 = vpop.trf.xlu0
        %v1473 = vpop.trf.xlu0
        %v1474 = vpop.trf.xlu0
        %v1475 = vpop.trf.xlu0
        %v1476 = vpop.trf.xlu0
        %v1477 = vpop.trf.xlu0
        %v1478 = vpop.trf.xlu0
        %v1479 = vpop.trf.xlu0
        %v1480 = vpop.trf.xlu0
        %v1481 = vpop.trf.xlu0
        %v1482 = vpop.trf.xlu0
        %v1483 = vpop.trf.xlu0
        %v1484 = vpop.trf.xlu0
        %v1485 = vpop.trf.xlu0
        %v1486 = vpop.trf.xlu0
        %v1487 = vpop.trf.xlu0
        %1488 = vst [vmem:[%s393] sm:$0xff] %v1472
        %1489 = vst [vmem:[%s393 + $0x8] sm:$0xff] %v1473
        %1490 = vst [vmem:[%s393 + $0x10] sm:$0xff] %v1474
        %1491 = vst [vmem:[%s393 + $0x18] sm:$0xff] %v1475
        %1492 = vst [vmem:[%s393 + $0x20] sm:$0xff] %v1476
        %1493 = vst [vmem:[%s393 + $0x28] sm:$0xff] %v1477
        %1494 = vst [vmem:[%s393 + $0x30] sm:$0xff] %v1478
        %1495 = vst [vmem:[%s393 + $0x38] sm:$0xff] %v1479
        %1496 = vst [vmem:[%s393 + $0x40] sm:$0xff] %v1480
        %1497 = vst [vmem:[%s393 + $0x48] sm:$0xff] %v1481
        %1498 = vst [vmem:[%s393 + $0x50] sm:$0xff] %v1482
        %1499 = vst [vmem:[%s393 + $0x58] sm:$0xff] %v1483
        %1500 = vst [vmem:[%s393 + $0x60] sm:$0xff] %v1484
        %1501 = vst [vmem:[%s393 + $0x68] sm:$0xff] %v1485
        %1502 = vst [vmem:[%s393 + $0x70] sm:$0xff] %v1486
        %1503 = vst [vmem:[%s393 + $0x78] sm:$0xff] %v1487
        %s1504 = sand.u32 %s254, 1
        %s1505 = scalar_lea.sflag [#allocation4], %s1504
        %s1506 = sand.u32 %s254, 1
        %s1507 = smul.addr %s1506, 128
        %s1508 = scalar_lea.vmem [#allocation5], %s1507
        // Predicated region
        $region61: #{tpu_custom_call.1} parent=55 // pred_check
          %p1509 = pneg %p264
        $region62: #{tpu_custom_call.1} parent=55 // pred_check_branch
          %1511 = sbr.rel (%p1509) target = $region64
        $region63: #{tpu_custom_call.1} parent=55 // pred_region
          %s1513 = ssub.s32 2048, 2048
          %1514 = vsyncadd %s1505, %s1513
          %s1515 = smul.addr %s30, 32
          %s1516 = sadd.s32 %s31, %s1515
          %s1517 = smul.addr %s1516, 128
          %s1518 = scalar_lea.hbm %s9, %s1517
          %s1519 = sshll.u32 %s1508, 4
          %s1520 = int_to_ptr.vmem [resolvable:$true] %s1519
          %1525 = dma.vmem_to_hbm [thread:$0]  %s1520, 2048, %s1518, %s1505, 128, 256, 8
        $region64: #{tpu_custom_call.1} parent=55 // pred_fallthru
          _
      $region56: #{tpu_custom_call.1} parent=5 // pred_fallthru
        _
      %p1526 = scmp.le.s32.totalorder 2, %s21
      // Predicated region
      $region65: #{tpu_custom_call.1} parent=5 // pred_check
        %p1527 = pneg %p1526
      $region66: #{tpu_custom_call.1} parent=5 // pred_check_branch
        %1529 = sbr.rel (%p1527) target = $region68
      $region67: #{tpu_custom_call.1} parent=5 // pred_region
        %s1530 = ssub.s32 %s21, 2
        // Predicated region
        $region69: #{tpu_custom_call.1} parent=67 // pred_check
          %p1531 = pneg %p270
        $region70: #{tpu_custom_call.1} parent=67 // pred_check_branch
          %1533 = sbr.rel (%p1531) target = $region72
        $region71: #{tpu_custom_call.1} parent=67 // pred_region
          %s1534 = sand.u32 %s255, 1
          %s1535 = scalar_lea.sflag [#allocation4], %s1534
          %s1536 = sand.u32 %s255, 1
          %s1537 = smul.addr %s1536, 128
          %s1538 = scalar_lea.vmem [#allocation5], %s1537
          %1539 = dma.done %s1535, 2048
        $region72: #{tpu_custom_call.1} parent=67 // pred_fallthru
          _
      $region68: #{tpu_custom_call.1} parent=5 // pred_fallthru
        _
    $region6: #{tpu_custom_call.1} parent=1 // loop_footer
      %s25 = sadd.s32 1, %s21
    $region7: #{tpu_custom_call.1} parent=1 // loop_footer_branch
      %20 = sbr.rel target = $region3
    $region8: #{tpu_custom_call.1} parent=1 // loop_exit
      _
    %1540 = vsyncpa [#allocation3], 1
    %s1541 = scalar_lea.sflag [#allocation3], 1
    %1542 = vsyncpa %s1541, 1
    %1543 = vsyncpa [#allocation4], 1
    %s1544 = scalar_lea.sflag [#allocation4], 1
    %1545 = vsyncpa %s1544, 1

// kernel: tpu_custom_call.1
$region0: #{tpu_custom_call.1}
  #allocation0 [shape = 'u32[]', space=smem, size = 0x4, offset = 0x4, fixed_abs, tag = 'smem constant byte address 0x4 - core index']
  #allocation1 [shape = 'u32[144,128]{1,0:T(1,128)}', space=vmem, size = 0x12000, scoped, tag = 'internal scratch']
  %s0 = inlined_call_operand.hbm [shape: f32[2,128,256], index: 0, kind: input, shape index: {}]
  %s1 = inlined_call_operand.vmem [shape: bf16[2,8,64], index: 1, kind: input, shape index: {}]
  %s2 = inlined_call_operand.vmem [shape: bf16[2,8,64], index: 2, kind: input, shape index: {}]
  %s3 = inlined_call_operand.vmem [shape: bf16[128,64], index: 3, kind: input, shape index: {}]
  %s4 = inlined_call_operand.vmem [shape: f32[1,64], index: 4, kind: input, shape index: {}]
  %s5 = inlined_call_operand.vmem [shape: bf16[64,64], index: 5, kind: input, shape index: {}]
  %s6 = inlined_call_operand.vmem [shape: f32[1,64], index: 6, kind: input, shape index: {}]
  %s7 = inlined_call_operand.vmem [shape: bf16[64,128], index: 7, kind: input, shape index: {}]
  %s8 = inlined_call_operand.vmem [shape: f32[1,128], index: 8, kind: input, shape index: {}]
  %s9 = inlined_call_operand.hbm [shape: f32[2,128,256], index: 9, kind: output, shape index: {}]
  %s10 = sld [smem:[#allocation0]]
  $region73: #{tpu_custom_call.1} parent=0
    _
  %s12 = ssub.s32 1, %s10
  %s13 = scalar_select 0, %s12, %s10
  $region1: #{tpu_custom_call.1} parent=0
    #allocation2 [shape = 'u8[131072]{0}', space=vmem, size = 0x20000, scoped, tag = 'input window, operand 0']
    #allocation3 [shape = 's32[2]{0}', space=sflag, size = 0x8, scoped, tag = 'scoped memory for tpu_custom_call.1']
    #allocation4 [shape = 's32[2]{0}', space=sflag, size = 0x8, scoped, tag = 'scoped memory for tpu_custom_call.1']
    #allocation5 [shape = 'u8[131072]{0}', space=vmem, size = 0x20000, scoped, tag = 'output window, operand 0']
    %14 = vsyncpa [#allocation3], 0
    %s15 = scalar_lea.sflag [#allocation3], 1
    %16 = vsyncpa %s15, 0
    %17 = vsyncpa [#allocation4], 0
    %s18 = scalar_lea.sflag [#allocation4], 1
    %19 = vsyncpa %s18, 0
    loop: start=0, step=1, limit=6
    $region2: #{tpu_custom_call.1} parent=1 // loop_pre_header
      _
    $region3: #{tpu_custom_call.1} parent=1 // loop_header
      %s21 = sphi 0, %s25
      %p22 = scmp.ge.s32.totalorder %s21, 6
      %s28 = sphi 0, %s40
      %s29 = sphi 0, %s36
      %s30 = sphi 0, %s28
      %s31 = sphi 0, %s29
      %s32 = sphi 0, %s30
      %s33 = sphi 0, %s31
      %s45 = sphi 0, %s47
      %s48 = sphi 0, %s45
      %s49 = sphi 0, %s48
      %s65 = sphi 0, %s49
      %s71 = sphi 0, %s73
      %s74 = sphi 0, %s71
      %s75 = sphi 0, %s74
      %s91 = sphi 0, %s75
      %s97 = sphi 0, %s99
      %s100 = sphi 0, %s97
      %s101 = sphi 0, %s100
      %s117 = sphi 0, %s101
      %s121 = sphi 0, %s121
      %s123 = sphi 0, %s121
      %s124 = sphi 0, %s123
      %s138 = sphi 0, %s124
      %s142 = sphi 0, %s142
      %s144 = sphi 0, %s142
      %s145 = sphi 0, %s144
      %s159 = sphi 0, %s145
      %s163 = sphi 0, %s163
      %s165 = sphi 0, %s163
      %s166 = sphi 0, %s165
      %s180 = sphi 0, %s166
      %s184 = sphi 0, %s184
      %s186 = sphi 0, %s184
      %s187 = sphi 0, %s186
      %s201 = sphi 0, %s187
      %s205 = sphi 0, %s205
      %s207 = sphi 0, %s205
      %s208 = sphi 0, %s207
      %s222 = sphi 0, %s208
      %s226 = sphi 0, %s226
      %s228 = sphi 0, %s226
      %s229 = sphi 0, %s228
      %s243 = sphi 0, %s229
      %s251 = sphi 0, %s253
      %s254 = sphi 0, %s251
      %s255 = sphi 0, %s254
      %s271 = sphi 0, %s255
    $region4: #{tpu_custom_call.1} parent=1 // loop_header_branch
      %24 = sbr.rel (%p22) target = $region8
    $region5: #{tpu_custom_call.1} parent=1 // loop_body
      %s26 = ssub.s32 %s21, 1
      %s27 = ssub.s32 %s21, 2
      %s34 = sadd.s32 1, %s29
      %p35 = scmp.ge.s32.totalorder %s34, 2
      %s36 = scalar_select %p35, 0, %s34
      %s37 = sadd.s32 1, %s28
      %s38 = scalar_select %p35, %s37, %s28
      %p39 = scmp.ge.s32.totalorder %s38, 2
      %s40 = scalar_select %p39, 0, %s38
      %s41 = ssub.s32 %s28, %s40
      %s42 = ssub.s32 %s29, %s36
      %s43 = sor.u32 %s41, %s42
      %p44 = scmp.eq.s32.totalorder %s43, 0
      %s46 = sadd.s32 %s45, 1
      %s47 = scalar_select %p44, %s45, %s46
      %p50 = pneg %p44
      %p51 = scmp.eq.s32.totalorder %s21, 3
      %p52 = por %p50, %p51
      %p53 = scmp.ne.s32.totalorder %s45, %s48
      %p54 = scmp.eq.s32.totalorder %s21, 0
      %p55 = por %p53, %p54
      %p56 = scmp.ne.s32.totalorder %s45, %s48
      %p57 = scmp.eq.s32.totalorder %s26, 3
      %p58 = por %p56, %p57
      %p59 = scmp.ne.s32.totalorder %s48, %s49
      %p60 = scmp.eq.s32.totalorder %s26, 0
      %p61 = por %p59, %p60
      %p62 = scmp.ne.s32.totalorder %s48, %s49
      %p63 = scmp.eq.s32.totalorder %s27, 3
      %p64 = por %p62, %p63
      %p66 = scmp.ne.s32.totalorder %s49, %s65
      %p67 = scmp.eq.s32.totalorder %s27, 0
      %p68 = por %p66, %p67
      %s69 = ssub.s32 %s28, %s40
      %p70 = scmp.eq.s32.totalorder %s69, 0
      %s72 = sadd.s32 %s71, 1
      %s73 = scalar_select %p70, %s71, %s72
      %p76 = pneg %p70
      %p77 = scmp.eq.s32.totalorder %s21, 3
      %p78 = por %p76, %p77
      %p79 = scmp.ne.s32.totalorder %s71, %s74
      %p80 = scmp.eq.s32.totalorder %s21, 0
      %p81 = por %p79, %p80
      %p82 = scmp.ne.s32.totalorder %s71, %s74
      %p83 = scmp.eq.s32.totalorder %s26, 3
      %p84 = por %p82, %p83
      %p85 = scmp.ne.s32.totalorder %s74, %s75
      %p86 = scmp.eq.s32.totalorder %s26, 0
      %p87 = por %p85, %p86
      %p88 = scmp.ne.s32.totalorder %s74, %s75
      %p89 = scmp.eq.s32.totalorder %s27, 3
      %p90 = por %p88, %p89
      %p92 = scmp.ne.s32.totalorder %s75, %s91
      %p93 = scmp.eq.s32.totalorder %s27, 0
      %p94 = por %p92, %p93
      %s95 = ssub.s32 %s28, %s40
      %p96 = scmp.eq.s32.totalorder %s95, 0
      %s98 = sadd.s32 %s97, 1
      %s99 = scalar_select %p96, %s97, %s98
      %p102 = pneg %p96
      %p103 = scmp.eq.s32.totalorder %s21, 3
      %p104 = por %p102, %p103
      %p105 = scmp.ne.s32.totalorder %s97, %s100
      %p106 = scmp.eq.s32.totalorder %s21, 0
      %p107 = por %p105, %p106
      %p108 = scmp.ne.s32.totalorder %s97, %s100
      %p109 = scmp.eq.s32.totalorder %s26, 3
      %p110 = por %p108, %p109
      %p111 = scmp.ne.s32.totalorder %s100, %s101
      %p112 = scmp.eq.s32.totalorder %s26, 0
      %p113 = por %p111, %p112
      %p114 = scmp.ne.s32.totalorder %s100, %s101
      %p115 = scmp.eq.s32.totalorder %s27, 3
      %p116 = por %p114, %p115
      %p118 = scmp.ne.s32.totalorder %s101, %s117
      %p119 = scmp.eq.s32.totalorder %s27, 0
      %p120 = por %p118, %p119
      %s122 = sadd.s32 %s121, 1
      %p125 = scmp.eq.s32.totalorder %s21, 3
      %p126 = scmp.ne.s32.totalorder %s121, %s123
      %p127 = scmp.eq.s32.totalorder %s21, 0
      %p128 = por %p126, %p127
      %p129 = scmp.ne.s32.totalorder %s121, %s123
      %p130 = scmp.eq.s32.totalorder %s26, 3
      %p131 = por %p129, %p130
      %p132 = scmp.ne.s32.totalorder %s123, %s124
      %p133 = scmp.eq.s32.totalorder %s26, 0
      %p134 = por %p132, %p133
      %p135 = scmp.ne.s32.totalorder %s123, %s124
      %p136 = scmp.eq.s32.totalorder %s27, 3
      %p137 = por %p135, %p136
      %p139 = scmp.ne.s32.totalorder %s124, %s138
      %p140 = scmp.eq.s32.totalorder %s27, 0
      %p141 = por %p139, %p140
      %s143 = sadd.s32 %s142, 1
      %p146 = scmp.eq.s32.totalorder %s21, 3
      %p147 = scmp.ne.s32.totalorder %s142, %s144
      %p148 = scmp.eq.s32.totalorder %s21, 0
      %p149 = por %p147, %p148
      %p150 = scmp.ne.s32.totalorder %s142, %s144
      %p151 = scmp.eq.s32.totalorder %s26, 3
      %p152 = por %p150, %p151
      %p153 = scmp.ne.s32.totalorder %s144, %s145
      %p154 = scmp.eq.s32.totalorder %s26, 0
      %p155 = por %p153, %p154
      %p156 = scmp.ne.s32.totalorder %s144, %s145
      %p157 = scmp.eq.s32.totalorder %s27, 3
      %p158 = por %p156, %p157
      %p160 = scmp.ne.s32.totalorder %s145, %s159
      %p161 = scmp.eq.s32.totalorder %s27, 0
      %p162 = por %p160, %p161
      %s164 = sadd.s32 %s163, 1
      %p167 = scmp.eq.s32.totalorder %s21, 3
      %p168 = scmp.ne.s32.totalorder %s163, %s165
      %p169 = scmp.eq.s32.totalorder %s21, 0
      %p170 = por %p168, %p169
      %p171 = scmp.ne.s32.totalorder %s163, %s165
      %p172 = scmp.eq.s32.totalorder %s26, 3
      %p173 = por %p171, %p172
      %p174 = scmp.ne.s32.totalorder %s165, %s166
      %p175 = scmp.eq.s32.totalorder %s26, 0
      %p176 = por %p174, %p175
      %p177 = scmp.ne.s32.totalorder %s165, %s166
      %p178 = scmp.eq.s32.totalorder %s27, 3
      %p179 = por %p177, %p178
      %p181 = scmp.ne.s32.totalorder %s166, %s180
      %p182 = scmp.eq.s32.totalorder %s27, 0
      %p183 = por %p181, %p182
      %s185 = sadd.s32 %s184, 1
      %p188 = scmp.eq.s32.totalorder %s21, 3
      %p189 = scmp.ne.s32.totalorder %s184, %s186
      %p190 = scmp.eq.s32.totalorder %s21, 0
      %p191 = por %p189, %p190
      %p192 = scmp.ne.s32.totalorder %s184, %s186
      %p193 = scmp.eq.s32.totalorder %s26, 3
      %p194 = por %p192, %p193
      %p195 = scmp.ne.s32.totalorder %s186, %s187
      %p196 = scmp.eq.s32.totalorder %s26, 0
      %p197 = por %p195, %p196
      %p198 = scmp.ne.s32.totalorder %s186, %s187
      %p199 = scmp.eq.s32.totalorder %s27, 3
      %p200 = por %p198, %p199
      %p202 = scmp.ne.s32.totalorder %s187, %s201
      %p203 = scmp.eq.s32.totalorder %s27, 0
      %p204 = por %p202, %p203
      %s206 = sadd.s32 %s205, 1
      %p209 = scmp.eq.s32.totalorder %s21, 3
      %p210 = scmp.ne.s32.totalorder %s205, %s207
      %p211 = scmp.eq.s32.totalorder %s21, 0
      %p212 = por %p210, %p211
      %p213 = scmp.ne.s32.totalorder %s205, %s207
      %p214 = scmp.eq.s32.totalorder %s26, 3
      %p215 = por %p213, %p214
      %p216 = scmp.ne.s32.totalorder %s207, %s208
      %p217 = scmp.eq.s32.totalorder %s26, 0
      %p218 = por %p216, %p217
      %p219 = scmp.ne.s32.totalorder %s207, %s208
      %p220 = scmp.eq.s32.totalorder %s27, 3
      %p221 = por %p219, %p220
      %p223 = scmp.ne.s32.totalorder %s208, %s222
      %p224 = scmp.eq.s32.totalorder %s27, 0
      %p225 = por %p223, %p224
      %s227 = sadd.s32 %s226, 1
      %p230 = scmp.eq.s32.totalorder %s21, 3
      %p231 = scmp.ne.s32.totalorder %s226, %s228
      %p232 = scmp.eq.s32.totalorder %s21, 0
      %p233 = por %p231, %p232
      %p234 = scmp.ne.s32.totalorder %s226, %s228
      %p235 = scmp.eq.s32.totalorder %s26, 3
      %p236 = por %p234, %p235
      %p237 = scmp.ne.s32.totalorder %s228, %s229
      %p238 = scmp.eq.s32.totalorder %s26, 0
      %p239 = por %p237, %p238
      %p240 = scmp.ne.s32.totalorder %s228, %s229
      %p241 = scmp.eq.s32.totalorder %s27, 3
      %p242 = por %p240, %p241
      %p244 = scmp.ne.s32.totalorder %s229, %s243
      %p245 = scmp.eq.s32.totalorder %s27, 0
      %p246 = por %p244, %p245
      %s247 = ssub.s32 %s28, %s40
      %s248 = ssub.s32 %s29, %s36
      %s249 = sor.u32 %s247, %s248
      %p250 = scmp.eq.s32.totalorder %s249, 0
      %s252 = sadd.s32 %s251, 1
      %s253 = scalar_select %p250, %s251, %s252
      %p256 = pneg %p250
      %p257 = scmp.eq.s32.totalorder %s21, 3
      %p258 = por %p256, %p257
      %p259 = scmp.ne.s32.totalorder %s251, %s254
      %p260 = scmp.eq.s32.totalorder %s21, 0
      %p261 = por %p259, %p260
      %p262 = scmp.ne.s32.totalorder %s251, %s254
      %p263 = scmp.eq.s32.totalorder %s26, 3
      %p264 = por %p262, %p263
      %p265 = scmp.ne.s32.totalorder %s254, %s255
      %p266 = scmp.eq.s32.totalorder %s26, 0
      %p267 = por %p265, %p266
      %p268 = scmp.ne.s32.totalorder %s254, %s255
      %p269 = scmp.eq.s32.totalorder %s27, 3
      %p270 = por %p268, %p269
      %p272 = scmp.ne.s32.totalorder %s255, %s271
      %p273 = scmp.eq.s32.totalorder %s27, 0
      %p274 = por %p272, %p273
      %p275 = scmp.le.s32.totalorder 1, %s21
      %p276 = scmp.lt.s32.totalorder %s21, 5
      %p277 = pnand %p275, %p276
      %p278 = pneg %p277
      // Predicated region
      $region9: #{tpu_custom_call.1} parent=5 // pred_check
        _
      $region10: #{tpu_custom_call.1} parent=5 // pred_check_branch
        %280 = sbr.rel (%p277) target = $region12
      $region11: #{tpu_custom_call.1} parent=5 // pred_region
        %s281 = ssub.s32 %s21, 1
        // Predicated region
        $region13: #{tpu_custom_call.1} parent=11 // pred_check
          %p282 = pneg %p134
        $region14: #{tpu_custom_call.1} parent=11 // pred_check_branch
          %284 = sbr.rel (%p282) target = $region16
        $region15: #{tpu_custom_call.1} parent=11 // pred_region
          _
        $region16: #{tpu_custom_call.1} parent=11 // pred_fallthru
          _
        // Predicated region
        $region17: #{tpu_custom_call.1} parent=11 // pred_check
          %p285 = pneg %p155
        $region18: #{tpu_custom_call.1} parent=11 // pred_check_branch
          %287 = sbr.rel (%p285) target = $region20
        $region19: #{tpu_custom_call.1} parent=11 // pred_region
          _
        $region20: #{tpu_custom_call.1} parent=11 // pred_fallthru
          _
        // Predicated region
        $region21: #{tpu_custom_call.1} parent=11 // pred_check
          %p288 = pneg %p176
        $region22: #{tpu_custom_call.1} parent=11 // pred_check_branch
          %290 = sbr.rel (%p288) target = $region24
        $region23: #{tpu_custom_call.1} parent=11 // pred_region
          _
        $region24: #{tpu_custom_call.1} parent=11 // pred_fallthru
          _
        // Predicated region
        $region25: #{tpu_custom_call.1} parent=11 // pred_check
          %p291 = pneg %p197
        $region26: #{tpu_custom_call.1} parent=11 // pred_check_branch
          %293 = sbr.rel (%p291) target = $region28
        $region27: #{tpu_custom_call.1} parent=11 // pred_region
          _
        $region28: #{tpu_custom_call.1} parent=11 // pred_fallthru
          _
        // Predicated region
        $region29: #{tpu_custom_call.1} parent=11 // pred_check
          %p294 = pneg %p218
        $region30: #{tpu_custom_call.1} parent=11 // pred_check_branch
          %296 = sbr.rel (%p294) target = $region32
        $region31: #{tpu_custom_call.1} parent=11 // pred_region
          _
        $region32: #{tpu_custom_call.1} parent=11 // pred_fallthru
          _
        // Predicated region
        $region33: #{tpu_custom_call.1} parent=11 // pred_check
          %p297 = pneg %p239
        $region34: #{tpu_custom_call.1} parent=11 // pred_check_branch
          %299 = sbr.rel (%p297) target = $region36
        $region35: #{tpu_custom_call.1} parent=11 // pred_region
          _
        $region36: #{tpu_custom_call.1} parent=11 // pred_fallthru
          _
      $region12: #{tpu_custom_call.1} parent=5 // pred_fallthru
        _
      %p300 = scmp.lt.s32.totalorder %s21, 4
      // Predicated region
      $region37: #{tpu_custom_call.1} parent=5 // pred_check
        %p301 = pneg %p300
      $region38: #{tpu_custom_call.1} parent=5 // pred_check_branch
        %303 = sbr.rel (%p301) target = $region40
      $region39: #{tpu_custom_call.1} parent=5 // pred_region
        // Predicated region
        $region41: #{tpu_custom_call.1} parent=39 // pred_check
          %p304 = pneg %p55
        $region42: #{tpu_custom_call.1} parent=39 // pred_check_branch
          %306 = sbr.rel (%p304) target = $region44
        $region43: #{tpu_custom_call.1} parent=39 // pred_region
          %s307 = sand.u32 %s45, 1
          %s308 = scalar_lea.sflag [#allocation3], %s307
          %s309 = sand.u32 %s45, 1
          %s310 = smul.addr %s309, 128
          %s311 = scalar_lea.vmem [#allocation2], %s310
          %s313 = ssub.s32 2048, 2048
          %314 = vsyncadd %s308, %s313
          %s315 = smul.addr %s28, 32
          %s316 = sadd.s32 %s29, %s315
          %s317 = smul.addr %s316, 128
          %s318 = scalar_lea.hbm %s0, %s317
          %s319 = sshll.u32 %s311, 4
          %s320 = int_to_ptr.vmem [resolvable:$true] %s319
          %325 = dma.hbm_to_vmem [thread:$0]  %s318, 2048, %s320, %s308, 256, 128, 8
        $region44: #{tpu_custom_call.1} parent=39 // pred_fallthru
          _
        // Predicated region
        $region45: #{tpu_custom_call.1} parent=39 // pred_check
          %p326 = pneg %p81
        $region46: #{tpu_custom_call.1} parent=39 // pred_check_branch
          %328 = sbr.rel (%p326) target = $region48
        $region47: #{tpu_custom_call.1} parent=39 // pred_region
          %p329 = scmp.lt.s32.totalorder %s28, 1
          %s330 = scalar_select %p329, %s28, 1
          %s331 = smul.addr %s330, 4
          %s332 = scalar_lea.vmem %s1, %s331
        $region48: #{tpu_custom_call.1} parent=39 // pred_fallthru
          _
        // Predicated region
        $region49: #{tpu_custom_call.1} parent=39 // pred_check
          %p333 = pneg %p107
        $region50: #{tpu_custom_call.1} parent=39 // pred_check_branch
          %335 = sbr.rel (%p333) target = $region52
        $region51: #{tpu_custom_call.1} parent=39 // pred_region
          %p336 = scmp.lt.s32.totalorder %s28, 1
          %s337 = scalar_select %p336, %s28, 1
          %s338 = smul.addr %s337, 4
          %s339 = scalar_lea.vmem %s2, %s338
        $region52: #{tpu_custom_call.1} parent=39 // pred_fallthru
          _
      $region40: #{tpu_custom_call.1} parent=5 // pred_fallthru
        _
      %p340 = scmp.le.s32.totalorder 1, %s21
      %p341 = scmp.lt.s32.totalorder %s21, 5
      %p342 = pnand %p340, %p341
      %p343 = pneg %p342
      // Predicated region
      $region53: #{tpu_custom_call.1} parent=5 // pred_check
        _
      $region54: #{tpu_custom_call.1} parent=5 // pred_check_branch
        %345 = sbr.rel (%p342) target = $region56
      $region55: #{tpu_custom_call.1} parent=5 // pred_region
        %s346 = ssub.s32 %s21, 1
        %s347 = sand.u32 %s48, 1
        %s348 = scalar_lea.sflag [#allocation3], %s347
        %s349 = sand.u32 %s48, 1
        %s350 = smul.addr %s349, 128
        %s351 = scalar_lea.vmem [#allocation2], %s350
        // Predicated region
        $region57: #{tpu_custom_call.1} parent=55 // pred_check
          %p352 = pneg %p61
        $region58: #{tpu_custom_call.1} parent=55 // pred_check_branch
          %354 = sbr.rel (%p352) target = $region60
        $region59: #{tpu_custom_call.1} parent=55 // pred_region
          %355 = dma.done %s348, 2048
        $region60: #{tpu_custom_call.1} parent=55 // pred_fallthru
          _
        %s356 = sand.u32 %s48, 1
        %s357 = scalar_lea.sflag [#allocation3], %s356
        %s358 = sand.u32 %s48, 1
        %s359 = smul.addr %s358, 128
        %s360 = scalar_lea.vmem [#allocation2], %s359
        %p361 = pneg %p61
        %p362 = pneg %p58
        %p363 = scmp.lt.s32.totalorder %s30, 1
        %s364 = scalar_select %p363, %s30, 1
        %s365 = smul.addr %s364, 4
        %s366 = scalar_lea.vmem %s1, %s365
        %p367 = pneg %p87
        %p368 = pneg %p84
        %p369 = scmp.lt.s32.totalorder %s30, 1
        %s370 = scalar_select %p369, %s30, 1
        %s371 = smul.addr %s370, 4
        %s372 = scalar_lea.vmem %s2, %s371
        %p373 = pneg %p113
        %p374 = pneg %p110
        %p375 = pneg %p134
        %p376 = pneg %p131
        %p377 = pneg %p155
        %p378 = pneg %p152
        %p379 = pneg %p176
        %p380 = pneg %p173
        %p381 = pneg %p197
        %p382 = pneg %p194
        %p383 = pneg %p218
        %p384 = pneg %p215
        %p385 = pneg %p239
        %p386 = pneg %p236
        %p387 = pneg %p267
        %p388 = pneg %p264
        %s389 = sand.u32 %s254, 1
        %s390 = scalar_lea.sflag [#allocation4], %s389
        %s391 = sand.u32 %s254, 1
        %s392 = smul.addr %s391, 128
        %s393 = scalar_lea.vmem [#allocation5], %s392
        %p394 = scmp.lt.s32.totalorder %s30, 1
        %s395 = scalar_select %p394, %s30, 1
        %s396 = smul.addr %s395, 4
        %s397 = scalar_lea.vmem %s1, %s396
        %p398 = scmp.lt.s32.totalorder %s30, 1
        %s399 = scalar_select %p398, %s30, 1
        %s400 = smul.addr %s399, 4
        %s401 = scalar_lea.vmem %s2, %s400
        %v403 = vld [vmem:[%s351] sm:$0xff]
        %v404 = vld [vmem:[%s351 + $0x8] sm:$0xff]
        %v405 = vld [vmem:[%s351 + $0x10] sm:$0xff]
        %v406 = vld [vmem:[%s351 + $0x18] sm:$0xff]
        %v407 = vld [vmem:[%s351 + $0x20] sm:$0xff]
        %v408 = vld [vmem:[%s351 + $0x28] sm:$0xff]
        %v409 = vld [vmem:[%s351 + $0x30] sm:$0xff]
        %v410 = vld [vmem:[%s351 + $0x38] sm:$0xff]
        %v411 = vld [vmem:[%s351 + $0x40] sm:$0xff]
        %v412 = vld [vmem:[%s351 + $0x48] sm:$0xff]
        %v413 = vld [vmem:[%s351 + $0x50] sm:$0xff]
        %v414 = vld [vmem:[%s351 + $0x58] sm:$0xff]
        %v415 = vld [vmem:[%s351 + $0x60] sm:$0xff]
        %v416 = vld [vmem:[%s351 + $0x68] sm:$0xff]
        %v417 = vld [vmem:[%s351 + $0x70] sm:$0xff]
        %v418 = vld [vmem:[%s351 + $0x78] sm:$0xff]
        %419 = vxpose.xlu0.b32.start [1/16] %v403, 128
        %420 = vxpose.xlu0.b32.cont [2/16] %v404, 128
        %421 = vxpose.xlu0.b32.cont [3/16] %v405, 128
        %422 = vxpose.xlu0.b32.cont [4/16] %v406, 128
        %423 = vxpose.xlu0.b32.cont [5/16] %v407, 128
        %424 = vxpose.xlu0.b32.cont [6/16] %v408, 128
        %425 = vxpose.xlu0.b32.cont [7/16] %v409, 128
        %426 = vxpose.xlu0.b32.cont [8/16] %v410, 128
        %427 = vxpose.xlu0.b32.cont [9/16] %v411, 128
        %428 = vxpose.xlu0.b32.cont [10/16] %v412, 128
        %429 = vxpose.xlu0.b32.cont [11/16] %v413, 128
        %430 = vxpose.xlu0.b32.cont [12/16] %v414, 128
        %431 = vxpose.xlu0.b32.cont [13/16] %v415, 128
        %432 = vxpose.xlu0.b32.cont [14/16] %v416, 128
        %433 = vxpose.xlu0.b32.cont [15/16] %v417, 128
        %434 = vxpose.xlu0.b32.end [16/16] %v418, 128
        %v435 = vpop.trf.xlu0
        %v436 = vpop.trf.xlu0
        %v437 = vpop.trf.xlu0
        %v438 = vpop.trf.xlu0
        %v439 = vpop.trf.xlu0
        %v440 = vpop.trf.xlu0
        %v441 = vpop.trf.xlu0
        %v442 = vpop.trf.xlu0
        %v443 = vpop.trf.xlu0
        %v444 = vpop.trf.xlu0
        %v445 = vpop.trf.xlu0
        %v446 = vpop.trf.xlu0
        %v447 = vpop.trf.xlu0
        %v448 = vpop.trf.xlu0
        %v449 = vpop.trf.xlu0
        %v450 = vpop.trf.xlu0
        %v451 = vpack.c.bf16 %v436, %v435
        %v452 = vpack.c.bf16 %v438, %v437
        %v453 = vpack.c.bf16 %v440, %v439
        %v454 = vpack.c.bf16 %v442, %v441
        %v455 = vpack.c.bf16 %v444, %v443
        %v456 = vpack.c.bf16 %v446, %v445
        %v457 = vpack.c.bf16 %v448, %v447
        %v458 = vpack.c.bf16 %v450, %v449
        %v459 = vld [vmem:[%s3] sm:$0xf]
        %v460 = vld [vmem:[%s3 + $0x4] sm:$0xf]
        %v461 = vld [vmem:[%s3 + $0x8] sm:$0xf]
        %v462 = vld [vmem:[%s3 + $0xc] sm:$0xf]
        %v463 = vld [vmem:[%s3 + $0x10] sm:$0xf]
        %v464 = vld [vmem:[%s3 + $0x14] sm:$0xf]
        %v465 = vld [vmem:[%s3 + $0x18] sm:$0xf]
        %v466 = vld [vmem:[%s3 + $0x1c] sm:$0xf]
        %v467 = vld [vmem:[%s3 + $0x20] sm:$0xf]
        %v468 = vld [vmem:[%s3 + $0x24] sm:$0xf]
        %v469 = vld [vmem:[%s3 + $0x28] sm:$0xf]
        %v470 = vld [vmem:[%s3 + $0x2c] sm:$0xf]
        %v471 = vld [vmem:[%s3 + $0x30] sm:$0xf]
        %v472 = vld [vmem:[%s3 + $0x34] sm:$0xf]
        %v473 = vld [vmem:[%s3 + $0x38] sm:$0xf]
        %v474 = vld [vmem:[%s3 + $0x3c] sm:$0xf]
        %v475 = vld [vmem:[%s4] sm:$0x1]
        %v477 = vlaneseq
        %v478 = vshrl.u32 %v477, 7
        %v479 = vsub.s32 0, %v478
        %v480 = vrot.slane %v475, %v479
        %v498 = vunpack.c.l.b16 %v459
        %v499 = vunpack.c.l.b16 %v460
        %v500 = vunpack.c.l.b16 %v461
        %v501 = vunpack.c.l.b16 %v462
        %v502 = vunpack.c.l.b16 %v463
        %v503 = vunpack.c.l.b16 %v464
        %v504 = vunpack.c.l.b16 %v465
        %v505 = vunpack.c.l.b16 %v466
        %v506 = vunpack.c.l.b16 %v467
        %v507 = vunpack.c.l.b16 %v468
        %v508 = vunpack.c.l.b16 %v469
        %v509 = vunpack.c.l.b16 %v470
        %v510 = vunpack.c.l.b16 %v471
        %v511 = vunpack.c.l.b16 %v472
        %v512 = vunpack.c.l.b16 %v473
        %v513 = vunpack.c.l.b16 %v474
        %v514 = vpack.c.b16 %v499, %v498
        %v515 = vpack.c.b16 %v501, %v500
        %v516 = vpack.c.b16 %v503, %v502
        %v517 = vpack.c.b16 %v505, %v504
        %v518 = vpack.c.b16 %v507, %v506
        %v519 = vpack.c.b16 %v509, %v508
        %v520 = vpack.c.b16 %v511, %v510
        %v521 = vpack.c.b16 %v513, %v512
        %530 = vmatprep.subr.bf16.mxu0 0
        %531 = vmatpush1.bf16.msra.mxu0 %v514
        %532 = vmatprep.subr.bf16.mxu0 0
        %533 = vmatpush1.bf16.msra.mxu0 %v515
        %534 = vmatprep.subr.bf16.mxu0 0
        %535 = vmatpush1.bf16.msra.mxu0 %v516
        %536 = vmatprep.subr.bf16.mxu0 0
        %537 = vmatpush1.bf16.msra.mxu0 %v517
        %538 = vmatprep.subr.bf16.mxu0 0
        %539 = vmatpush1.bf16.msra.mxu0 %v518
        %540 = vmatprep.subr.bf16.mxu0 0
        %541 = vmatpush1.bf16.msra.mxu0 %v519
        %542 = vmatprep.subr.bf16.mxu0 0
        %543 = vmatpush1.bf16.msra.mxu0 %v520
        %544 = vmatprep.subr.bf16.mxu0 0
        %545 = vmatpush1.bf16.msra.mxu0 %v521
        %546 = vmatprep.subr.bf16.mxu0 0
        %547 = vmatpush1.bf16.msra.mxu0 0
        %548 = vmatprep.subr.bf16.mxu0 0
        %549 = vmatpush1.bf16.msra.mxu0 0
        %550 = vmatprep.subr.bf16.mxu0 0
        %551 = vmatpush1.bf16.msra.mxu0 0
        %552 = vmatprep.subr.bf16.mxu0 0
        %553 = vmatpush1.bf16.msra.mxu0 0
        %554 = vmatprep.subr.bf16.mxu0 0
        %555 = vmatpush1.bf16.msra.mxu0 0
        %556 = vmatprep.subr.bf16.mxu0 0
        %557 = vmatpush1.bf16.msra.mxu0 0
        %558 = vmatprep.subr.bf16.mxu0 0
        %559 = vmatpush1.bf16.msra.mxu0 0
        %560 = vmatprep.subr.bf16.mxu0 0
        %561 = vmatpush1.bf16.msra.mxu0 0
        %562 = vmatprep.mubr.bf16.mxu0 0
        %563 = vmatmul.mubr.bf16.gmra.mrb[0].mxu0 %v451
        %v564 = vpop.f32.mrb[0].mxu0
        %v565 = vadd.f32 %v480, %v564
        %v566 = vpop.f32.mrb[0].mxu0
        %v567 = vpop.f32.mrb[0].mxu0
        %v568 = vadd.f32 %v480, %v567
        %v569 = vpop.f32.mrb[0].mxu0
        %570 = vmatprep.mubr.bf16.mxu0 0
        %571 = vmatmul.mubr.bf16.gmra.mrb[0].mxu0 %v452
        %v572 = vpop.f32.mrb[0].mxu0
        %v573 = vadd.f32 %v480, %v572
        %v574 = vpop.f32.mrb[0].mxu0
        %v575 = vpop.f32.mrb[0].mxu0
        %v576 = vadd.f32 %v480, %v575
        %v577 = vpop.f32.mrb[0].mxu0
        %578 = vmatprep.mubr.bf16.mxu0 0
        %579 = vmatmul.mubr.bf16.gmra.mrb[0].mxu0 %v453
        %v580 = vpop.f32.mrb[0].mxu0
        %v581 = vadd.f32 %v480, %v580
        %v582 = vpop.f32.mrb[0].mxu0
        %v583 = vpop.f32.mrb[0].mxu0
        %v584 = vadd.f32 %v480, %v583
        %v585 = vpop.f32.mrb[0].mxu0
        %586 = vmatprep.mubr.bf16.mxu0 0
        %587 = vmatmul.mubr.bf16.gmra.mrb[0].mxu0 %v454
        %v588 = vpop.f32.mrb[0].mxu0
        %v589 = vadd.f32 %v480, %v588
        %v590 = vpop.f32.mrb[0].mxu0
        %v591 = vpop.f32.mrb[0].mxu0
        %v592 = vadd.f32 %v480, %v591
        %v593 = vpop.f32.mrb[0].mxu0
        %594 = vmatprep.mubr.bf16.mxu0 0
        %595 = vmatmul.mubr.bf16.gmra.mrb[0].mxu0 %v455
        %v596 = vpop.f32.mrb[0].mxu0
        %v597 = vadd.f32 %v480, %v596
        %v598 = vpop.f32.mrb[0].mxu0
        %v599 = vpop.f32.mrb[0].mxu0
        %v600 = vadd.f32 %v480, %v599
        %v601 = vpop.f32.mrb[0].mxu0
        %602 = vmatprep.mubr.bf16.mxu0 0
        %603 = vmatmul.mubr.bf16.gmra.mrb[0].mxu0 %v456
        %v604 = vpop.f32.mrb[0].mxu0
        %v605 = vadd.f32 %v480, %v604
        %v606 = vpop.f32.mrb[0].mxu0
        %v607 = vpop.f32.mrb[0].mxu0
        %v608 = vadd.f32 %v480, %v607
        %v609 = vpop.f32.mrb[0].mxu0
        %610 = vmatprep.mubr.bf16.mxu0 0
        %611 = vmatmul.mubr.bf16.gmra.mrb[0].mxu0 %v457
        %v612 = vpop.f32.mrb[0].mxu0
        %v613 = vadd.f32 %v480, %v612
        %v614 = vpop.f32.mrb[0].mxu0
        %v615 = vpop.f32.mrb[0].mxu0
        %v616 = vadd.f32 %v480, %v615
        %v617 = vpop.f32.mrb[0].mxu0
        %618 = vmatprep.mubr.bf16.mxu0 0
        %619 = vmatmul.mubr.bf16.gmra.mrb[0].mxu0 %v458
        %v620 = vpop.f32.mrb[0].mxu0
        %v621 = vadd.f32 %v480, %v620
        %v622 = vpop.f32.mrb[0].mxu0
        %v623 = vpop.f32.mrb[0].mxu0
        %v624 = vadd.f32 %v480, %v623
        %v625 = vpop.f32.mrb[0].mxu0
        %626 = vdwg.mxu0
        %v627 = vmax.f32 %v565, 0.0
        %v628 = vmax.f32 %v568, 0.0
        %v629 = vmax.f32 %v573, 0.0
        %v630 = vmax.f32 %v576, 0.0
        %v631 = vmax.f32 %v581, 0.0
        %v632 = vmax.f32 %v584, 0.0
        %v633 = vmax.f32 %v589, 0.0
        %v634 = vmax.f32 %v592, 0.0
        %v635 = vmax.f32 %v597, 0.0
        %v636 = vmax.f32 %v600, 0.0
        %v637 = vmax.f32 %v605, 0.0
        %v638 = vmax.f32 %v608, 0.0
        %v639 = vmax.f32 %v613, 0.0
        %v640 = vmax.f32 %v616, 0.0
        %v641 = vmax.f32 %v621, 0.0
        %v642 = vmax.f32 %v624, 0.0
        %v643 = vpack.c.bf16 %v628, %v627
        %v644 = vpack.c.bf16 %v630, %v629
        %v645 = vpack.c.bf16 %v632, %v631
        %v646 = vpack.c.bf16 %v634, %v633
        %v647 = vpack.c.bf16 %v636, %v635
        %v648 = vpack.c.bf16 %v638, %v637
        %v649 = vpack.c.bf16 %v640, %v639
        %v650 = vpack.c.bf16 %v642, %v641
        %v651 = vld [vmem:[%s5] sm:$0xf]
        %v652 = vld [vmem:[%s5 + $0x4] sm:$0xf]
        %v653 = vld [vmem:[%s5 + $0x8] sm:$0xf]
        %v654 = vld [vmem:[%s5 + $0xc] sm:$0xf]
        %v655 = vld [vmem:[%s5 + $0x10] sm:$0xf]
        %v656 = vld [vmem:[%s5 + $0x14] sm:$0xf]
        %v657 = vld [vmem:[%s5 + $0x18] sm:$0xf]
        %v658 = vld [vmem:[%s5 + $0x1c] sm:$0xf]
        %v659 = vld [vmem:[%s6] sm:$0x1]
        %v661 = vlaneseq
        %v662 = vshrl.u32 %v661, 7
        %v663 = vsub.s32 0, %v662
        %v664 = vrot.slane %v659, %v663
        %v674 = vunpack.c.l.b16 %v651
        %v675 = vunpack.c.l.b16 %v652
        %v676 = vunpack.c.l.b16 %v653
        %v677 = vunpack.c.l.b16 %v654
        %v678 = vunpack.c.l.b16 %v655
        %v679 = vunpack.c.l.b16 %v656
        %v680 = vunpack.c.l.b16 %v657
        %v681 = vunpack.c.l.b16 %v658
        %v682 = vpack.c.b16 %v675, %v674
        %v683 = vpack.c.b16 %v677, %v676
        %v684 = vpack.c.b16 %v679, %v678
        %v685 = vpack.c.b16 %v681, %v680
        %vm690 = vcmask 523264
        %v692 = vsel %vm690, %v643, 0
        %v695 = vsel %vm690, %v644, 0
        %v698 = vsel %vm690, %v645, 0
        %v701 = vsel %vm690, %v646, 0
        %v704 = vsel %vm690, %v647, 0
        %v707 = vsel %vm690, %v648, 0
        %v710 = vsel %vm690, %v649, 0
        %v713 = vsel %vm690, %v650, 0
        %715 = vmatprep.subr.bf16.mxu0 0
        %716 = vmatpush1.bf16.msra.mxu0 %v682
        %717 = vmatprep.subr.bf16.mxu0 0
        %718 = vmatpush1.bf16.msra.mxu0 %v683
        %719 = vmatprep.subr.bf16.mxu0 0
        %720 = vmatpush1.bf16.msra.mxu0 %v684
        %721 = vmatprep.subr.bf16.mxu0 0
        %722 = vmatpush1.bf16.msra.mxu0 %v685
        %723 = vmatprep.subr.bf16.mxu0 0
        %724 = vmatpush1.bf16.msra.mxu0 0
        %725 = vmatprep.subr.bf16.mxu0 0
        %726 = vmatpush1.bf16.msra.mxu0 0
        %727 = vmatprep.subr.bf16.mxu0 0
        %728 = vmatpush1.bf16.msra.mxu0 0
        %729 = vmatprep.subr.bf16.mxu0 0
        %730 = vmatpush1.bf16.msra.mxu0 0
        %731 = vmatprep.subr.bf16.mxu0 0
        %732 = vmatpush1.bf16.msra.mxu0 0
        %733 = vmatprep.subr.bf16.mxu0 0
        %734 = vmatpush1.bf16.msra.mxu0 0
        %735 = vmatprep.subr.bf16.mxu0 0
        %736 = vmatpush1.bf16.msra.mxu0 0
        %737 = vmatprep.subr.bf16.mxu0 0
        %738 = vmatpush1.bf16.msra.mxu0 0
        %739 = vmatprep.subr.bf16.mxu0 0
        %740 = vmatpush1.bf16.msra.mxu0 0
        %741 = vmatprep.subr.bf16.mxu0 0
        %742 = vmatpush1.bf16.msra.mxu0 0
        %743 = vmatprep.subr.bf16.mxu0 0
        %744 = vmatpush1.bf16.msra.mxu0 0
        %745 = vmatprep.subr.bf16.mxu0 0
        %746 = vmatpush1.bf16.msra.mxu0 0
        %747 = vmatprep.mubr.bf16.mxu0 0
        %748 = vmatmul.mubr.bf16.gmra.mrb[0].mxu0 %v692
        %v749 = vpop.f32.mrb[0].mxu0
        %v750 = vadd.f32 %v664, %v749
        %v751 = vpop.f32.mrb[0].mxu0
        %v752 = vpop.f32.mrb[0].mxu0
        %v753 = vadd.f32 %v664, %v752
        %v754 = vpop.f32.mrb[0].mxu0
        %755 = vmatprep.mubr.bf16.mxu0 0
        %756 = vmatmul.mubr.bf16.gmra.mrb[0].mxu0 %v695
        %v757 = vpop.f32.mrb[0].mxu0
        %v758 = vadd.f32 %v664, %v757
        %v759 = vpop.f32.mrb[0].mxu0
        %v760 = vpop.f32.mrb[0].mxu0
        %v761 = vadd.f32 %v664, %v760
        %v762 = vpop.f32.mrb[0].mxu0
        %763 = vmatprep.mubr.bf16.mxu0 0
        %764 = vmatmul.mubr.bf16.gmra.mrb[0].mxu0 %v698
        %v765 = vpop.f32.mrb[0].mxu0
        %v766 = vadd.f32 %v664, %v765
        %v767 = vpop.f32.mrb[0].mxu0
        %v768 = vpop.f32.mrb[0].mxu0
        %v769 = vadd.f32 %v664, %v768
        %v770 = vpop.f32.mrb[0].mxu0
        %771 = vmatprep.mubr.bf16.mxu0 0
        %772 = vmatmul.mubr.bf16.gmra.mrb[0].mxu0 %v701
        %v773 = vpop.f32.mrb[0].mxu0
        %v774 = vadd.f32 %v664, %v773
        %v775 = vpop.f32.mrb[0].mxu0
        %v776 = vpop.f32.mrb[0].mxu0
        %v777 = vadd.f32 %v664, %v776
        %v778 = vpop.f32.mrb[0].mxu0
        %779 = vmatprep.mubr.bf16.mxu0 0
        %780 = vmatmul.mubr.bf16.gmra.mrb[0].mxu0 %v704
        %v781 = vpop.f32.mrb[0].mxu0
        %v782 = vadd.f32 %v664, %v781
        %v783 = vpop.f32.mrb[0].mxu0
        %v784 = vpop.f32.mrb[0].mxu0
        %v785 = vadd.f32 %v664, %v784
        %v786 = vpop.f32.mrb[0].mxu0
        %787 = vmatprep.mubr.bf16.mxu0 0
        %788 = vmatmul.mubr.bf16.gmra.mrb[0].mxu0 %v707
        %v789 = vpop.f32.mrb[0].mxu0
        %v790 = vadd.f32 %v664, %v789
        %v791 = vpop.f32.mrb[0].mxu0
        %v792 = vpop.f32.mrb[0].mxu0
        %v793 = vadd.f32 %v664, %v792
        %v794 = vpop.f32.mrb[0].mxu0
        %795 = vmatprep.mubr.bf16.mxu0 0
        %796 = vmatmul.mubr.bf16.gmra.mrb[0].mxu0 %v710
        %v797 = vpop.f32.mrb[0].mxu0
        %v798 = vadd.f32 %v664, %v797
        %v799 = vpop.f32.mrb[0].mxu0
        %v800 = vpop.f32.mrb[0].mxu0
        %v801 = vadd.f32 %v664, %v800
        %v802 = vpop.f32.mrb[0].mxu0
        %803 = vmatprep.mubr.bf16.mxu0 0
        %804 = vmatmul.mubr.bf16.gmra.mrb[0].mxu0 %v713
        %v805 = vpop.f32.mrb[0].mxu0
        %v806 = vadd.f32 %v664, %v805
        %v807 = vpop.f32.mrb[0].mxu0
        %v808 = vpop.f32.mrb[0].mxu0
        %v809 = vadd.f32 %v664, %v808
        %v810 = vpop.f32.mrb[0].mxu0
        %811 = vdwg.mxu0
        %v812 = vmax.f32 %v750, 0.0
        %v813 = vmax.f32 %v753, 0.0
        %v814 = vmax.f32 %v758, 0.0
        %v815 = vmax.f32 %v761, 0.0
        %v816 = vmax.f32 %v766, 0.0
        %v817 = vmax.f32 %v769, 0.0
        %v818 = vmax.f32 %v774, 0.0
        %v819 = vmax.f32 %v777, 0.0
        %v820 = vmax.f32 %v782, 0.0
        %v821 = vmax.f32 %v785, 0.0
        %v822 = vmax.f32 %v790, 0.0
        %v823 = vmax.f32 %v793, 0.0
        %v824 = vmax.f32 %v798, 0.0
        %v825 = vmax.f32 %v801, 0.0
        %v826 = vmax.f32 %v806, 0.0
        %v827 = vmax.f32 %v809, 0.0
        %v828 = vld [vmem:[%s397] sm:$0xf]
        %v829 = vld [vmem:[%s401] sm:$0xf]
        %v830 = vpack.c.bf16 %v813, %v812
        %v831 = vpack.c.bf16 %v815, %v814
        %v832 = vpack.c.bf16 %v817, %v816
        %v833 = vpack.c.bf16 %v819, %v818
        %v834 = vpack.c.bf16 %v821, %v820
        %v835 = vpack.c.bf16 %v823, %v822
        %v836 = vpack.c.bf16 %v825, %v824
        %v837 = vpack.c.bf16 %v827, %v826
        %v839 = vsel %vm690, %v830, 0
        %v842 = vsel %vm690, %v831, 0
        %v845 = vsel %vm690, %v832, 0
        %v848 = vsel %vm690, %v833, 0
        %v851 = vsel %vm690, %v834, 0
        %v854 = vsel %vm690, %v835, 0
        %v857 = vsel %vm690, %v836, 0
        %v860 = vsel %vm690, %v837, 0
        %v863 = vsel %vm690, %v828, 0
        %865 = vmatprep.subr.bf16.mxu0 0
        %866 = vmatpush1.bf16.xpose.msra.mxu0 %v863
        %867 = vmatprep.subr.bf16.mxu0 0
        %868 = vmatpush1.bf16.xpose.msra.mxu0 0
        %869 = vmatprep.subr.bf16.mxu0 0
        %870 = vmatpush1.bf16.xpose.msra.mxu0 0
        %871 = vmatprep.subr.bf16.mxu0 0
        %872 = vmatpush1.bf16.xpose.msra.mxu0 0
        %873 = vmatprep.subr.bf16.mxu0 0
        %874 = vmatpush1.bf16.xpose.msra.mxu0 0
        %875 = vmatprep.subr.bf16.mxu0 0
        %876 = vmatpush1.bf16.xpose.msra.mxu0 0
        %877 = vmatprep.subr.bf16.mxu0 0
        %878 = vmatpush1.bf16.xpose.msra.mxu0 0
        %879 = vmatprep.subr.bf16.mxu0 0
        %880 = vmatpush1.bf16.xpose.msra.mxu0 0
        %881 = vmatprep.subr.bf16.mxu0 0
        %882 = vmatpush1.bf16.xpose.msra.mxu0 0
        %883 = vmatprep.subr.bf16.mxu0 0
        %884 = vmatpush1.bf16.xpose.msra.mxu0 0
        %885 = vmatprep.subr.bf16.mxu0 0
        %886 = vmatpush1.bf16.xpose.msra.mxu0 0
        %887 = vmatprep.subr.bf16.mxu0 0
        %888 = vmatpush1.bf16.xpose.msra.mxu0 0
        %889 = vmatprep.subr.bf16.mxu0 0
        %890 = vmatpush1.bf16.xpose.msra.mxu0 0
        %891 = vmatprep.subr.bf16.mxu0 0
        %892 = vmatpush1.bf16.xpose.msra.mxu0 0
        %893 = vmatprep.subr.bf16.mxu0 0
        %894 = vmatpush1.bf16.xpose.msra.mxu0 0
        %895 = vmatprep.subr.bf16.mxu0 0
        %896 = vmatpush1.bf16.xpose.msra.mxu0 0
        %897 = vmatprep.mubr.bf16.mxu0 0
        %898 = vmatmul.mubr.bf16.gmra.mrb[0].mxu0 %v839
        %v899 = vpop.f32.mrb[0].mxu0
        %v900 = vadd.f32 0.0, %v899
        %v901 = vpop.f32.mrb[0].mxu0
        %v902 = vpop.f32.mrb[0].mxu0
        %v903 = vadd.f32 0.0, %v902
        %v904 = vpop.f32.mrb[0].mxu0
        %905 = vmatprep.mubr.bf16.mxu0 0
        %906 = vmatmul.mubr.bf16.gmra.mrb[0].mxu0 %v842
        %v907 = vpop.f32.mrb[0].mxu0
        %v908 = vadd.f32 0.0, %v907
        %v909 = vpop.f32.mrb[0].mxu0
        %v910 = vpop.f32.mrb[0].mxu0
        %v911 = vadd.f32 0.0, %v910
        %v912 = vpop.f32.mrb[0].mxu0
        %913 = vmatprep.mubr.bf16.mxu0 0
        %914 = vmatmul.mubr.bf16.gmra.mrb[0].mxu0 %v845
        %v915 = vpop.f32.mrb[0].mxu0
        %v916 = vadd.f32 0.0, %v915
        %v917 = vpop.f32.mrb[0].mxu0
        %v918 = vpop.f32.mrb[0].mxu0
        %v919 = vadd.f32 0.0, %v918
        %v920 = vpop.f32.mrb[0].mxu0
        %921 = vmatprep.mubr.bf16.mxu0 0
        %922 = vmatmul.mubr.bf16.gmra.mrb[0].mxu0 %v848
        %v923 = vpop.f32.mrb[0].mxu0
        %v924 = vadd.f32 0.0, %v923
        %v925 = vpop.f32.mrb[0].mxu0
        %v926 = vpop.f32.mrb[0].mxu0
        %v927 = vadd.f32 0.0, %v926
        %v928 = vpop.f32.mrb[0].mxu0
        %929 = vmatprep.mubr.bf16.mxu0 0
        %930 = vmatmul.mubr.bf16.gmra.mrb[0].mxu0 %v851
        %v931 = vpop.f32.mrb[0].mxu0
        %v932 = vadd.f32 0.0, %v931
        %v933 = vpop.f32.mrb[0].mxu0
        %v934 = vpop.f32.mrb[0].mxu0
        %v935 = vadd.f32 0.0, %v934
        %v936 = vpop.f32.mrb[0].mxu0
        %937 = vmatprep.mubr.bf16.mxu0 0
        %938 = vmatmul.mubr.bf16.gmra.mrb[0].mxu0 %v854
        %v939 = vpop.f32.mrb[0].mxu0
        %v940 = vadd.f32 0.0, %v939
        %v941 = vpop.f32.mrb[0].mxu0
        %v942 = vpop.f32.mrb[0].mxu0
        %v943 = vadd.f32 0.0, %v942
        %v944 = vpop.f32.mrb[0].mxu0
        %945 = vmatprep.mubr.bf16.mxu0 0
        %946 = vmatmul.mubr.bf16.gmra.mrb[0].mxu0 %v857
        %v947 = vpop.f32.mrb[0].mxu0
        %v948 = vadd.f32 0.0, %v947
        %v949 = vpop.f32.mrb[0].mxu0
        %v950 = vpop.f32.mrb[0].mxu0
        %v951 = vadd.f32 0.0, %v950
        %v952 = vpop.f32.mrb[0].mxu0
        %953 = vmatprep.mubr.bf16.mxu0 0
        %954 = vmatmul.mubr.bf16.gmra.mrb[0].mxu0 %v860
        %v955 = vpop.f32.mrb[0].mxu0
        %v956 = vadd.f32 0.0, %v955
        %v957 = vpop.f32.mrb[0].mxu0
        %v958 = vpop.f32.mrb[0].mxu0
        %v959 = vadd.f32 0.0, %v958
        %v960 = vpop.f32.mrb[0].mxu0
        %961 = vdwg.mxu0
        %vm962 = vcmask 64512
        %v963 = vsel %vm962, %v900, -inf
        %964 = vmax.xlane.f32.xlu0 %v963
        %v965 = vpop.xlane.xlu0 %964
        %v966 = vsel %vm962, %v903, -inf
        %967 = vmax.xlane.f32.xlu0 %v966
        %v968 = vpop.xlane.xlu0 %967
        %v969 = vsel %vm962, %v908, -inf
        %970 = vmax.xlane.f32.xlu0 %v969
        %v971 = vpop.xlane.xlu0 %970
        %v972 = vsel %vm962, %v911, -inf
        %973 = vmax.xlane.f32.xlu0 %v972
        %v974 = vpop.xlane.xlu0 %973
        %v975 = vsel %vm962, %v916, -inf
        %976 = vmax.xlane.f32.xlu0 %v975
        %v977 = vpop.xlane.xlu0 %976
        %v978 = vsel %vm962, %v919, -inf
        %979 = vmax.xlane.f32.xlu0 %v978
        %v980 = vpop.xlane.xlu0 %979
        %v981 = vsel %vm962, %v924, -inf
        %982 = vmax.xlane.f32.xlu0 %v981
        %v983 = vpop.xlane.xlu0 %982
        %v984 = vsel %vm962, %v927, -inf
        %985 = vmax.xlane.f32.xlu0 %v984
        %v986 = vpop.xlane.xlu0 %985
        %v987 = vsel %vm962, %v932, -inf
        %988 = vmax.xlane.f32.xlu0 %v987
        %v989 = vpop.xlane.xlu0 %988
        %v990 = vsel %vm962, %v935, -inf
        %991 = vmax.xlane.f32.xlu0 %v990
        %v992 = vpop.xlane.xlu0 %991
        %v993 = vsel %vm962, %v940, -inf
        %994 = vmax.xlane.f32.xlu0 %v993
        %v995 = vpop.xlane.xlu0 %994
        %v996 = vsel %vm962, %v943, -inf
        %997 = vmax.xlane.f32.xlu0 %v996
        %v998 = vpop.xlane.xlu0 %997
        %v999 = vsel %vm962, %v948, -inf
        %1000 = vmax.xlane.f32.xlu0 %v999
        %v1001 = vpop.xlane.xlu0 %1000
        %v1002 = vsel %vm962, %v951, -inf
        %1003 = vmax.xlane.f32.xlu0 %v1002
        %v1004 = vpop.xlane.xlu0 %1003
        %v1005 = vsel %vm962, %v956, -inf
        %1006 = vmax.xlane.f32.xlu0 %v1005
        %v1007 = vpop.xlane.xlu0 %1006
        %v1008 = vsel %vm962, %v959, -inf
        %1009 = vmax.xlane.f32.xlu0 %v1008
        %v1010 = vpop.xlane.xlu0 %1009
        %v1011 = vsub.f32 %v900, %v965
        %v1012 = vsub.f32 %v903, %v968
        %v1013 = vsub.f32 %v908, %v971
        %v1014 = vsub.f32 %v911, %v974
        %v1015 = vsub.f32 %v916, %v977
        %v1016 = vsub.f32 %v919, %v980
        %v1017 = vsub.f32 %v924, %v983
        %v1018 = vsub.f32 %v927, %v986
        %v1019 = vsub.f32 %v932, %v989
        %v1020 = vsub.f32 %v935, %v992
        %v1021 = vsub.f32 %v940, %v995
        %v1022 = vsub.f32 %v943, %v998
        %v1023 = vsub.f32 %v948, %v1001
        %v1024 = vsub.f32 %v951, %v1004
        %v1025 = vsub.f32 %v956, %v1007
        %v1026 = vsub.f32 %v959, %v1010
        %v1027 = vmul.f32 %v1011, 1.442695
        %v1028 = vpow.pop %v1027
        %v1029 = vmul.f32 %v1012, 1.442695
        %v1030 = vpow.pop %v1029
        %v1031 = vmul.f32 %v1013, 1.442695
        %v1032 = vpow.pop %v1031
        %v1033 = vmul.f32 %v1014, 1.442695
        %v1034 = vpow.pop %v1033
        %v1035 = vmul.f32 %v1015, 1.442695
        %v1036 = vpow.pop %v1035
        %v1037 = vmul.f32 %v1016, 1.442695
        %v1038 = vpow.pop %v1037
        %v1039 = vmul.f32 %v1017, 1.442695
        %v1040 = vpow.pop %v1039
        %v1041 = vmul.f32 %v1018, 1.442695
        %v1042 = vpow.pop %v1041
        %v1043 = vmul.f32 %v1019, 1.442695
        %v1044 = vpow.pop %v1043
        %v1045 = vmul.f32 %v1020, 1.442695
        %v1046 = vpow.pop %v1045
        %v1047 = vmul.f32 %v1021, 1.442695
        %v1048 = vpow.pop %v1047
        %v1049 = vmul.f32 %v1022, 1.442695
        %v1050 = vpow.pop %v1049
        %v1051 = vmul.f32 %v1023, 1.442695
        %v1052 = vpow.pop %v1051
        %v1053 = vmul.f32 %v1024, 1.442695
        %v1054 = vpow.pop %v1053
        %v1055 = vmul.f32 %v1025, 1.442695
        %v1056 = vpow.pop %v1055
        %v1057 = vmul.f32 %v1026, 1.442695
        %v1058 = vpow.pop %v1057
        %v1059 = vsel %vm962, %v1028, 0.0
        %1060 = vadd.xlane.f32.xlu0 %v1059
        %v1061 = vpop.xlane.xlu0 %1060
        %v1062 = vsel %vm962, %v1030, 0.0
        %1063 = vadd.xlane.f32.xlu0 %v1062
        %v1064 = vpop.xlane.xlu0 %1063
        %v1065 = vsel %vm962, %v1032, 0.0
        %1066 = vadd.xlane.f32.xlu0 %v1065
        %v1067 = vpop.xlane.xlu0 %1066
        %v1068 = vsel %vm962, %v1034, 0.0
        %1069 = vadd.xlane.f32.xlu0 %v1068
        %v1070 = vpop.xlane.xlu0 %1069
        %v1071 = vsel %vm962, %v1036, 0.0
        %1072 = vadd.xlane.f32.xlu0 %v1071
        %v1073 = vpop.xlane.xlu0 %1072
        %v1074 = vsel %vm962, %v1038, 0.0
        %1075 = vadd.xlane.f32.xlu0 %v1074
        %v1076 = vpop.xlane.xlu0 %1075
        %v1077 = vsel %vm962, %v1040, 0.0
        %1078 = vadd.xlane.f32.xlu0 %v1077
        %v1079 = vpop.xlane.xlu0 %1078
        %v1080 = vsel %vm962, %v1042, 0.0
        %1081 = vadd.xlane.f32.xlu0 %v1080
        %v1082 = vpop.xlane.xlu0 %1081
        %v1083 = vsel %vm962, %v1044, 0.0
        %1084 = vadd.xlane.f32.xlu0 %v1083
        %v1085 = vpop.xlane.xlu0 %1084
        %v1086 = vsel %vm962, %v1046, 0.0
        %1087 = vadd.xlane.f32.xlu0 %v1086
        %v1088 = vpop.xlane.xlu0 %1087
        %v1089 = vsel %vm962, %v1048, 0.0
        %1090 = vadd.xlane.f32.xlu0 %v1089
        %v1091 = vpop.xlane.xlu0 %1090
        %v1092 = vsel %vm962, %v1050, 0.0
        %1093 = vadd.xlane.f32.xlu0 %v1092
        %v1094 = vpop.xlane.xlu0 %1093
        %v1095 = vsel %vm962, %v1052, 0.0
        %1096 = vadd.xlane.f32.xlu0 %v1095
        %v1097 = vpop.xlane.xlu0 %1096
        %v1098 = vsel %vm962, %v1054, 0.0
        %1099 = vadd.xlane.f32.xlu0 %v1098
        %v1100 = vpop.xlane.xlu0 %1099
        %v1101 = vsel %vm962, %v1056, 0.0
        %1102 = vadd.xlane.f32.xlu0 %v1101
        %v1103 = vpop.xlane.xlu0 %1102
        %v1104 = vsel %vm962, %v1058, 0.0
        %1105 = vadd.xlane.f32.xlu0 %v1104
        %v1106 = vpop.xlane.xlu0 %1105
        %v1107 = vrcp.pop %v1061
        %v1108 = vrcp.pop %v1064
        %v1109 = vrcp.pop %v1067
        %v1110 = vrcp.pop %v1070
        %v1111 = vrcp.pop %v1073
        %v1112 = vrcp.pop %v1076
        %v1113 = vrcp.pop %v1079
        %v1114 = vrcp.pop %v1082
        %v1115 = vrcp.pop %v1085
        %v1116 = vrcp.pop %v1088
        %v1117 = vrcp.pop %v1091
        %v1118 = vrcp.pop %v1094
        %v1119 = vrcp.pop %v1097
        %v1120 = vrcp.pop %v1100
        %v1121 = vrcp.pop %v1103
        %v1122 = vrcp.pop %v1106
        %v1123 = vmul.f32 %v1028, %v1107
        %v1124 = vmul.f32 %v1030, %v1108
        %v1125 = vmul.f32 %v1032, %v1109
        %v1126 = vmul.f32 %v1034, %v1110
        %v1127 = vmul.f32 %v1036, %v1111
        %v1128 = vmul.f32 %v1038, %v1112
        %v1129 = vmul.f32 %v1040, %v1113
        %v1130 = vmul.f32 %v1042, %v1114
        %v1131 = vmul.f32 %v1044, %v1115
        %v1132 = vmul.f32 %v1046, %v1116
        %v1133 = vmul.f32 %v1048, %v1117
        %v1134 = vmul.f32 %v1050, %v1118
        %v1135 = vmul.f32 %v1052, %v1119
        %v1136 = vmul.f32 %v1054, %v1120
        %v1137 = vmul.f32 %v1056, %v1121
        %v1138 = vmul.f32 %v1058, %v1122
        %v1139 = vpack.c.bf16 %v1124, %v1123
        %v1140 = vpack.c.bf16 %v1126, %v1125
        %v1141 = vpack.c.bf16 %v1128, %v1127
        %v1142 = vpack.c.bf16 %v1130, %v1129
        %v1143 = vpack.c.bf16 %v1132, %v1131
        %v1144 = vpack.c.bf16 %v1134, %v1133
        %v1145 = vpack.c.bf16 %v1136, %v1135
        %v1146 = vpack.c.bf16 %v1138, %v1137
        %v1148 = vsel %vm962, %v1139, 0
        %v1151 = vsel %vm962, %v1140, 0
        %v1154 = vsel %vm962, %v1141, 0
        %v1157 = vsel %vm962, %v1142, 0
        %v1160 = vsel %vm962, %v1143, 0
        %v1163 = vsel %vm962, %v1144, 0
        %v1166 = vsel %vm962, %v1145, 0
        %v1169 = vsel %vm962, %v1146, 0
        %vm1171 = vcmask 1043456
        %v1173 = vsel %vm1171, %v829, 0
        %1175 = vmatprep.subr.bf16.mxu0 0
        %1176 = vmatpush1.bf16.msra.mxu0 %v1173
        %1177 = vmatprep.subr.bf16.mxu0 0
        %1178 = vmatpush1.bf16.msra.mxu0 0
        %1179 = vmatprep.subr.bf16.mxu0 0
        %1180 = vmatpush1.bf16.msra.mxu0 0
        %1181 = vmatprep.subr.bf16.mxu0 0
        %1182 = vmatpush1.bf16.msra.mxu0 0
        %1183 = vmatprep.subr.bf16.mxu0 0
        %1184 = vmatpush1.bf16.msra.mxu0 0
        %1185 = vmatprep.subr.bf16.mxu0 0
        %1186 = vmatpush1.bf16.msra.mxu0 0
        %1187 = vmatprep.subr.bf16.mxu0 0
        %1188 = vmatpush1.bf16.msra.mxu0 0
        %1189 = vmatprep.subr.bf16.mxu0 0
        %1190 = vmatpush1.bf16.msra.mxu0 0
        %1191 = vmatprep.subr.bf16.mxu0 0
        %1192 = vmatpush1.bf16.msra.mxu0 0
        %1193 = vmatprep.subr.bf16.mxu0 0
        %1194 = vmatpush1.bf16.msra.mxu0 0
        %1195 = vmatprep.subr.bf16.mxu0 0
        %1196 = vmatpush1.bf16.msra.mxu0 0
        %1197 = vmatprep.subr.bf16.mxu0 0
        %1198 = vmatpush1.bf16.msra.mxu0 0
        %1199 = vmatprep.subr.bf16.mxu0 0
        %1200 = vmatpush1.bf16.msra.mxu0 0
        %1201 = vmatprep.subr.bf16.mxu0 0
        %1202 = vmatpush1.bf16.msra.mxu0 0
        %1203 = vmatprep.subr.bf16.mxu0 0
        %1204 = vmatpush1.bf16.msra.mxu0 0
        %1205 = vmatprep.subr.bf16.mxu0 0
        %1206 = vmatpush1.bf16.msra.mxu0 0
        %1207 = vmatprep.mubr.bf16.mxu0 0
        %1208 = vmatmul.mubr.bf16.gmra.mrb[0].mxu0 %v1148
        %v1209 = vpop.f32.mrb[0].mxu0
        %v1210 = vadd.f32 0.0, %v1209
        %v1211 = vpop.f32.mrb[0].mxu0
        %v1212 = vpop.f32.mrb[0].mxu0
        %v1213 = vadd.f32 0.0, %v1212
        %v1214 = vpop.f32.mrb[0].mxu0
        %1215 = vmatprep.mubr.bf16.mxu0 0
        %1216 = vmatmul.mubr.bf16.gmra.mrb[0].mxu0 %v1151
        %v1217 = vpop.f32.mrb[0].mxu0
        %v1218 = vadd.f32 0.0, %v1217
        %v1219 = vpop.f32.mrb[0].mxu0
        %v1220 = vpop.f32.mrb[0].mxu0
        %v1221 = vadd.f32 0.0, %v1220
        %v1222 = vpop.f32.mrb[0].mxu0
        %1223 = vmatprep.mubr.bf16.mxu0 0
        %1224 = vmatmul.mubr.bf16.gmra.mrb[0].mxu0 %v1154
        %v1225 = vpop.f32.mrb[0].mxu0
        %v1226 = vadd.f32 0.0, %v1225
        %v1227 = vpop.f32.mrb[0].mxu0
        %v1228 = vpop.f32.mrb[0].mxu0
        %v1229 = vadd.f32 0.0, %v1228
        %v1230 = vpop.f32.mrb[0].mxu0
        %1231 = vmatprep.mubr.bf16.mxu0 0
        %1232 = vmatmul.mubr.bf16.gmra.mrb[0].mxu0 %v1157
        %v1233 = vpop.f32.mrb[0].mxu0
        %v1234 = vadd.f32 0.0, %v1233
        %v1235 = vpop.f32.mrb[0].mxu0
        %v1236 = vpop.f32.mrb[0].mxu0
        %v1237 = vadd.f32 0.0, %v1236
        %v1238 = vpop.f32.mrb[0].mxu0
        %1239 = vmatprep.mubr.bf16.mxu0 0
        %1240 = vmatmul.mubr.bf16.gmra.mrb[0].mxu0 %v1160
        %v1241 = vpop.f32.mrb[0].mxu0
        %v1242 = vadd.f32 0.0, %v1241
        %v1243 = vpop.f32.mrb[0].mxu0
        %v1244 = vpop.f32.mrb[0].mxu0
        %v1245 = vadd.f32 0.0, %v1244
        %v1246 = vpop.f32.mrb[0].mxu0
        %1247 = vmatprep.mubr.bf16.mxu0 0
        %1248 = vmatmul.mubr.bf16.gmra.mrb[0].mxu0 %v1163
        %v1249 = vpop.f32.mrb[0].mxu0
        %v1250 = vadd.f32 0.0, %v1249
        %v1251 = vpop.f32.mrb[0].mxu0
        %v1252 = vpop.f32.mrb[0].mxu0
        %v1253 = vadd.f32 0.0, %v1252
        %v1254 = vpop.f32.mrb[0].mxu0
        %1255 = vmatprep.mubr.bf16.mxu0 0
        %1256 = vmatmul.mubr.bf16.gmra.mrb[0].mxu0 %v1166
        %v1257 = vpop.f32.mrb[0].mxu0
        %v1258 = vadd.f32 0.0, %v1257
        %v1259 = vpop.f32.mrb[0].mxu0
        %v1260 = vpop.f32.mrb[0].mxu0
        %v1261 = vadd.f32 0.0, %v1260
        %v1262 = vpop.f32.mrb[0].mxu0
        %1263 = vmatprep.mubr.bf16.mxu0 0
        %1264 = vmatmul.mubr.bf16.gmra.mrb[0].mxu0 %v1169
        %v1265 = vpop.f32.mrb[0].mxu0
        %v1266 = vadd.f32 0.0, %v1265
        %v1267 = vpop.f32.mrb[0].mxu0
        %v1268 = vpop.f32.mrb[0].mxu0
        %v1269 = vadd.f32 0.0, %v1268
        %v1270 = vpop.f32.mrb[0].mxu0
        %1271 = vdwg.mxu0
        %v1272 = vpack.c.bf16 %v1213, %v1210
        %v1273 = vpack.c.bf16 %v1221, %v1218
        %v1274 = vpack.c.bf16 %v1229, %v1226
        %v1275 = vpack.c.bf16 %v1237, %v1234
        %v1276 = vpack.c.bf16 %v1245, %v1242
        %v1277 = vpack.c.bf16 %v1253, %v1250
        %v1278 = vpack.c.bf16 %v1261, %v1258
        %v1279 = vpack.c.bf16 %v1269, %v1266
        %v1280 = vld [vmem:[%s7] sm:$0xf]
        %v1281 = vld [vmem:[%s7 + $0x4] sm:$0xf]
        %v1282 = vld [vmem:[%s7 + $0x8] sm:$0xf]
        %v1283 = vld [vmem:[%s7 + $0xc] sm:$0xf]
        %v1284 = vld [vmem:[%s7 + $0x10] sm:$0xf]
        %v1285 = vld [vmem:[%s7 + $0x14] sm:$0xf]
        %v1286 = vld [vmem:[%s7 + $0x18] sm:$0xf]
        %v1287 = vld [vmem:[%s7 + $0x1c] sm:$0xf]
        %v1288 = vld [vmem:[%s8] sm:$0x1]
        %v1290 = vlaneseq
        %v1291 = vshrl.u32 %v1290, 7
        %v1292 = vsub.s32 0, %v1291
        %v1293 = vrot.slane %v1288, %v1292
        %v1303 = vunpack.c.l.b16 %v1280
        %v1304 = vunpack.c.l.b16 %v1281
        %v1305 = vunpack.c.l.b16 %v1282
        %v1306 = vunpack.c.l.b16 %v1283
        %v1307 = vunpack.c.l.b16 %v1284
        %v1308 = vunpack.c.l.b16 %v1285
        %v1309 = vunpack.c.l.b16 %v1286
        %v1310 = vunpack.c.l.b16 %v1287
        %v1311 = vpack.c.b16 %v1304, %v1303
        %v1312 = vpack.c.b16 %v1306, %v1305
        %v1313 = vpack.c.b16 %v1308, %v1307
        %v1314 = vpack.c.b16 %v1310, %v1309
        %v1320 = vsel %vm690, %v1272, 0
        %v1323 = vsel %vm690, %v1273, 0
        %v1326 = vsel %vm690, %v1274, 0
        %v1329 = vsel %vm690, %v1275, 0
        %v1332 = vsel %vm690, %v1276, 0
        %v1335 = vsel %vm690, %v1277, 0
        %v1338 = vsel %vm690, %v1278, 0
        %v1341 = vsel %vm690, %v1279, 0
        %1343 = vmatprep.subr.bf16.mxu0 0
        %1344 = vmatpush1.bf16.msra.mxu0 %v1311
        %1345 = vmatprep.subr.bf16.mxu0 0
        %1346 = vmatpush1.bf16.msra.mxu0 %v1312
        %1347 = vmatprep.subr.bf16.mxu0 0
        %1348 = vmatpush1.bf16.msra.mxu0 %v1313
        %1349 = vmatprep.subr.bf16.mxu0 0
        %1350 = vmatpush1.bf16.msra.mxu0 %v1314
        %1351 = vmatprep.subr.bf16.mxu0 0
        %1352 = vmatpush1.bf16.msra.mxu0 0
        %1353 = vmatprep.subr.bf16.mxu0 0
        %1354 = vmatpush1.bf16.msra.mxu0 0
        %1355 = vmatprep.subr.bf16.mxu0 0
        %1356 = vmatpush1.bf16.msra.mxu0 0
        %1357 = vmatprep.subr.bf16.mxu0 0
        %1358 = vmatpush1.bf16.msra.mxu0 0
        %1359 = vmatprep.subr.bf16.mxu0 0
        %1360 = vmatpush1.bf16.msra.mxu0 0
        %1361 = vmatprep.subr.bf16.mxu0 0
        %1362 = vmatpush1.bf16.msra.mxu0 0
        %1363 = vmatprep.subr.bf16.mxu0 0
        %1364 = vmatpush1.bf16.msra.mxu0 0
        %1365 = vmatprep.subr.bf16.mxu0 0
        %1366 = vmatpush1.bf16.msra.mxu0 0
        %1367 = vmatprep.subr.bf16.mxu0 0
        %1368 = vmatpush1.bf16.msra.mxu0 0
        %1369 = vmatprep.subr.bf16.mxu0 0
        %1370 = vmatpush1.bf16.msra.mxu0 0
        %1371 = vmatprep.subr.bf16.mxu0 0
        %1372 = vmatpush1.bf16.msra.mxu0 0
        %1373 = vmatprep.subr.bf16.mxu0 0
        %1374 = vmatpush1.bf16.msra.mxu0 0
        %1375 = vmatprep.mubr.bf16.mxu0 0
        %1376 = vmatmul.mubr.bf16.gmra.mrb[0].mxu0 %v1320
        %v1377 = vpop.f32.mrb[0].mxu0
        %v1378 = vadd.f32 %v1293, %v1377
        %v1379 = vpop.f32.mrb[0].mxu0
        %v1380 = vpop.f32.mrb[0].mxu0
        %v1381 = vadd.f32 %v1293, %v1380
        %v1382 = vpop.f32.mrb[0].mxu0
        %1383 = vmatprep.mubr.bf16.mxu0 0
        %1384 = vmatmul.mubr.bf16.gmra.mrb[0].mxu0 %v1323
        %v1385 = vpop.f32.mrb[0].mxu0
        %v1386 = vadd.f32 %v1293, %v1385
        %v1387 = vpop.f32.mrb[0].mxu0
        %v1388 = vpop.f32.mrb[0].mxu0
        %v1389 = vadd.f32 %v1293, %v1388
        %v1390 = vpop.f32.mrb[0].mxu0
        %1391 = vmatprep.mubr.bf16.mxu0 0
        %1392 = vmatmul.mubr.bf16.gmra.mrb[0].mxu0 %v1326
        %v1393 = vpop.f32.mrb[0].mxu0
        %v1394 = vadd.f32 %v1293, %v1393
        %v1395 = vpop.f32.mrb[0].mxu0
        %v1396 = vpop.f32.mrb[0].mxu0
        %v1397 = vadd.f32 %v1293, %v1396
        %v1398 = vpop.f32.mrb[0].mxu0
        %1399 = vmatprep.mubr.bf16.mxu0 0
        %1400 = vmatmul.mubr.bf16.gmra.mrb[0].mxu0 %v1329
        %v1401 = vpop.f32.mrb[0].mxu0
        %v1402 = vadd.f32 %v1293, %v1401
        %v1403 = vpop.f32.mrb[0].mxu0
        %v1404 = vpop.f32.mrb[0].mxu0
        %v1405 = vadd.f32 %v1293, %v1404
        %v1406 = vpop.f32.mrb[0].mxu0
        %1407 = vmatprep.mubr.bf16.mxu0 0
        %1408 = vmatmul.mubr.bf16.gmra.mrb[0].mxu0 %v1332
        %v1409 = vpop.f32.mrb[0].mxu0
        %v1410 = vadd.f32 %v1293, %v1409
        %v1411 = vpop.f32.mrb[0].mxu0
        %v1412 = vpop.f32.mrb[0].mxu0
        %v1413 = vadd.f32 %v1293, %v1412
        %v1414 = vpop.f32.mrb[0].mxu0
        %1415 = vmatprep.mubr.bf16.mxu0 0
        %1416 = vmatmul.mubr.bf16.gmra.mrb[0].mxu0 %v1335
        %v1417 = vpop.f32.mrb[0].mxu0
        %v1418 = vadd.f32 %v1293, %v1417
        %v1419 = vpop.f32.mrb[0].mxu0
        %v1420 = vpop.f32.mrb[0].mxu0
        %v1421 = vadd.f32 %v1293, %v1420
        %v1422 = vpop.f32.mrb[0].mxu0
        %1423 = vmatprep.mubr.bf16.mxu0 0
        %1424 = vmatmul.mubr.bf16.gmra.mrb[0].mxu0 %v1338
        %v1425 = vpop.f32.mrb[0].mxu0
        %v1426 = vadd.f32 %v1293, %v1425
        %v1427 = vpop.f32.mrb[0].mxu0
        %v1428 = vpop.f32.mrb[0].mxu0
        %v1429 = vadd.f32 %v1293, %v1428
        %v1430 = vpop.f32.mrb[0].mxu0
        %1431 = vmatprep.mubr.bf16.mxu0 0
        %1432 = vmatmul.mubr.bf16.gmra.mrb[0].mxu0 %v1341
        %v1433 = vpop.f32.mrb[0].mxu0
        %v1434 = vadd.f32 %v1293, %v1433
        %v1435 = vpop.f32.mrb[0].mxu0
        %v1436 = vpop.f32.mrb[0].mxu0
        %v1437 = vadd.f32 %v1293, %v1436
        %v1438 = vpop.f32.mrb[0].mxu0
        %1439 = vdwg.mxu0
        %v1440 = vmax.f32 %v1378, 0.0
        %v1441 = vmax.f32 %v1381, 0.0
        %v1442 = vmax.f32 %v1386, 0.0
        %v1443 = vmax.f32 %v1389, 0.0
        %v1444 = vmax.f32 %v1394, 0.0
        %v1445 = vmax.f32 %v1397, 0.0
        %v1446 = vmax.f32 %v1402, 0.0
        %v1447 = vmax.f32 %v1405, 0.0
        %v1448 = vmax.f32 %v1410, 0.0
        %v1449 = vmax.f32 %v1413, 0.0
        %v1450 = vmax.f32 %v1418, 0.0
        %v1451 = vmax.f32 %v1421, 0.0
        %v1452 = vmax.f32 %v1426, 0.0
        %v1453 = vmax.f32 %v1429, 0.0
        %v1454 = vmax.f32 %v1434, 0.0
        %v1455 = vmax.f32 %v1437, 0.0
        %1456 = vxpose.xlu0.b32.start [1/16] %v1440, 128
        %1457 = vxpose.xlu0.b32.cont [2/16] %v1441, 128
        %1458 = vxpose.xlu0.b32.cont [3/16] %v1442, 128
        %1459 = vxpose.xlu0.b32.cont [4/16] %v1443, 128
        %1460 = vxpose.xlu0.b32.cont [5/16] %v1444, 128
        %1461 = vxpose.xlu0.b32.cont [6/16] %v1445, 128
        %1462 = vxpose.xlu0.b32.cont [7/16] %v1446, 128
        %1463 = vxpose.xlu0.b32.cont [8/16] %v1447, 128
        %1464 = vxpose.xlu0.b32.cont [9/16] %v1448, 128
        %1465 = vxpose.xlu0.b32.cont [10/16] %v1449, 128
        %1466 = vxpose.xlu0.b32.cont [11/16] %v1450, 128
        %1467 = vxpose.xlu0.b32.cont [12/16] %v1451, 128
        %1468 = vxpose.xlu0.b32.cont [13/16] %v1452, 128
        %1469 = vxpose.xlu0.b32.cont [14/16] %v1453, 128
        %1470 = vxpose.xlu0.b32.cont [15/16] %v1454, 128
        %1471 = vxpose.xlu0.b32.end [16/16] %v1455, 128
        %v1472 = vpop.trf.xlu0
        %v1473 = vpop.trf.xlu0
        %v1474 = vpop.trf.xlu0
        %v1475 = vpop.trf.xlu0
        %v1476 = vpop.trf.xlu0
        %v1477 = vpop.trf.xlu0
        %v1478 = vpop.trf.xlu0
        %v1479 = vpop.trf.xlu0
        %v1480 = vpop.trf.xlu0
        %v1481 = vpop.trf.xlu0
        %v1482 = vpop.trf.xlu0
        %v1483 = vpop.trf.xlu0
        %v1484 = vpop.trf.xlu0
        %v1485 = vpop.trf.xlu0
        %v1486 = vpop.trf.xlu0
        %v1487 = vpop.trf.xlu0
        %1488 = vst [vmem:[%s393] sm:$0xff] %v1472
        %1489 = vst [vmem:[%s393 + $0x8] sm:$0xff] %v1473
        %1490 = vst [vmem:[%s393 + $0x10] sm:$0xff] %v1474
        %1491 = vst [vmem:[%s393 + $0x18] sm:$0xff] %v1475
        %1492 = vst [vmem:[%s393 + $0x20] sm:$0xff] %v1476
        %1493 = vst [vmem:[%s393 + $0x28] sm:$0xff] %v1477
        %1494 = vst [vmem:[%s393 + $0x30] sm:$0xff] %v1478
        %1495 = vst [vmem:[%s393 + $0x38] sm:$0xff] %v1479
        %1496 = vst [vmem:[%s393 + $0x40] sm:$0xff] %v1480
        %1497 = vst [vmem:[%s393 + $0x48] sm:$0xff] %v1481
        %1498 = vst [vmem:[%s393 + $0x50] sm:$0xff] %v1482
        %1499 = vst [vmem:[%s393 + $0x58] sm:$0xff] %v1483
        %1500 = vst [vmem:[%s393 + $0x60] sm:$0xff] %v1484
        %1501 = vst [vmem:[%s393 + $0x68] sm:$0xff] %v1485
        %1502 = vst [vmem:[%s393 + $0x70] sm:$0xff] %v1486
        %1503 = vst [vmem:[%s393 + $0x78] sm:$0xff] %v1487
        %s1504 = sand.u32 %s254, 1
        %s1505 = scalar_lea.sflag [#allocation4], %s1504
        %s1506 = sand.u32 %s254, 1
        %s1507 = smul.addr %s1506, 128
        %s1508 = scalar_lea.vmem [#allocation5], %s1507
        // Predicated region
        $region61: #{tpu_custom_call.1} parent=55 // pred_check
          %p1509 = pneg %p264
        $region62: #{tpu_custom_call.1} parent=55 // pred_check_branch
          %1511 = sbr.rel (%p1509) target = $region64
        $region63: #{tpu_custom_call.1} parent=55 // pred_region
          %s1513 = ssub.s32 2048, 2048
          %1514 = vsyncadd %s1505, %s1513
          %s1515 = smul.addr %s30, 32
          %s1516 = sadd.s32 %s31, %s1515
          %s1517 = smul.addr %s1516, 128
          %s1518 = scalar_lea.hbm %s9, %s1517
          %s1519 = sshll.u32 %s1508, 4
          %s1520 = int_to_ptr.vmem [resolvable:$true] %s1519
          %1525 = dma.vmem_to_hbm [thread:$0]  %s1520, 2048, %s1518, %s1505, 128, 256, 8
        $region64: #{tpu_custom_call.1} parent=55 // pred_fallthru
          _
      $region56: #{tpu_custom_call.1} parent=5 // pred_fallthru
        _
      %p1526 = scmp.le.s32.totalorder 2, %s21
      // Predicated region
      $region65: #{tpu_custom_call.1} parent=5 // pred_check
        %p1527 = pneg %p1526
      $region66: #{tpu_custom_call.1} parent=5 // pred_check_branch
        %1529 = sbr.rel (%p1527) target = $region68
      $region67: #{tpu_custom_call.1} parent=5 // pred_region
        %s1530 = ssub.s32 %s21, 2
        // Predicated region
        $region69: #{tpu_custom_call.1} parent=67 // pred_check
          %p1531 = pneg %p270
        $region70: #{tpu_custom_call.1} parent=67 // pred_check_branch
          %1533 = sbr.rel (%p1531) target = $region72
        $region71: #{tpu_custom_call.1} parent=67 // pred_region
          %s1534 = sand.u32 %s255, 1
          %s1535 = scalar_lea.sflag [#allocation4], %s1534
          %s1536 = sand.u32 %s255, 1
          %s1537 = smul.addr %s1536, 128
          %s1538 = scalar_lea.vmem [#allocation5], %s1537
          %1539 = dma.done %s1535, 2048
        $region72: #{tpu_custom_call.1} parent=67 // pred_fallthru
          _
      $region68: #{tpu_custom_call.1} parent=5 // pred_fallthru
        _
    $region6: #{tpu_custom_call.1} parent=1 // loop_footer
      %s25 = sadd.s32 1, %s21
    $region7: #{tpu_custom_call.1} parent=1 // loop_footer_branch
      %20 = sbr.rel target = $region3
    $region8: #{tpu_custom_call.1} parent=1 // loop_exit
      _
    %1540 = vsyncpa [#allocation3], 1
    %s1541 = scalar_lea.sflag [#allocation3], 1
    %1542 = vsyncpa %s1541, 1
    %1543 = vsyncpa [#allocation4], 1
    %s1544 = scalar_lea.sflag [#allocation4], 1
    %1545 = vsyncpa %s1544, 1

</llo_original>
